<compile_context>
chip_gen: v5e
topology: v5e:2x2
jax: 0.10.0
libtpu: 0.0.40
codegen_flags: <defaults>
</compile_context>

<pallas_src>
import functools

import jax
import jax.numpy as jnp
import numpy as np
from jax.experimental import pallas as pl
from jax.experimental.pallas import tpu as pltpu  # noqa: F401  (only needed if scaled up)

EPS = 1e-5  # PyTorch LayerNorm default eps


# --------------------------------------------------------------------------
# Fused kernel: all encoder layers + fc head, whole batch, one invocation.
# --------------------------------------------------------------------------
def fused_forward_kernel(x_ref, wqkv_ref, bqkv_ref, wo_ref, bo_ref,
                         ln1w_ref, ln1b_ref, w1_ref, b1_ref,
                         w2_ref, b2_ref, ln2w_ref, ln2b_ref,
                         fcw_ref, fcb_ref, out_ref, *, nhead):
    B, S, D = x_ref.shape
    L = wqkv_ref.shape[0]
    hd = D // nhead
    scale = 1.0 / (hd ** 0.5)
    bf16 = jnp.bfloat16

    x2 = x_ref[...].reshape(B * S, D)          # activations stay resident (f32)

    for l in range(L):                         # static unroll over layers
        # ---- fused QKV projection: one matmul for the whole batch ---------
        qkv = jnp.dot(x2.astype(bf16), wqkv_ref[l],
                      preferred_element_type=jnp.float32) + bqkv_ref[l]
        q = qkv[:, 0 * D:1 * D].reshape(B, S, D)
        k = qkv[:, 1 * D:2 * D].reshape(B, S, D)
        v = qkv[:, 2 * D:3 * D].reshape(B, S, D)

        # ---- multi-head self-attention, batched over B ---------------------
        wo = wo_ref[l]                         # (D, D) bf16
        attn = jnp.zeros((B * S, D), jnp.float32)
        for h in range(nhead):                 # static loop, small nhead
            qh = q[:, :, h * hd:(h + 1) * hd]
            kh = k[:, :, h * hd:(h + 1) * hd]
            vh = v[:, :, h * hd:(h + 1) * hd]
            s = jnp.einsum('bqd,bkd->bqk', qh, kh,
                           preferred_element_type=jnp.float32) * scale
            s = s - jnp.max(s, axis=-1, keepdims=True)
            p = jnp.exp(s)
            p = p * pl.reciprocal(jnp.sum(p, axis=-1, keepdims=True), approx=True)
            oh = jnp.einsum('bqk,bkd->bqd', p, vh,
                            preferred_element_type=jnp.float32)       # (B,S,hd)
            # accumulate output projection per head (no head concat)
            attn = attn + jnp.dot(oh.reshape(B * S, hd).astype(bf16),
                                  wo[h * hd:(h + 1) * hd, :],
                                  preferred_element_type=jnp.float32)
        attn = attn + bo_ref[l]
        # TODO(synk): dropout omitted (inference/eval semantics; src_key_padding_mask=None).

        # ---- residual + LayerNorm1 (f32) -----------------------------------
        y = x2 + attn
        mu = jnp.mean(y, axis=-1, keepdims=True)
        var = jnp.mean((y - mu) ** 2, axis=-1, keepdims=True)
        y = (y - mu) * jax.lax.rsqrt(var + EPS) * ln1w_ref[l] + ln1b_ref[l]

        # ---- feed-forward (Linear -> ReLU -> Linear) ------------------------
        h1 = jnp.dot(y.astype(bf16), w1_ref[l],
                     preferred_element_type=jnp.float32) + b1_ref[l]
        h1 = jnp.maximum(h1, 0.0)
        ff = jnp.dot(h1.astype(bf16), w2_ref[l],
                     preferred_element_type=jnp.float32) + b2_ref[l]

        # ---- residual + LayerNorm2 ------------------------------------------
        z = y + ff
        mu2 = jnp.mean(z, axis=-1, keepdims=True)
        var2 = jnp.mean((z - mu2) ** 2, axis=-1, keepdims=True)
        x2 = (z - mu2) * jax.lax.rsqrt(var2 + EPS) * ln2w_ref[l] + ln2b_ref[l]

    # ---- fc head epilogue: logits of token 0 of each sequence ---------------
    x0 = jnp.concatenate([x2[b * S:b * S + 1, :] for b in range(B)], axis=0)  # (B, D)
    out_ref[...] = (jnp.dot(x0.astype(bf16), fcw_ref[...],
                            preferred_element_type=jnp.float32) + fcb_ref[...])


def forward(params, src, nhead):
    B, S = src.shape
    # glue: embedding gather + positional embedding add stay in plain JAX
    x = params["emb"][src] + params["pos"][jnp.arange(S)][None]   # (B, S, D) f32
    V = params["fc_w_t"].shape[1]
    kernel = functools.partial(fused_forward_kernel, nhead=nhead)
    # No grid / no BlockSpecs: every operand is a full VMEM block (everything
    # fits comfortably; weights total < 1 MiB even on v7x's 64 MiB VMEM).
    return pl.pallas_call(
        kernel,
        out_shape=jax.ShapeDtypeStruct((B, V), jnp.float32),
    )(x, params["wqkv_t"], params["bqkv"], params["wo_t"], params["bo"],
      params["ln1_w"], params["ln1_b"], params["w1_t"], params["b1"],
      params["w2_t"], params["b2"], params["ln2_w"], params["ln2_b"],
      params["fc_w_t"], params["fc_b"])


# --------------------------------------------------------------------------
# Parameter init (deterministic, shapes from the module __init__)
# --------------------------------------------------------------------------
def init_params(key, vocab, d_model, nhead, num_layers, max_seq_len, d_ff):
    bf16 = jnp.bfloat16
    keys = jax.random.split(key, 4 + num_layers)
    emb = 0.02 * jax.random.normal(keys[0], (vocab, d_model), jnp.float32)
    emb = emb.at[0].set(0.0)                       # padding_idx=0
    pos = 0.02 * jax.random.normal(keys[1], (max_seq_len, d_model), jnp.float32)
    fc_w = 0.02 * jax.random.normal(keys[2], (vocab, d_model), jnp.float32)
    fc_b = 0.01 * jax.random.normal(keys[3], (vocab,), jnp.float32)

    wqkv_t, bqkv, wo_t, bo = [], [], [], []
    w1_t, b1, w2_t, b2 = [], [], [], []
    for l in range(num_layers):
        lk = jax.random.split(keys[4 + l], 8)
        wqkv = 0.02 * jax.random.normal(lk[0], (3 * d_model, d_model), jnp.float32)
        wqkv_t.append(wqkv.T)
        bqkv.append(0.01 * jax.random.normal(lk[1], (3 * d_model,), jnp.float32))
        wo = 0.02 * jax.random.normal(lk[2], (d_model, d_model), jnp.float32)
        wo_t.append(wo.T)
        bo.append(0.01 * jax.random.normal(lk[3], (d_model,), jnp.float32))
        w1 = 0.02 * jax.random.normal(lk[4], (d_ff, d_model), jnp.float32)
        w1_t.append(w1.T)
        b1.append(0.01 * jax.random.normal(lk[5], (d_ff,), jnp.float32))
        w2 = 0.02 * jax.random.normal(lk[6], (d_model, d_ff), jnp.float32)
        w2_t.append(w2.T)
        b2.append(0.01 * jax.random.normal(lk[7], (d_model,), jnp.float32))

    L = num_layers
    return dict(
        emb=emb, pos=pos,
        # stacked per-layer weights; matmul weights stored bf16, rest f32
        wqkv_t=jnp.stack(wqkv_t).astype(bf16),          # (L, D, 3D)
        bqkv=jnp.stack(bqkv)[:, None, :],               # (L, 1, 3D)
        wo_t=jnp.stack(wo_t).astype(bf16),              # (L, D, D)
        bo=jnp.stack(bo)[:, None, :],                   # (L, 1, D)
        ln1_w=jnp.ones((L, 1, d_model), jnp.float32),
        ln1_b=jnp.zeros((L, 1, d_model), jnp.float32),
        w1_t=jnp.stack(w1_t).astype(bf16),              # (L, D, d_ff)
        b1=jnp.stack(b1)[:, None, :],                   # (L, 1, d_ff)
        w2_t=jnp.stack(w2_t).astype(bf16),              # (L, d_ff, D)
        b2=jnp.stack(b2)[:, None, :],                   # (L, 1, D)
        ln2_w=jnp.ones((L, 1, d_model), jnp.float32),
        ln2_b=jnp.zeros((L, 1, d_model), jnp.float32),
        fc_w_t=fc_w.T.astype(bf16),                     # (D, V)
        fc_b=fc_b.reshape(1, -1),                       # (1, V)
    )


# --------------------------------------------------------------------------
# Pure-JAX reference (mirrors the kernel's bf16 matmul operands + f32 accum)
# --------------------------------------------------------------------------
def ref_forward(params, src, nhead):
    bf16 = jnp.bfloat16
    x = params["emb"][src] + params["pos"][jnp.arange(src.shape[1])][None]
    B, S, D = x.shape
    hd = D // nhead
    scale = 1.0 / (hd ** 0.5)
    L = params["wqkv_t"].shape[0]
    x2 = x.reshape(B * S, D)
    for l in range(L):
        qkv = jnp.dot(x2.astype(bf16), params["wqkv_t"][l],
                      preferred_element_type=jnp.float32) + params["bqkv"][l]
        q = qkv[:, :D].reshape(B, S, D)
        k = qkv[:, D:2 * D].reshape(B, S, D)
        v = qkv[:, 2 * D:].reshape(B, S, D)
        wo = params["wo_t"][l]
        attn = jnp.zeros((B * S, D), jnp.float32)
        for h in range(nhead):
            qh = q[..., h * hd:(h + 1) * hd]
            kh = k[..., h * hd:(h + 1) * hd]
            vh = v[..., h * hd:(h + 1) * hd]
            s = jnp.einsum('bqd,bkd->bqk', qh, kh,
                           preferred_element_type=jnp.float32) * scale
            p = jax.nn.softmax(s, axis=-1)
            oh = jnp.einsum('bqk,bkd->bqd', p, vh, preferred_element_type=jnp.float32)
            attn = attn + jnp.dot(oh.reshape(B * S, hd).astype(bf16),
                                  wo[h * hd:(h + 1) * hd, :],
                                  preferred_element_type=jnp.float32)
        attn = attn + params["bo"][l]
        y = x2 + attn
        y = ((y - y.mean(-1, keepdims=True))
             * jax.lax.rsqrt(y.var(-1, keepdims=True) + EPS)) * params["ln1_w"][l] + params["ln1_b"][l]
        h1 = jnp.maximum(jnp.dot(y.astype(bf16), params["w1_t"][l],
                                 preferred_element_type=jnp.float32) + params["b1"][l], 0.0)
        ff = jnp.dot(h1.astype(bf16), params["w2_t"][l],
                     preferred_element_type=jnp.float32) + params["b2"][l]
        z = y + ff
        x2 = ((z - z.mean(-1, keepdims=True))
              * jax.lax.rsqrt(z.var(-1, keepdims=True) + EPS)) * params["ln2_w"][l] + params["ln2_b"][l]
    x0 = x2.reshape(B, S, D)[:, 0, :]
    return jnp.dot(x0.astype(bf16), params["fc_w_t"],
                   preferred_element_type=jnp.float32) + params["fc_b"]


if __name__ == "__main__":
    vocab_size, d_model, nhead, num_layers = 16, 32, 4, 2
    max_seq_len = 64
    d_ff = 2048          # nn.TransformerEncoderLayer default dim_feedforward
    B, S = 2, 8

    key = jax.random.PRNGKey(0)
    pkey, dkey = jax.random.split(key)
    params = init_params(pkey, vocab_size, d_model, nhead, num_layers, max_seq_len, d_ff)
    src = jax.random.randint(dkey, (B, S), 0, vocab_size, dtype=jnp.int32)

    out = jax.block_until_ready(forward(params, src, nhead))
    assert out.shape == (B, vocab_size)

    ref = jax.block_until_ready(ref_forward(params, src, nhead))
    np.testing.assert_allclose(np.asarray(out), np.asarray(ref, dtype=np.float32),
                               atol=5e-3, rtol=5e-3)

    print("KERNEL_OK")
</pallas_src>

<mosaic_0001>
module attributes {stable_mosaic.version = 11 : i64} {
  func.func @fused_forward_kernel(%arg0: memref<2x8x32xf32, #tpu.memory_space<vmem>>, %arg1: memref<2x32x96xbf16, #tpu.memory_space<vmem>>, %arg2: memref<2x1x96xf32, #tpu.memory_space<vmem>>, %arg3: memref<2x32x32xbf16, #tpu.memory_space<vmem>>, %arg4: memref<2x1x32xf32, #tpu.memory_space<vmem>>, %arg5: memref<2x1x32xf32, #tpu.memory_space<vmem>>, %arg6: memref<2x1x32xf32, #tpu.memory_space<vmem>>, %arg7: memref<2x32x2048xbf16, #tpu.memory_space<vmem>>, %arg8: memref<2x1x2048xf32, #tpu.memory_space<vmem>>, %arg9: memref<2x2048x32xbf16, #tpu.memory_space<vmem>>, %arg10: memref<2x1x32xf32, #tpu.memory_space<vmem>>, %arg11: memref<2x1x32xf32, #tpu.memory_space<vmem>>, %arg12: memref<2x1x32xf32, #tpu.memory_space<vmem>>, %arg13: memref<32x16xbf16, #tpu.memory_space<vmem>>, %arg14: memref<1x16xf32, #tpu.memory_space<vmem>>, %arg15: memref<2x16xf32, #tpu.memory_space<vmem>>) attributes {dimension_semantics = [], scalar_prefetch = 0 : i64, scratch_operands = 0 : i64, tpu.core_type = #tpu.core_type<tc>} {
    %c0 = arith.constant 0 : index
    %c0_0 = arith.constant 0 : index
    %c0_1 = arith.constant 0 : index
    %0 = vector.load %arg0[%c0, %c0_0, %c0_1] : memref<2x8x32xf32, #tpu.memory_space<vmem>>, vector<2x8x32xf32>
    %1 = vector.shape_cast %0 : vector<2x8x32xf32> to vector<16x32xf32>
    %2 = arith.truncf %1 : vector<16x32xf32> to vector<16x32xbf16>
    %c0_2 = arith.constant 0 : index
    %c0_3 = arith.constant 0 : index
    %c0_4 = arith.constant 0 : index
    %3 = vector.load %arg1[%c0_2, %c0_3, %c0_4] : memref<2x32x96xbf16, #tpu.memory_space<vmem>>, vector<1x32x96xbf16>
    %4 = vector.shape_cast %3 : vector<1x32x96xbf16> to vector<32x96xbf16>
    %cst = arith.constant dense<0.000000e+00> : vector<16x96xf32>
    %5 = tpu.matmul %2, %4, %cst {dimension_numbers = #tpu.dot_dimension_numbers<[1], [0], [0], [1], [0, 0, 1, 1], [], []>} : vector<16x32xbf16>, vector<32x96xbf16>, vector<16x96xf32> -> vector<16x96xf32>
    %c0_5 = arith.constant 0 : index
    %c0_6 = arith.constant 0 : index
    %c0_7 = arith.constant 0 : index
    %6 = vector.load %arg2[%c0_5, %c0_6, %c0_7] : memref<2x1x96xf32, #tpu.memory_space<vmem>>, vector<1x1x96xf32>
    %7 = vector.shape_cast %6 : vector<1x1x96xf32> to vector<1x96xf32>
    %8 = vector.broadcast %7 : vector<1x96xf32> to vector<16x96xf32>
    %9 = arith.addf %5, %8 : vector<16x96xf32>
    %10 = vector.extract_strided_slice %9 {offsets = [0, 0], sizes = [16, 32], strides = [1, 1]} : vector<16x96xf32> to vector<16x32xf32>
    %11 = vector.shape_cast %10 : vector<16x32xf32> to vector<2x8x32xf32>
    %12 = vector.extract_strided_slice %9 {offsets = [0, 32], sizes = [16, 32], strides = [1, 1]} : vector<16x96xf32> to vector<16x32xf32>
    %13 = vector.shape_cast %12 : vector<16x32xf32> to vector<2x8x32xf32>
    %14 = vector.extract_strided_slice %9 {offsets = [0, 64], sizes = [16, 32], strides = [1, 1]} : vector<16x96xf32> to vector<16x32xf32>
    %15 = vector.shape_cast %14 : vector<16x32xf32> to vector<2x8x32xf32>
    %c0_8 = arith.constant 0 : index
    %c0_9 = arith.constant 0 : index
    %c0_10 = arith.constant 0 : index
    %16 = vector.load %arg3[%c0_8, %c0_9, %c0_10] : memref<2x32x32xbf16, #tpu.memory_space<vmem>>, vector<1x32x32xbf16>
    %17 = vector.shape_cast %16 : vector<1x32x32xbf16> to vector<32x32xbf16>
    %cst_11 = arith.constant 0.000000e+00 : f32
    %18 = vector.broadcast %cst_11 : f32 to vector<16x32xf32>
    %19 = vector.extract_strided_slice %11 {offsets = [0, 0, 0], sizes = [2, 8, 8], strides = [1, 1, 1]} : vector<2x8x32xf32> to vector<2x8x8xf32>
    %20 = vector.extract_strided_slice %13 {offsets = [0, 0, 0], sizes = [2, 8, 8], strides = [1, 1, 1]} : vector<2x8x32xf32> to vector<2x8x8xf32>
    %21 = vector.extract_strided_slice %15 {offsets = [0, 0, 0], sizes = [2, 8, 8], strides = [1, 1, 1]} : vector<2x8x32xf32> to vector<2x8x8xf32>
    "tpu.trace_start"() <{level = 10 : i32, message = "bqd,bkd->bqk"}> : () -> ()
    %cst_12 = arith.constant dense<0.000000e+00> : vector<2x8x8xf32>
    %22 = tpu.matmul %19, %20, %cst_12 {dimension_numbers = #tpu.dot_dimension_numbers<[2], [2], [1], [1], [0, 0, 0, 1, 1, 1], [0], [0]>} : vector<2x8x8xf32>, vector<2x8x8xf32>, vector<2x8x8xf32> -> vector<2x8x8xf32>
    "tpu.trace_stop"() : () -> ()
    %cst_13 = arith.constant 0.353553385 : f32
    %23 = vector.broadcast %cst_13 : f32 to vector<2x8x8xf32>
    %24 = arith.mulf %22, %23 : vector<2x8x8xf32>
    %cst_14 = arith.constant dense<0xFF800000> : vector<2x8xf32>
    %25 = vector.multi_reduction <maximumf>, %24, %cst_14 [2] : vector<2x8x8xf32> to vector<2x8xf32>
    %26 = vector.shape_cast %25 : vector<2x8xf32> to vector<2x8x1xf32>
    %27 = vector.broadcast %26 : vector<2x8x1xf32> to vector<2x8x8xf32>
    %28 = arith.subf %24, %27 : vector<2x8x8xf32>
    %29 = math.exp %28 : vector<2x8x8xf32>
    %cst_15 = arith.constant dense<0.000000e+00> : vector<2x8xf32>
    %30 = vector.multi_reduction <add>, %29, %cst_15 [2] : vector<2x8x8xf32> to vector<2x8xf32>
    %31 = vector.shape_cast %30 : vector<2x8xf32> to vector<2x8x1xf32>
    %32 = tpu.reciprocal %31 {approx = true} : vector<2x8x1xf32> -> vector<2x8x1xf32>
    %33 = vector.broadcast %32 : vector<2x8x1xf32> to vector<2x8x8xf32>
    %34 = arith.mulf %29, %33 : vector<2x8x8xf32>
    "tpu.trace_start"() <{level = 10 : i32, message = "bqk,bkd->bqd"}> : () -> ()
    %cst_16 = arith.constant dense<0.000000e+00> : vector<2x8x8xf32>
    %35 = tpu.matmul %34, %21, %cst_16 {dimension_numbers = #tpu.dot_dimension_numbers<[2], [1], [1], [2], [0, 0, 0, 1, 1, 2], [0], [0]>} : vector<2x8x8xf32>, vector<2x8x8xf32>, vector<2x8x8xf32> -> vector<2x8x8xf32>
    "tpu.trace_stop"() : () -> ()
    %36 = vector.shape_cast %35 : vector<2x8x8xf32> to vector<16x8xf32>
    %37 = arith.truncf %36 : vector<16x8xf32> to vector<16x8xbf16>
    %38 = vector.extract_strided_slice %17 {offsets = [0, 0], sizes = [8, 32], strides = [1, 1]} : vector<32x32xbf16> to vector<8x32xbf16>
    %cst_17 = arith.constant dense<0.000000e+00> : vector<16x32xf32>
    %39 = tpu.matmul %37, %38, %cst_17 {dimension_numbers = #tpu.dot_dimension_numbers<[1], [0], [0], [1], [0, 0, 1, 1], [], []>} : vector<16x8xbf16>, vector<8x32xbf16>, vector<16x32xf32> -> vector<16x32xf32>
    %40 = arith.addf %18, %39 : vector<16x32xf32>
    %41 = vector.extract_strided_slice %11 {offsets = [0, 0, 8], sizes = [2, 8, 8], strides = [1, 1, 1]} : vector<2x8x32xf32> to vector<2x8x8xf32>
    %42 = vector.extract_strided_slice %13 {offsets = [0, 0, 8], sizes = [2, 8, 8], strides = [1, 1, 1]} : vector<2x8x32xf32> to vector<2x8x8xf32>
    %43 = vector.extract_strided_slice %15 {offsets = [0, 0, 8], sizes = [2, 8, 8], strides = [1, 1, 1]} : vector<2x8x32xf32> to vector<2x8x8xf32>
    "tpu.trace_start"() <{level = 10 : i32, message = "bqd,bkd->bqk"}> : () -> ()
    %cst_18 = arith.constant dense<0.000000e+00> : vector<2x8x8xf32>
    %44 = tpu.matmul %41, %42, %cst_18 {dimension_numbers = #tpu.dot_dimension_numbers<[2], [2], [1], [1], [0, 0, 0, 1, 1, 1], [0], [0]>} : vector<2x8x8xf32>, vector<2x8x8xf32>, vector<2x8x8xf32> -> vector<2x8x8xf32>
    "tpu.trace_stop"() : () -> ()
    %cst_19 = arith.constant 0.353553385 : f32
    %45 = vector.broadcast %cst_19 : f32 to vector<2x8x8xf32>
    %46 = arith.mulf %44, %45 : vector<2x8x8xf32>
    %cst_20 = arith.constant dense<0xFF800000> : vector<2x8xf32>
    %47 = vector.multi_reduction <maximumf>, %46, %cst_20 [2] : vector<2x8x8xf32> to vector<2x8xf32>
    %48 = vector.shape_cast %47 : vector<2x8xf32> to vector<2x8x1xf32>
    %49 = vector.broadcast %48 : vector<2x8x1xf32> to vector<2x8x8xf32>
    %50 = arith.subf %46, %49 : vector<2x8x8xf32>
    %51 = math.exp %50 : vector<2x8x8xf32>
    %cst_21 = arith.constant dense<0.000000e+00> : vector<2x8xf32>
    %52 = vector.multi_reduction <add>, %51, %cst_21 [2] : vector<2x8x8xf32> to vector<2x8xf32>
    %53 = vector.shape_cast %52 : vector<2x8xf32> to vector<2x8x1xf32>
    %54 = tpu.reciprocal %53 {approx = true} : vector<2x8x1xf32> -> vector<2x8x1xf32>
    %55 = vector.broadcast %54 : vector<2x8x1xf32> to vector<2x8x8xf32>
    %56 = arith.mulf %51, %55 : vector<2x8x8xf32>
    "tpu.trace_start"() <{level = 10 : i32, message = "bqk,bkd->bqd"}> : () -> ()
    %cst_22 = arith.constant dense<0.000000e+00> : vector<2x8x8xf32>
    %57 = tpu.matmul %56, %43, %cst_22 {dimension_numbers = #tpu.dot_dimension_numbers<[2], [1], [1], [2], [0, 0, 0, 1, 1, 2], [0], [0]>} : vector<2x8x8xf32>, vector<2x8x8xf32>, vector<2x8x8xf32> -> vector<2x8x8xf32>
    "tpu.trace_stop"() : () -> ()
    %58 = vector.shape_cast %57 : vector<2x8x8xf32> to vector<16x8xf32>
    %59 = arith.truncf %58 : vector<16x8xf32> to vector<16x8xbf16>
    %60 = vector.extract_strided_slice %17 {offsets = [8, 0], sizes = [8, 32], strides = [1, 1]} : vector<32x32xbf16> to vector<8x32xbf16>
    %cst_23 = arith.constant dense<0.000000e+00> : vector<16x32xf32>
    %61 = tpu.matmul %59, %60, %cst_23 {dimension_numbers = #tpu.dot_dimension_numbers<[1], [0], [0], [1], [0, 0, 1, 1], [], []>} : vector<16x8xbf16>, vector<8x32xbf16>, vector<16x32xf32> -> vector<16x32xf32>
    %62 = arith.addf %40, %61 : vector<16x32xf32>
    %63 = vector.extract_strided_slice %11 {offsets = [0, 0, 16], sizes = [2, 8, 8], strides = [1, 1, 1]} : vector<2x8x32xf32> to vector<2x8x8xf32>
    %64 = vector.extract_strided_slice %13 {offsets = [0, 0, 16], sizes = [2, 8, 8], strides = [1, 1, 1]} : vector<2x8x32xf32> to vector<2x8x8xf32>
    %65 = vector.extract_strided_slice %15 {offsets = [0, 0, 16], sizes = [2, 8, 8], strides = [1, 1, 1]} : vector<2x8x32xf32> to vector<2x8x8xf32>
    "tpu.trace_start"() <{level = 10 : i32, message = "bqd,bkd->bqk"}> : () -> ()
    %cst_24 = arith.constant dense<0.000000e+00> : vector<2x8x8xf32>
    %66 = tpu.matmul %63, %64, %cst_24 {dimension_numbers = #tpu.dot_dimension_numbers<[2], [2], [1], [1], [0, 0, 0, 1, 1, 1], [0], [0]>} : vector<2x8x8xf32>, vector<2x8x8xf32>, vector<2x8x8xf32> -> vector<2x8x8xf32>
    "tpu.trace_stop"() : () -> ()
    %cst_25 = arith.constant 0.353553385 : f32
    %67 = vector.broadcast %cst_25 : f32 to vector<2x8x8xf32>
    %68 = arith.mulf %66, %67 : vector<2x8x8xf32>
    %cst_26 = arith.constant dense<0xFF800000> : vector<2x8xf32>
    %69 = vector.multi_reduction <maximumf>, %68, %cst_26 [2] : vector<2x8x8xf32> to vector<2x8xf32>
    %70 = vector.shape_cast %69 : vector<2x8xf32> to vector<2x8x1xf32>
    %71 = vector.broadcast %70 : vector<2x8x1xf32> to vector<2x8x8xf32>
    %72 = arith.subf %68, %71 : vector<2x8x8xf32>
    %73 = math.exp %72 : vector<2x8x8xf32>
    %cst_27 = arith.constant dense<0.000000e+00> : vector<2x8xf32>
    %74 = vector.multi_reduction <add>, %73, %cst_27 [2] : vector<2x8x8xf32> to vector<2x8xf32>
    %75 = vector.shape_cast %74 : vector<2x8xf32> to vector<2x8x1xf32>
    %76 = tpu.reciprocal %75 {approx = true} : vector<2x8x1xf32> -> vector<2x8x1xf32>
    %77 = vector.broadcast %76 : vector<2x8x1xf32> to vector<2x8x8xf32>
    %78 = arith.mulf %73, %77 : vector<2x8x8xf32>
    "tpu.trace_start"() <{level = 10 : i32, message = "bqk,bkd->bqd"}> : () -> ()
    %cst_28 = arith.constant dense<0.000000e+00> : vector<2x8x8xf32>
    %79 = tpu.matmul %78, %65, %cst_28 {dimension_numbers = #tpu.dot_dimension_numbers<[2], [1], [1], [2], [0, 0, 0, 1, 1, 2], [0], [0]>} : vector<2x8x8xf32>, vector<2x8x8xf32>, vector<2x8x8xf32> -> vector<2x8x8xf32>
    "tpu.trace_stop"() : () -> ()
    %80 = vector.shape_cast %79 : vector<2x8x8xf32> to vector<16x8xf32>
    %81 = arith.truncf %80 : vector<16x8xf32> to vector<16x8xbf16>
    %82 = vector.extract_strided_slice %17 {offsets = [16, 0], sizes = [8, 32], strides = [1, 1]} : vector<32x32xbf16> to vector<8x32xbf16>
    %cst_29 = arith.constant dense<0.000000e+00> : vector<16x32xf32>
    %83 = tpu.matmul %81, %82, %cst_29 {dimension_numbers = #tpu.dot_dimension_numbers<[1], [0], [0], [1], [0, 0, 1, 1], [], []>} : vector<16x8xbf16>, vector<8x32xbf16>, vector<16x32xf32> -> vector<16x32xf32>
    %84 = arith.addf %62, %83 : vector<16x32xf32>
    %85 = vector.extract_strided_slice %11 {offsets = [0, 0, 24], sizes = [2, 8, 8], strides = [1, 1, 1]} : vector<2x8x32xf32> to vector<2x8x8xf32>
    %86 = vector.extract_strided_slice %13 {offsets = [0, 0, 24], sizes = [2, 8, 8], strides = [1, 1, 1]} : vector<2x8x32xf32> to vector<2x8x8xf32>
    %87 = vector.extract_strided_slice %15 {offsets = [0, 0, 24], sizes = [2, 8, 8], strides = [1, 1, 1]} : vector<2x8x32xf32> to vector<2x8x8xf32>
    "tpu.trace_start"() <{level = 10 : i32, message = "bqd,bkd->bqk"}> : () -> ()
    %cst_30 = arith.constant dense<0.000000e+00> : vector<2x8x8xf32>
    %88 = tpu.matmul %85, %86, %cst_30 {dimension_numbers = #tpu.dot_dimension_numbers<[2], [2], [1], [1], [0, 0, 0, 1, 1, 1], [0], [0]>} : vector<2x8x8xf32>, vector<2x8x8xf32>, vector<2x8x8xf32> -> vector<2x8x8xf32>
    "tpu.trace_stop"() : () -> ()
    %cst_31 = arith.constant 0.353553385 : f32
    %89 = vector.broadcast %cst_31 : f32 to vector<2x8x8xf32>
    %90 = arith.mulf %88, %89 : vector<2x8x8xf32>
    %cst_32 = arith.constant dense<0xFF800000> : vector<2x8xf32>
    %91 = vector.multi_reduction <maximumf>, %90, %cst_32 [2] : vector<2x8x8xf32> to vector<2x8xf32>
    %92 = vector.shape_cast %91 : vector<2x8xf32> to vector<2x8x1xf32>
    %93 = vector.broadcast %92 : vector<2x8x1xf32> to vector<2x8x8xf32>
    %94 = arith.subf %90, %93 : vector<2x8x8xf32>
    %95 = math.exp %94 : vector<2x8x8xf32>
    %cst_33 = arith.constant dense<0.000000e+00> : vector<2x8xf32>
    %96 = vector.multi_reduction <add>, %95, %cst_33 [2] : vector<2x8x8xf32> to vector<2x8xf32>
    %97 = vector.shape_cast %96 : vector<2x8xf32> to vector<2x8x1xf32>
    %98 = tpu.reciprocal %97 {approx = true} : vector<2x8x1xf32> -> vector<2x8x1xf32>
    %99 = vector.broadcast %98 : vector<2x8x1xf32> to vector<2x8x8xf32>
    %100 = arith.mulf %95, %99 : vector<2x8x8xf32>
    "tpu.trace_start"() <{level = 10 : i32, message = "bqk,bkd->bqd"}> : () -> ()
    %cst_34 = arith.constant dense<0.000000e+00> : vector<2x8x8xf32>
    %101 = tpu.matmul %100, %87, %cst_34 {dimension_numbers = #tpu.dot_dimension_numbers<[2], [1], [1], [2], [0, 0, 0, 1, 1, 2], [0], [0]>} : vector<2x8x8xf32>, vector<2x8x8xf32>, vector<2x8x8xf32> -> vector<2x8x8xf32>
    "tpu.trace_stop"() : () -> ()
    %102 = vector.shape_cast %101 : vector<2x8x8xf32> to vector<16x8xf32>
    %103 = arith.truncf %102 : vector<16x8xf32> to vector<16x8xbf16>
    %104 = vector.extract_strided_slice %17 {offsets = [24, 0], sizes = [8, 32], strides = [1, 1]} : vector<32x32xbf16> to vector<8x32xbf16>
    %cst_35 = arith.constant dense<0.000000e+00> : vector<16x32xf32>
    %105 = tpu.matmul %103, %104, %cst_35 {dimension_numbers = #tpu.dot_dimension_numbers<[1], [0], [0], [1], [0, 0, 1, 1], [], []>} : vector<16x8xbf16>, vector<8x32xbf16>, vector<16x32xf32> -> vector<16x32xf32>
    %106 = arith.addf %84, %105 : vector<16x32xf32>
    %c0_36 = arith.constant 0 : index
    %c0_37 = arith.constant 0 : index
    %c0_38 = arith.constant 0 : index
    %107 = vector.load %arg4[%c0_36, %c0_37, %c0_38] : memref<2x1x32xf32, #tpu.memory_space<vmem>>, vector<1x1x32xf32>
    %108 = vector.shape_cast %107 : vector<1x1x32xf32> to vector<1x32xf32>
    %109 = vector.broadcast %108 : vector<1x32xf32> to vector<16x32xf32>
    %110 = arith.addf %106, %109 : vector<16x32xf32>
    %111 = arith.addf %1, %110 : vector<16x32xf32>
    %cst_39 = arith.constant dense<0.000000e+00> : vector<16xf32>
    %112 = vector.multi_reduction <add>, %111, %cst_39 [1] : vector<16x32xf32> to vector<16xf32>
    %113 = vector.shape_cast %112 : vector<16xf32> to vector<16x1xf32>
    %cst_40 = arith.constant 3.200000e+01 : f32
    %114 = vector.broadcast %cst_40 : f32 to vector<16x1xf32>
    %115 = arith.divf %113, %114 : vector<16x1xf32>
    %116 = vector.broadcast %115 : vector<16x1xf32> to vector<16x32xf32>
    %117 = arith.subf %111, %116 : vector<16x32xf32>
    %118 = arith.mulf %117, %117 : vector<16x32xf32>
    %cst_41 = arith.constant dense<0.000000e+00> : vector<16xf32>
    %119 = vector.multi_reduction <add>, %118, %cst_41 [1] : vector<16x32xf32> to vector<16xf32>
    %120 = vector.shape_cast %119 : vector<16xf32> to vector<16x1xf32>
    %cst_42 = arith.constant 3.200000e+01 : f32
    %121 = vector.broadcast %cst_42 : f32 to vector<16x1xf32>
    %122 = arith.divf %120, %121 : vector<16x1xf32>
    %123 = vector.broadcast %115 : vector<16x1xf32> to vector<16x32xf32>
    %124 = arith.subf %111, %123 : vector<16x32xf32>
    %cst_43 = arith.constant 9.99999974E-6 : f32
    %125 = vector.broadcast %cst_43 : f32 to vector<16x1xf32>
    %126 = arith.addf %122, %125 : vector<16x1xf32>
    %127 = math.rsqrt %126 : vector<16x1xf32>
    %128 = vector.broadcast %127 : vector<16x1xf32> to vector<16x32xf32>
    %129 = arith.mulf %124, %128 : vector<16x32xf32>
    %c0_44 = arith.constant 0 : index
    %c0_45 = arith.constant 0 : index
    %c0_46 = arith.constant 0 : index
    %130 = vector.load %arg5[%c0_44, %c0_45, %c0_46] : memref<2x1x32xf32, #tpu.memory_space<vmem>>, vector<1x1x32xf32>
    %131 = vector.shape_cast %130 : vector<1x1x32xf32> to vector<1x32xf32>
    %132 = vector.broadcast %131 : vector<1x32xf32> to vector<16x32xf32>
    %133 = arith.mulf %129, %132 : vector<16x32xf32>
    %c0_47 = arith.constant 0 : index
    %c0_48 = arith.constant 0 : index
    %c0_49 = arith.constant 0 : index
    %134 = vector.load %arg6[%c0_47, %c0_48, %c0_49] : memref<2x1x32xf32, #tpu.memory_space<vmem>>, vector<1x1x32xf32>
    %135 = vector.shape_cast %134 : vector<1x1x32xf32> to vector<1x32xf32>
    %136 = vector.broadcast %135 : vector<1x32xf32> to vector<16x32xf32>
    %137 = arith.addf %133, %136 : vector<16x32xf32>
    %138 = arith.truncf %137 : vector<16x32xf32> to vector<16x32xbf16>
    %c0_50 = arith.constant 0 : index
    %c0_51 = arith.constant 0 : index
    %c0_52 = arith.constant 0 : index
    %139 = vector.load %arg7[%c0_50, %c0_51, %c0_52] : memref<2x32x2048xbf16, #tpu.memory_space<vmem>>, vector<1x32x2048xbf16>
    %140 = vector.shape_cast %139 : vector<1x32x2048xbf16> to vector<32x2048xbf16>
    %cst_53 = arith.constant dense<0.000000e+00> : vector<16x2048xf32>
    %141 = tpu.matmul %138, %140, %cst_53 {dimension_numbers = #tpu.dot_dimension_numbers<[1], [0], [0], [1], [0, 0, 1, 1], [], []>} : vector<16x32xbf16>, vector<32x2048xbf16>, vector<16x2048xf32> -> vector<16x2048xf32>
    %c0_54 = arith.constant 0 : index
    %c0_55 = arith.constant 0 : index
    %c0_56 = arith.constant 0 : index
    %142 = vector.load %arg8[%c0_54, %c0_55, %c0_56] : memref<2x1x2048xf32, #tpu.memory_space<vmem>>, vector<1x1x2048xf32>
    %143 = vector.shape_cast %142 : vector<1x1x2048xf32> to vector<1x2048xf32>
    %144 = vector.broadcast %143 : vector<1x2048xf32> to vector<16x2048xf32>
    %145 = arith.addf %141, %144 : vector<16x2048xf32>
    %cst_57 = arith.constant 0.000000e+00 : f32
    %146 = vector.broadcast %cst_57 : f32 to vector<16x2048xf32>
    %147 = arith.maximumf %145, %146 : vector<16x2048xf32>
    %148 = arith.truncf %147 : vector<16x2048xf32> to vector<16x2048xbf16>
    %c0_58 = arith.constant 0 : index
    %c0_59 = arith.constant 0 : index
    %c0_60 = arith.constant 0 : index
    %149 = vector.load %arg9[%c0_58, %c0_59, %c0_60] : memref<2x2048x32xbf16, #tpu.memory_space<vmem>>, vector<1x2048x32xbf16>
    %150 = vector.shape_cast %149 : vector<1x2048x32xbf16> to vector<2048x32xbf16>
    %cst_61 = arith.constant dense<0.000000e+00> : vector<16x32xf32>
    %151 = tpu.matmul %148, %150, %cst_61 {dimension_numbers = #tpu.dot_dimension_numbers<[1], [0], [0], [1], [0, 0, 1, 1], [], []>} : vector<16x2048xbf16>, vector<2048x32xbf16>, vector<16x32xf32> -> vector<16x32xf32>
    %c0_62 = arith.constant 0 : index
    %c0_63 = arith.constant 0 : index
    %c0_64 = arith.constant 0 : index
    %152 = vector.load %arg10[%c0_62, %c0_63, %c0_64] : memref<2x1x32xf32, #tpu.memory_space<vmem>>, vector<1x1x32xf32>
    %153 = vector.shape_cast %152 : vector<1x1x32xf32> to vector<1x32xf32>
    %154 = vector.broadcast %153 : vector<1x32xf32> to vector<16x32xf32>
    %155 = arith.addf %151, %154 : vector<16x32xf32>
    %156 = arith.addf %137, %155 : vector<16x32xf32>
    %cst_65 = arith.constant dense<0.000000e+00> : vector<16xf32>
    %157 = vector.multi_reduction <add>, %156, %cst_65 [1] : vector<16x32xf32> to vector<16xf32>
    %158 = vector.shape_cast %157 : vector<16xf32> to vector<16x1xf32>
    %cst_66 = arith.constant 3.200000e+01 : f32
    %159 = vector.broadcast %cst_66 : f32 to vector<16x1xf32>
    %160 = arith.divf %158, %159 : vector<16x1xf32>
    %161 = vector.broadcast %160 : vector<16x1xf32> to vector<16x32xf32>
    %162 = arith.subf %156, %161 : vector<16x32xf32>
    %163 = arith.mulf %162, %162 : vector<16x32xf32>
    %cst_67 = arith.constant dense<0.000000e+00> : vector<16xf32>
    %164 = vector.multi_reduction <add>, %163, %cst_67 [1] : vector<16x32xf32> to vector<16xf32>
    %165 = vector.shape_cast %164 : vector<16xf32> to vector<16x1xf32>
    %cst_68 = arith.constant 3.200000e+01 : f32
    %166 = vector.broadcast %cst_68 : f32 to vector<16x1xf32>
    %167 = arith.divf %165, %166 : vector<16x1xf32>
    %168 = vector.broadcast %160 : vector<16x1xf32> to vector<16x32xf32>
    %169 = arith.subf %156, %168 : vector<16x32xf32>
    %cst_69 = arith.constant 9.99999974E-6 : f32
    %170 = vector.broadcast %cst_69 : f32 to vector<16x1xf32>
    %171 = arith.addf %167, %170 : vector<16x1xf32>
    %172 = math.rsqrt %171 : vector<16x1xf32>
    %173 = vector.broadcast %172 : vector<16x1xf32> to vector<16x32xf32>
    %174 = arith.mulf %169, %173 : vector<16x32xf32>
    %c0_70 = arith.constant 0 : index
    %c0_71 = arith.constant 0 : index
    %c0_72 = arith.constant 0 : index
    %175 = vector.load %arg11[%c0_70, %c0_71, %c0_72] : memref<2x1x32xf32, #tpu.memory_space<vmem>>, vector<1x1x32xf32>
    %176 = vector.shape_cast %175 : vector<1x1x32xf32> to vector<1x32xf32>
    %177 = vector.broadcast %176 : vector<1x32xf32> to vector<16x32xf32>
    %178 = arith.mulf %174, %177 : vector<16x32xf32>
    %c0_73 = arith.constant 0 : index
    %c0_74 = arith.constant 0 : index
    %c0_75 = arith.constant 0 : index
    %179 = vector.load %arg12[%c0_73, %c0_74, %c0_75] : memref<2x1x32xf32, #tpu.memory_space<vmem>>, vector<1x1x32xf32>
    %180 = vector.shape_cast %179 : vector<1x1x32xf32> to vector<1x32xf32>
    %181 = vector.broadcast %180 : vector<1x32xf32> to vector<16x32xf32>
    %182 = arith.addf %178, %181 : vector<16x32xf32>
    %183 = arith.truncf %182 : vector<16x32xf32> to vector<16x32xbf16>
    %c1 = arith.constant 1 : index
    %c0_76 = arith.constant 0 : index
    %c0_77 = arith.constant 0 : index
    %184 = vector.load %arg1[%c1, %c0_76, %c0_77] : memref<2x32x96xbf16, #tpu.memory_space<vmem>>, vector<1x32x96xbf16>
    %185 = vector.shape_cast %184 : vector<1x32x96xbf16> to vector<32x96xbf16>
    %cst_78 = arith.constant dense<0.000000e+00> : vector<16x96xf32>
    %186 = tpu.matmul %183, %185, %cst_78 {dimension_numbers = #tpu.dot_dimension_numbers<[1], [0], [0], [1], [0, 0, 1, 1], [], []>} : vector<16x32xbf16>, vector<32x96xbf16>, vector<16x96xf32> -> vector<16x96xf32>
    %c1_79 = arith.constant 1 : index
    %c0_80 = arith.constant 0 : index
    %c0_81 = arith.constant 0 : index
    %187 = vector.load %arg2[%c1_79, %c0_80, %c0_81] : memref<2x1x96xf32, #tpu.memory_space<vmem>>, vector<1x1x96xf32>
    %188 = vector.shape_cast %187 : vector<1x1x96xf32> to vector<1x96xf32>
    %189 = vector.broadcast %188 : vector<1x96xf32> to vector<16x96xf32>
    %190 = arith.addf %186, %189 : vector<16x96xf32>
    %191 = vector.extract_strided_slice %190 {offsets = [0, 0], sizes = [16, 32], strides = [1, 1]} : vector<16x96xf32> to vector<16x32xf32>
    %192 = vector.shape_cast %191 : vector<16x32xf32> to vector<2x8x32xf32>
    %193 = vector.extract_strided_slice %190 {offsets = [0, 32], sizes = [16, 32], strides = [1, 1]} : vector<16x96xf32> to vector<16x32xf32>
    %194 = vector.shape_cast %193 : vector<16x32xf32> to vector<2x8x32xf32>
    %195 = vector.extract_strided_slice %190 {offsets = [0, 64], sizes = [16, 32], strides = [1, 1]} : vector<16x96xf32> to vector<16x32xf32>
    %196 = vector.shape_cast %195 : vector<16x32xf32> to vector<2x8x32xf32>
    %c1_82 = arith.constant 1 : index
    %c0_83 = arith.constant 0 : index
    %c0_84 = arith.constant 0 : index
    %197 = vector.load %arg3[%c1_82, %c0_83, %c0_84] : memref<2x32x32xbf16, #tpu.memory_space<vmem>>, vector<1x32x32xbf16>
    %198 = vector.shape_cast %197 : vector<1x32x32xbf16> to vector<32x32xbf16>
    %cst_85 = arith.constant 0.000000e+00 : f32
    %199 = vector.broadcast %cst_85 : f32 to vector<16x32xf32>
    %200 = vector.extract_strided_slice %192 {offsets = [0, 0, 0], sizes = [2, 8, 8], strides = [1, 1, 1]} : vector<2x8x32xf32> to vector<2x8x8xf32>
    %201 = vector.extract_strided_slice %194 {offsets = [0, 0, 0], sizes = [2, 8, 8], strides = [1, 1, 1]} : vector<2x8x32xf32> to vector<2x8x8xf32>
    %202 = vector.extract_strided_slice %196 {offsets = [0, 0, 0], sizes = [2, 8, 8], strides = [1, 1, 1]} : vector<2x8x32xf32> to vector<2x8x8xf32>
    "tpu.trace_start"() <{level = 10 : i32, message = "bqd,bkd->bqk"}> : () -> ()
    %cst_86 = arith.constant dense<0.000000e+00> : vector<2x8x8xf32>
    %203 = tpu.matmul %200, %201, %cst_86 {dimension_numbers = #tpu.dot_dimension_numbers<[2], [2], [1], [1], [0, 0, 0, 1, 1, 1], [0], [0]>} : vector<2x8x8xf32>, vector<2x8x8xf32>, vector<2x8x8xf32> -> vector<2x8x8xf32>
    "tpu.trace_stop"() : () -> ()
    %cst_87 = arith.constant 0.353553385 : f32
    %204 = vector.broadcast %cst_87 : f32 to vector<2x8x8xf32>
    %205 = arith.mulf %203, %204 : vector<2x8x8xf32>
    %cst_88 = arith.constant dense<0xFF800000> : vector<2x8xf32>
    %206 = vector.multi_reduction <maximumf>, %205, %cst_88 [2] : vector<2x8x8xf32> to vector<2x8xf32>
    %207 = vector.shape_cast %206 : vector<2x8xf32> to vector<2x8x1xf32>
    %208 = vector.broadcast %207 : vector<2x8x1xf32> to vector<2x8x8xf32>
    %209 = arith.subf %205, %208 : vector<2x8x8xf32>
    %210 = math.exp %209 : vector<2x8x8xf32>
    %cst_89 = arith.constant dense<0.000000e+00> : vector<2x8xf32>
    %211 = vector.multi_reduction <add>, %210, %cst_89 [2] : vector<2x8x8xf32> to vector<2x8xf32>
    %212 = vector.shape_cast %211 : vector<2x8xf32> to vector<2x8x1xf32>
    %213 = tpu.reciprocal %212 {approx = true} : vector<2x8x1xf32> -> vector<2x8x1xf32>
    %214 = vector.broadcast %213 : vector<2x8x1xf32> to vector<2x8x8xf32>
    %215 = arith.mulf %210, %214 : vector<2x8x8xf32>
    "tpu.trace_start"() <{level = 10 : i32, message = "bqk,bkd->bqd"}> : () -> ()
    %cst_90 = arith.constant dense<0.000000e+00> : vector<2x8x8xf32>
    %216 = tpu.matmul %215, %202, %cst_90 {dimension_numbers = #tpu.dot_dimension_numbers<[2], [1], [1], [2], [0, 0, 0, 1, 1, 2], [0], [0]>} : vector<2x8x8xf32>, vector<2x8x8xf32>, vector<2x8x8xf32> -> vector<2x8x8xf32>
    "tpu.trace_stop"() : () -> ()
    %217 = vector.shape_cast %216 : vector<2x8x8xf32> to vector<16x8xf32>
    %218 = arith.truncf %217 : vector<16x8xf32> to vector<16x8xbf16>
    %219 = vector.extract_strided_slice %198 {offsets = [0, 0], sizes = [8, 32], strides = [1, 1]} : vector<32x32xbf16> to vector<8x32xbf16>
    %cst_91 = arith.constant dense<0.000000e+00> : vector<16x32xf32>
    %220 = tpu.matmul %218, %219, %cst_91 {dimension_numbers = #tpu.dot_dimension_numbers<[1], [0], [0], [1], [0, 0, 1, 1], [], []>} : vector<16x8xbf16>, vector<8x32xbf16>, vector<16x32xf32> -> vector<16x32xf32>
    %221 = arith.addf %199, %220 : vector<16x32xf32>
    %222 = vector.extract_strided_slice %192 {offsets = [0, 0, 8], sizes = [2, 8, 8], strides = [1, 1, 1]} : vector<2x8x32xf32> to vector<2x8x8xf32>
    %223 = vector.extract_strided_slice %194 {offsets = [0, 0, 8], sizes = [2, 8, 8], strides = [1, 1, 1]} : vector<2x8x32xf32> to vector<2x8x8xf32>
    %224 = vector.extract_strided_slice %196 {offsets = [0, 0, 8], sizes = [2, 8, 8], strides = [1, 1, 1]} : vector<2x8x32xf32> to vector<2x8x8xf32>
    "tpu.trace_start"() <{level = 10 : i32, message = "bqd,bkd->bqk"}> : () -> ()
    %cst_92 = arith.constant dense<0.000000e+00> : vector<2x8x8xf32>
    %225 = tpu.matmul %222, %223, %cst_92 {dimension_numbers = #tpu.dot_dimension_numbers<[2], [2], [1], [1], [0, 0, 0, 1, 1, 1], [0], [0]>} : vector<2x8x8xf32>, vector<2x8x8xf32>, vector<2x8x8xf32> -> vector<2x8x8xf32>
    "tpu.trace_stop"() : () -> ()
    %cst_93 = arith.constant 0.353553385 : f32
    %226 = vector.broadcast %cst_93 : f32 to vector<2x8x8xf32>
    %227 = arith.mulf %225, %226 : vector<2x8x8xf32>
    %cst_94 = arith.constant dense<0xFF800000> : vector<2x8xf32>
    %228 = vector.multi_reduction <maximumf>, %227, %cst_94 [2] : vector<2x8x8xf32> to vector<2x8xf32>
    %229 = vector.shape_cast %228 : vector<2x8xf32> to vector<2x8x1xf32>
    %230 = vector.broadcast %229 : vector<2x8x1xf32> to vector<2x8x8xf32>
    %231 = arith.subf %227, %230 : vector<2x8x8xf32>
    %232 = math.exp %231 : vector<2x8x8xf32>
    %cst_95 = arith.constant dense<0.000000e+00> : vector<2x8xf32>
    %233 = vector.multi_reduction <add>, %232, %cst_95 [2] : vector<2x8x8xf32> to vector<2x8xf32>
    %234 = vector.shape_cast %233 : vector<2x8xf32> to vector<2x8x1xf32>
    %235 = tpu.reciprocal %234 {approx = true} : vector<2x8x1xf32> -> vector<2x8x1xf32>
    %236 = vector.broadcast %235 : vector<2x8x1xf32> to vector<2x8x8xf32>
    %237 = arith.mulf %232, %236 : vector<2x8x8xf32>
    "tpu.trace_start"() <{level = 10 : i32, message = "bqk,bkd->bqd"}> : () -> ()
    %cst_96 = arith.constant dense<0.000000e+00> : vector<2x8x8xf32>
    %238 = tpu.matmul %237, %224, %cst_96 {dimension_numbers = #tpu.dot_dimension_numbers<[2], [1], [1], [2], [0, 0, 0, 1, 1, 2], [0], [0]>} : vector<2x8x8xf32>, vector<2x8x8xf32>, vector<2x8x8xf32> -> vector<2x8x8xf32>
    "tpu.trace_stop"() : () -> ()
    %239 = vector.shape_cast %238 : vector<2x8x8xf32> to vector<16x8xf32>
    %240 = arith.truncf %239 : vector<16x8xf32> to vector<16x8xbf16>
    %241 = vector.extract_strided_slice %198 {offsets = [8, 0], sizes = [8, 32], strides = [1, 1]} : vector<32x32xbf16> to vector<8x32xbf16>
    %cst_97 = arith.constant dense<0.000000e+00> : vector<16x32xf32>
    %242 = tpu.matmul %240, %241, %cst_97 {dimension_numbers = #tpu.dot_dimension_numbers<[1], [0], [0], [1], [0, 0, 1, 1], [], []>} : vector<16x8xbf16>, vector<8x32xbf16>, vector<16x32xf32> -> vector<16x32xf32>
    %243 = arith.addf %221, %242 : vector<16x32xf32>
    %244 = vector.extract_strided_slice %192 {offsets = [0, 0, 16], sizes = [2, 8, 8], strides = [1, 1, 1]} : vector<2x8x32xf32> to vector<2x8x8xf32>
    %245 = vector.extract_strided_slice %194 {offsets = [0, 0, 16], sizes = [2, 8, 8], strides = [1, 1, 1]} : vector<2x8x32xf32> to vector<2x8x8xf32>
    %246 = vector.extract_strided_slice %196 {offsets = [0, 0, 16], sizes = [2, 8, 8], strides = [1, 1, 1]} : vector<2x8x32xf32> to vector<2x8x8xf32>
    "tpu.trace_start"() <{level = 10 : i32, message = "bqd,bkd->bqk"}> : () -> ()
    %cst_98 = arith.constant dense<0.000000e+00> : vector<2x8x8xf32>
    %247 = tpu.matmul %244, %245, %cst_98 {dimension_numbers = #tpu.dot_dimension_numbers<[2], [2], [1], [1], [0, 0, 0, 1, 1, 1], [0], [0]>} : vector<2x8x8xf32>, vector<2x8x8xf32>, vector<2x8x8xf32> -> vector<2x8x8xf32>
    "tpu.trace_stop"() : () -> ()
    %cst_99 = arith.constant 0.353553385 : f32
    %248 = vector.broadcast %cst_99 : f32 to vector<2x8x8xf32>
    %249 = arith.mulf %247, %248 : vector<2x8x8xf32>
    %cst_100 = arith.constant dense<0xFF800000> : vector<2x8xf32>
    %250 = vector.multi_reduction <maximumf>, %249, %cst_100 [2] : vector<2x8x8xf32> to vector<2x8xf32>
    %251 = vector.shape_cast %250 : vector<2x8xf32> to vector<2x8x1xf32>
    %252 = vector.broadcast %251 : vector<2x8x1xf32> to vector<2x8x8xf32>
    %253 = arith.subf %249, %252 : vector<2x8x8xf32>
    %254 = math.exp %253 : vector<2x8x8xf32>
    %cst_101 = arith.constant dense<0.000000e+00> : vector<2x8xf32>
    %255 = vector.multi_reduction <add>, %254, %cst_101 [2] : vector<2x8x8xf32> to vector<2x8xf32>
    %256 = vector.shape_cast %255 : vector<2x8xf32> to vector<2x8x1xf32>
    %257 = tpu.reciprocal %256 {approx = true} : vector<2x8x1xf32> -> vector<2x8x1xf32>
    %258 = vector.broadcast %257 : vector<2x8x1xf32> to vector<2x8x8xf32>
    %259 = arith.mulf %254, %258 : vector<2x8x8xf32>
    "tpu.trace_start"() <{level = 10 : i32, message = "bqk,bkd->bqd"}> : () -> ()
    %cst_102 = arith.constant dense<0.000000e+00> : vector<2x8x8xf32>
    %260 = tpu.matmul %259, %246, %cst_102 {dimension_numbers = #tpu.dot_dimension_numbers<[2], [1], [1], [2], [0, 0, 0, 1, 1, 2], [0], [0]>} : vector<2x8x8xf32>, vector<2x8x8xf32>, vector<2x8x8xf32> -> vector<2x8x8xf32>
    "tpu.trace_stop"() : () -> ()
    %261 = vector.shape_cast %260 : vector<2x8x8xf32> to vector<16x8xf32>
    %262 = arith.truncf %261 : vector<16x8xf32> to vector<16x8xbf16>
    %263 = vector.extract_strided_slice %198 {offsets = [16, 0], sizes = [8, 32], strides = [1, 1]} : vector<32x32xbf16> to vector<8x32xbf16>
    %cst_103 = arith.constant dense<0.000000e+00> : vector<16x32xf32>
    %264 = tpu.matmul %262, %263, %cst_103 {dimension_numbers = #tpu.dot_dimension_numbers<[1], [0], [0], [1], [0, 0, 1, 1], [], []>} : vector<16x8xbf16>, vector<8x32xbf16>, vector<16x32xf32> -> vector<16x32xf32>
    %265 = arith.addf %243, %264 : vector<16x32xf32>
    %266 = vector.extract_strided_slice %192 {offsets = [0, 0, 24], sizes = [2, 8, 8], strides = [1, 1, 1]} : vector<2x8x32xf32> to vector<2x8x8xf32>
    %267 = vector.extract_strided_slice %194 {offsets = [0, 0, 24], sizes = [2, 8, 8], strides = [1, 1, 1]} : vector<2x8x32xf32> to vector<2x8x8xf32>
    %268 = vector.extract_strided_slice %196 {offsets = [0, 0, 24], sizes = [2, 8, 8], strides = [1, 1, 1]} : vector<2x8x32xf32> to vector<2x8x8xf32>
    "tpu.trace_start"() <{level = 10 : i32, message = "bqd,bkd->bqk"}> : () -> ()
    %cst_104 = arith.constant dense<0.000000e+00> : vector<2x8x8xf32>
    %269 = tpu.matmul %266, %267, %cst_104 {dimension_numbers = #tpu.dot_dimension_numbers<[2], [2], [1], [1], [0, 0, 0, 1, 1, 1], [0], [0]>} : vector<2x8x8xf32>, vector<2x8x8xf32>, vector<2x8x8xf32> -> vector<2x8x8xf32>
    "tpu.trace_stop"() : () -> ()
    %cst_105 = arith.constant 0.353553385 : f32
    %270 = vector.broadcast %cst_105 : f32 to vector<2x8x8xf32>
    %271 = arith.mulf %269, %270 : vector<2x8x8xf32>
    %cst_106 = arith.constant dense<0xFF800000> : vector<2x8xf32>
    %272 = vector.multi_reduction <maximumf>, %271, %cst_106 [2] : vector<2x8x8xf32> to vector<2x8xf32>
    %273 = vector.shape_cast %272 : vector<2x8xf32> to vector<2x8x1xf32>
    %274 = vector.broadcast %273 : vector<2x8x1xf32> to vector<2x8x8xf32>
    %275 = arith.subf %271, %274 : vector<2x8x8xf32>
    %276 = math.exp %275 : vector<2x8x8xf32>
    %cst_107 = arith.constant dense<0.000000e+00> : vector<2x8xf32>
    %277 = vector.multi_reduction <add>, %276, %cst_107 [2] : vector<2x8x8xf32> to vector<2x8xf32>
    %278 = vector.shape_cast %277 : vector<2x8xf32> to vector<2x8x1xf32>
    %279 = tpu.reciprocal %278 {approx = true} : vector<2x8x1xf32> -> vector<2x8x1xf32>
    %280 = vector.broadcast %279 : vector<2x8x1xf32> to vector<2x8x8xf32>
    %281 = arith.mulf %276, %280 : vector<2x8x8xf32>
    "tpu.trace_start"() <{level = 10 : i32, message = "bqk,bkd->bqd"}> : () -> ()
    %cst_108 = arith.constant dense<0.000000e+00> : vector<2x8x8xf32>
    %282 = tpu.matmul %281, %268, %cst_108 {dimension_numbers = #tpu.dot_dimension_numbers<[2], [1], [1], [2], [0, 0, 0, 1, 1, 2], [0], [0]>} : vector<2x8x8xf32>, vector<2x8x8xf32>, vector<2x8x8xf32> -> vector<2x8x8xf32>
    "tpu.trace_stop"() : () -> ()
    %283 = vector.shape_cast %282 : vector<2x8x8xf32> to vector<16x8xf32>
    %284 = arith.truncf %283 : vector<16x8xf32> to vector<16x8xbf16>
    %285 = vector.extract_strided_slice %198 {offsets = [24, 0], sizes = [8, 32], strides = [1, 1]} : vector<32x32xbf16> to vector<8x32xbf16>
    %cst_109 = arith.constant dense<0.000000e+00> : vector<16x32xf32>
    %286 = tpu.matmul %284, %285, %cst_109 {dimension_numbers = #tpu.dot_dimension_numbers<[1], [0], [0], [1], [0, 0, 1, 1], [], []>} : vector<16x8xbf16>, vector<8x32xbf16>, vector<16x32xf32> -> vector<16x32xf32>
    %287 = arith.addf %265, %286 : vector<16x32xf32>
    %c1_110 = arith.constant 1 : index
    %c0_111 = arith.constant 0 : index
    %c0_112 = arith.constant 0 : index
    %288 = vector.load %arg4[%c1_110, %c0_111, %c0_112] : memref<2x1x32xf32, #tpu.memory_space<vmem>>, vector<1x1x32xf32>
    %289 = vector.shape_cast %288 : vector<1x1x32xf32> to vector<1x32xf32>
    %290 = vector.broadcast %289 : vector<1x32xf32> to vector<16x32xf32>
    %291 = arith.addf %287, %290 : vector<16x32xf32>
    %292 = arith.addf %182, %291 : vector<16x32xf32>
    %cst_113 = arith.constant dense<0.000000e+00> : vector<16xf32>
    %293 = vector.multi_reduction <add>, %292, %cst_113 [1] : vector<16x32xf32> to vector<16xf32>
    %294 = vector.shape_cast %293 : vector<16xf32> to vector<16x1xf32>
    %cst_114 = arith.constant 3.200000e+01 : f32
    %295 = vector.broadcast %cst_114 : f32 to vector<16x1xf32>
    %296 = arith.divf %294, %295 : vector<16x1xf32>
    %297 = vector.broadcast %296 : vector<16x1xf32> to vector<16x32xf32>
    %298 = arith.subf %292, %297 : vector<16x32xf32>
    %299 = arith.mulf %298, %298 : vector<16x32xf32>
    %cst_115 = arith.constant dense<0.000000e+00> : vector<16xf32>
    %300 = vector.multi_reduction <add>, %299, %cst_115 [1] : vector<16x32xf32> to vector<16xf32>
    %301 = vector.shape_cast %300 : vector<16xf32> to vector<16x1xf32>
    %cst_116 = arith.constant 3.200000e+01 : f32
    %302 = vector.broadcast %cst_116 : f32 to vector<16x1xf32>
    %303 = arith.divf %301, %302 : vector<16x1xf32>
    %304 = vector.broadcast %296 : vector<16x1xf32> to vector<16x32xf32>
    %305 = arith.subf %292, %304 : vector<16x32xf32>
    %cst_117 = arith.constant 9.99999974E-6 : f32
    %306 = vector.broadcast %cst_117 : f32 to vector<16x1xf32>
    %307 = arith.addf %303, %306 : vector<16x1xf32>
    %308 = math.rsqrt %307 : vector<16x1xf32>
    %309 = vector.broadcast %308 : vector<16x1xf32> to vector<16x32xf32>
    %310 = arith.mulf %305, %309 : vector<16x32xf32>
    %c1_118 = arith.constant 1 : index
    %c0_119 = arith.constant 0 : index
    %c0_120 = arith.constant 0 : index
    %311 = vector.load %arg5[%c1_118, %c0_119, %c0_120] : memref<2x1x32xf32, #tpu.memory_space<vmem>>, vector<1x1x32xf32>
    %312 = vector.shape_cast %311 : vector<1x1x32xf32> to vector<1x32xf32>
    %313 = vector.broadcast %312 : vector<1x32xf32> to vector<16x32xf32>
    %314 = arith.mulf %310, %313 : vector<16x32xf32>
    %c1_121 = arith.constant 1 : index
    %c0_122 = arith.constant 0 : index
    %c0_123 = arith.constant 0 : index
    %315 = vector.load %arg6[%c1_121, %c0_122, %c0_123] : memref<2x1x32xf32, #tpu.memory_space<vmem>>, vector<1x1x32xf32>
    %316 = vector.shape_cast %315 : vector<1x1x32xf32> to vector<1x32xf32>
    %317 = vector.broadcast %316 : vector<1x32xf32> to vector<16x32xf32>
    %318 = arith.addf %314, %317 : vector<16x32xf32>
    %319 = arith.truncf %318 : vector<16x32xf32> to vector<16x32xbf16>
    %c1_124 = arith.constant 1 : index
    %c0_125 = arith.constant 0 : index
    %c0_126 = arith.constant 0 : index
    %320 = vector.load %arg7[%c1_124, %c0_125, %c0_126] : memref<2x32x2048xbf16, #tpu.memory_space<vmem>>, vector<1x32x2048xbf16>
    %321 = vector.shape_cast %320 : vector<1x32x2048xbf16> to vector<32x2048xbf16>
    %cst_127 = arith.constant dense<0.000000e+00> : vector<16x2048xf32>
    %322 = tpu.matmul %319, %321, %cst_127 {dimension_numbers = #tpu.dot_dimension_numbers<[1], [0], [0], [1], [0, 0, 1, 1], [], []>} : vector<16x32xbf16>, vector<32x2048xbf16>, vector<16x2048xf32> -> vector<16x2048xf32>
    %c1_128 = arith.constant 1 : index
    %c0_129 = arith.constant 0 : index
    %c0_130 = arith.constant 0 : index
    %323 = vector.load %arg8[%c1_128, %c0_129, %c0_130] : memref<2x1x2048xf32, #tpu.memory_space<vmem>>, vector<1x1x2048xf32>
    %324 = vector.shape_cast %323 : vector<1x1x2048xf32> to vector<1x2048xf32>
    %325 = vector.broadcast %324 : vector<1x2048xf32> to vector<16x2048xf32>
    %326 = arith.addf %322, %325 : vector<16x2048xf32>
    %cst_131 = arith.constant 0.000000e+00 : f32
    %327 = vector.broadcast %cst_131 : f32 to vector<16x2048xf32>
    %328 = arith.maximumf %326, %327 : vector<16x2048xf32>
    %329 = arith.truncf %328 : vector<16x2048xf32> to vector<16x2048xbf16>
    %c1_132 = arith.constant 1 : index
    %c0_133 = arith.constant 0 : index
    %c0_134 = arith.constant 0 : index
    %330 = vector.load %arg9[%c1_132, %c0_133, %c0_134] : memref<2x2048x32xbf16, #tpu.memory_space<vmem>>, vector<1x2048x32xbf16>
    %331 = vector.shape_cast %330 : vector<1x2048x32xbf16> to vector<2048x32xbf16>
    %cst_135 = arith.constant dense<0.000000e+00> : vector<16x32xf32>
    %332 = tpu.matmul %329, %331, %cst_135 {dimension_numbers = #tpu.dot_dimension_numbers<[1], [0], [0], [1], [0, 0, 1, 1], [], []>} : vector<16x2048xbf16>, vector<2048x32xbf16>, vector<16x32xf32> -> vector<16x32xf32>
    %c1_136 = arith.constant 1 : index
    %c0_137 = arith.constant 0 : index
    %c0_138 = arith.constant 0 : index
    %333 = vector.load %arg10[%c1_136, %c0_137, %c0_138] : memref<2x1x32xf32, #tpu.memory_space<vmem>>, vector<1x1x32xf32>
    %334 = vector.shape_cast %333 : vector<1x1x32xf32> to vector<1x32xf32>
    %335 = vector.broadcast %334 : vector<1x32xf32> to vector<16x32xf32>
    %336 = arith.addf %332, %335 : vector<16x32xf32>
    %337 = arith.addf %318, %336 : vector<16x32xf32>
    %cst_139 = arith.constant dense<0.000000e+00> : vector<16xf32>
    %338 = vector.multi_reduction <add>, %337, %cst_139 [1] : vector<16x32xf32> to vector<16xf32>
    %339 = vector.shape_cast %338 : vector<16xf32> to vector<16x1xf32>
    %cst_140 = arith.constant 3.200000e+01 : f32
    %340 = vector.broadcast %cst_140 : f32 to vector<16x1xf32>
    %341 = arith.divf %339, %340 : vector<16x1xf32>
    %342 = vector.broadcast %341 : vector<16x1xf32> to vector<16x32xf32>
    %343 = arith.subf %337, %342 : vector<16x32xf32>
    %344 = arith.mulf %343, %343 : vector<16x32xf32>
    %cst_141 = arith.constant dense<0.000000e+00> : vector<16xf32>
    %345 = vector.multi_reduction <add>, %344, %cst_141 [1] : vector<16x32xf32> to vector<16xf32>
    %346 = vector.shape_cast %345 : vector<16xf32> to vector<16x1xf32>
    %cst_142 = arith.constant 3.200000e+01 : f32
    %347 = vector.broadcast %cst_142 : f32 to vector<16x1xf32>
    %348 = arith.divf %346, %347 : vector<16x1xf32>
    %349 = vector.broadcast %341 : vector<16x1xf32> to vector<16x32xf32>
    %350 = arith.subf %337, %349 : vector<16x32xf32>
    %cst_143 = arith.constant 9.99999974E-6 : f32
    %351 = vector.broadcast %cst_143 : f32 to vector<16x1xf32>
    %352 = arith.addf %348, %351 : vector<16x1xf32>
    %353 = math.rsqrt %352 : vector<16x1xf32>
    %354 = vector.broadcast %353 : vector<16x1xf32> to vector<16x32xf32>
    %355 = arith.mulf %350, %354 : vector<16x32xf32>
    %c1_144 = arith.constant 1 : index
    %c0_145 = arith.constant 0 : index
    %c0_146 = arith.constant 0 : index
    %356 = vector.load %arg11[%c1_144, %c0_145, %c0_146] : memref<2x1x32xf32, #tpu.memory_space<vmem>>, vector<1x1x32xf32>
    %357 = vector.shape_cast %356 : vector<1x1x32xf32> to vector<1x32xf32>
    %358 = vector.broadcast %357 : vector<1x32xf32> to vector<16x32xf32>
    %359 = arith.mulf %355, %358 : vector<16x32xf32>
    %c1_147 = arith.constant 1 : index
    %c0_148 = arith.constant 0 : index
    %c0_149 = arith.constant 0 : index
    %360 = vector.load %arg12[%c1_147, %c0_148, %c0_149] : memref<2x1x32xf32, #tpu.memory_space<vmem>>, vector<1x1x32xf32>
    %361 = vector.shape_cast %360 : vector<1x1x32xf32> to vector<1x32xf32>
    %362 = vector.broadcast %361 : vector<1x32xf32> to vector<16x32xf32>
    %363 = arith.addf %359, %362 : vector<16x32xf32>
    %364 = vector.extract_strided_slice %363 {offsets = [0, 0], sizes = [1, 32], strides = [1, 1]} : vector<16x32xf32> to vector<1x32xf32>
    %365 = vector.extract_strided_slice %363 {offsets = [8, 0], sizes = [1, 32], strides = [1, 1]} : vector<16x32xf32> to vector<1x32xf32>
    %366 = tpu.concatenate %364, %365 in 0 : vector<1x32xf32>, vector<1x32xf32> -> vector<2x32xf32>
    %367 = arith.truncf %366 : vector<2x32xf32> to vector<2x32xbf16>
    %c0_150 = arith.constant 0 : index
    %c0_151 = arith.constant 0 : index
    %368 = vector.load %arg13[%c0_150, %c0_151] : memref<32x16xbf16, #tpu.memory_space<vmem>>, vector<32x16xbf16>
    %cst_152 = arith.constant dense<0.000000e+00> : vector<2x16xf32>
    %369 = tpu.matmul %367, %368, %cst_152 {dimension_numbers = #tpu.dot_dimension_numbers<[1], [0], [0], [1], [0, 0, 1, 1], [], []>} : vector<2x32xbf16>, vector<32x16xbf16>, vector<2x16xf32> -> vector<2x16xf32>
    %c0_153 = arith.constant 0 : index
    %c0_154 = arith.constant 0 : index
    %370 = vector.load %arg14[%c0_153, %c0_154] : memref<1x16xf32, #tpu.memory_space<vmem>>, vector<1x16xf32>
    %371 = vector.broadcast %370 : vector<1x16xf32> to vector<2x16xf32>
    %372 = arith.addf %369, %371 : vector<2x16xf32>
    %c0_155 = arith.constant 0 : index
    %c0_156 = arith.constant 0 : index
    %373 = vector.load %arg15[%c0_155, %c0_156] : memref<2x16xf32, #tpu.memory_space<vmem>>, vector<2x16xf32>
    tpu.vector_store %arg15[%c0_155, %c0_156], %372 {strides = array<i32>} : memref<2x16xf32, #tpu.memory_space<vmem>>, vector<2x16xf32>,
    return
  }
}

</mosaic_0001>

<llo_original>
// kernel: tpu_custom_call.1
$region0: #{tpu_custom_call.1}
  #allocation0 [shape = 'u32[]', space=smem, size = 0x4, offset = 0x4, fixed_abs, tag = 'smem constant byte address 0x4 - core index']
  #allocation1 [shape = 'u32[72,128]{1,0:T(1,128)}', space=vmem, size = 0x9000, scoped, tag = 'internal scratch']
  %s0 = inlined_call_operand.vmem [shape: f32[2,8,32], index: 0, kind: input, shape index: {}]
  %s1 = inlined_call_operand.vmem [shape: bf16[2,32,96], index: 1, kind: input, shape index: {}]
  %s2 = inlined_call_operand.vmem [shape: f32[2,1,96], index: 2, kind: input, shape index: {}]
  %s3 = inlined_call_operand.vmem [shape: bf16[2,32,32], index: 3, kind: input, shape index: {}]
  %s4 = inlined_call_operand.vmem [shape: f32[2,1,32], index: 4, kind: input, shape index: {}]
  %s5 = inlined_call_operand.vmem [shape: f32[2,1,32], index: 5, kind: input, shape index: {}]
  %s6 = inlined_call_operand.vmem [shape: f32[2,1,32], index: 6, kind: input, shape index: {}]
  %s7 = inlined_call_operand.vmem [shape: bf16[2,32,2048], index: 7, kind: input, shape index: {}]
  %s8 = inlined_call_operand.vmem [shape: f32[2,1,2048], index: 8, kind: input, shape index: {}]
  %s9 = inlined_call_operand.vmem [shape: bf16[2,2048,32], index: 9, kind: input, shape index: {}]
  %s10 = inlined_call_operand.vmem [shape: f32[2,1,32], index: 10, kind: input, shape index: {}]
  %s11 = inlined_call_operand.vmem [shape: f32[2,1,32], index: 11, kind: input, shape index: {}]
  %s12 = inlined_call_operand.vmem [shape: f32[2,1,32], index: 12, kind: input, shape index: {}]
  %s13 = inlined_call_operand.vmem [shape: bf16[32,16], index: 13, kind: input, shape index: {}]
  %s14 = inlined_call_operand.vmem [shape: f32[1,16], index: 14, kind: input, shape index: {}]
  %s15 = inlined_call_operand.hbm [shape: f32[2,16], index: 15, kind: output, shape index: {}]
  %s16 = sld [smem:[#allocation0]]
  $region70: #{tpu_custom_call.1} parent=0
    _
  %s18 = ssub.s32 1, %s16
  %s19 = scalar_select 0, %s18, %s16
  $region1: #{tpu_custom_call.1} parent=0
    #allocation2 [shape = 'u8[1024]{0}', space=vmem, size = 0x400, scoped, tag = 'output window, operand 0, single buffered']
    #allocation3 [shape = 's32[1]{0}', space=sflag, size = 0x4, scoped, tag = 'scoped memory for tpu_custom_call.1']
    %20 = vsyncpa [#allocation3], 0
    // Predicated region
    $region2: #{tpu_custom_call.1} parent=1 // pred_check
      _
    $region3: #{tpu_custom_call.1} parent=1 // pred_check_branch
      %22 = sbr.rel (0) target = $region5
    $region4: #{tpu_custom_call.1} parent=1 // pred_region
      _
    $region5: #{tpu_custom_call.1} parent=1 // pred_fallthru
      _
    // Predicated region
    $region6: #{tpu_custom_call.1} parent=1 // pred_check
      _
    $region7: #{tpu_custom_call.1} parent=1 // pred_check_branch
      %24 = sbr.rel (0) target = $region9
    $region8: #{tpu_custom_call.1} parent=1 // pred_region
      _
    $region9: #{tpu_custom_call.1} parent=1 // pred_fallthru
      _
    // Predicated region
    $region10: #{tpu_custom_call.1} parent=1 // pred_check
      _
    $region11: #{tpu_custom_call.1} parent=1 // pred_check_branch
      %26 = sbr.rel (0) target = $region13
    $region12: #{tpu_custom_call.1} parent=1 // pred_region
      _
    $region13: #{tpu_custom_call.1} parent=1 // pred_fallthru
      _
    // Predicated region
    $region14: #{tpu_custom_call.1} parent=1 // pred_check
      _
    $region15: #{tpu_custom_call.1} parent=1 // pred_check_branch
      %28 = sbr.rel (0) target = $region17
    $region16: #{tpu_custom_call.1} parent=1 // pred_region
      _
    $region17: #{tpu_custom_call.1} parent=1 // pred_fallthru
      _
    // Predicated region
    $region18: #{tpu_custom_call.1} parent=1 // pred_check
      _
    $region19: #{tpu_custom_call.1} parent=1 // pred_check_branch
      %30 = sbr.rel (0) target = $region21
    $region20: #{tpu_custom_call.1} parent=1 // pred_region
      _
    $region21: #{tpu_custom_call.1} parent=1 // pred_fallthru
      _
    // Predicated region
    $region22: #{tpu_custom_call.1} parent=1 // pred_check
      _
    $region23: #{tpu_custom_call.1} parent=1 // pred_check_branch
      %32 = sbr.rel (0) target = $region25
    $region24: #{tpu_custom_call.1} parent=1 // pred_region
      _
    $region25: #{tpu_custom_call.1} parent=1 // pred_fallthru
      _
    // Predicated region
    $region26: #{tpu_custom_call.1} parent=1 // pred_check
      _
    $region27: #{tpu_custom_call.1} parent=1 // pred_check_branch
      %34 = sbr.rel (0) target = $region29
    $region28: #{tpu_custom_call.1} parent=1 // pred_region
      _
    $region29: #{tpu_custom_call.1} parent=1 // pred_fallthru
      _
    // Predicated region
    $region30: #{tpu_custom_call.1} parent=1 // pred_check
      _
    $region31: #{tpu_custom_call.1} parent=1 // pred_check_branch
      %36 = sbr.rel (0) target = $region33
    $region32: #{tpu_custom_call.1} parent=1 // pred_region
      _
    $region33: #{tpu_custom_call.1} parent=1 // pred_fallthru
      _
    // Predicated region
    $region34: #{tpu_custom_call.1} parent=1 // pred_check
      _
    $region35: #{tpu_custom_call.1} parent=1 // pred_check_branch
      %38 = sbr.rel (0) target = $region37
    $region36: #{tpu_custom_call.1} parent=1 // pred_region
      _
    $region37: #{tpu_custom_call.1} parent=1 // pred_fallthru
      _
    // Predicated region
    $region38: #{tpu_custom_call.1} parent=1 // pred_check
      _
    $region39: #{tpu_custom_call.1} parent=1 // pred_check_branch
      %40 = sbr.rel (0) target = $region41
    $region40: #{tpu_custom_call.1} parent=1 // pred_region
      _
    $region41: #{tpu_custom_call.1} parent=1 // pred_fallthru
      _
    // Predicated region
    $region42: #{tpu_custom_call.1} parent=1 // pred_check
      _
    $region43: #{tpu_custom_call.1} parent=1 // pred_check_branch
      %42 = sbr.rel (0) target = $region45
    $region44: #{tpu_custom_call.1} parent=1 // pred_region
      _
    $region45: #{tpu_custom_call.1} parent=1 // pred_fallthru
      _
    // Predicated region
    $region46: #{tpu_custom_call.1} parent=1 // pred_check
      _
    $region47: #{tpu_custom_call.1} parent=1 // pred_check_branch
      %44 = sbr.rel (0) target = $region49
    $region48: #{tpu_custom_call.1} parent=1 // pred_region
      _
    $region49: #{tpu_custom_call.1} parent=1 // pred_fallthru
      _
    // Predicated region
    $region50: #{tpu_custom_call.1} parent=1 // pred_check
      _
    $region51: #{tpu_custom_call.1} parent=1 // pred_check_branch
      %46 = sbr.rel (0) target = $region53
    $region52: #{tpu_custom_call.1} parent=1 // pred_region
      _
    $region53: #{tpu_custom_call.1} parent=1 // pred_fallthru
      _
    // Predicated region
    $region54: #{tpu_custom_call.1} parent=1 // pred_check
      _
    $region55: #{tpu_custom_call.1} parent=1 // pred_check_branch
      %48 = sbr.rel (0) target = $region57
    $region56: #{tpu_custom_call.1} parent=1 // pred_region
      _
    $region57: #{tpu_custom_call.1} parent=1 // pred_fallthru
      _
    // Predicated region
    $region58: #{tpu_custom_call.1} parent=1 // pred_check
      _
    $region59: #{tpu_custom_call.1} parent=1 // pred_check_branch
      %50 = sbr.rel (0) target = $region61
    $region60: #{tpu_custom_call.1} parent=1 // pred_region
      _
    $region61: #{tpu_custom_call.1} parent=1 // pred_fallthru
      _
    %v52 = vld [vmem:[%s0] sm:$0xff]
    %v53 = vld [vmem:[%s0 + $0x8] sm:$0xff]
    %v54 = vpack.c.bf16 %v53, %v52
    %v55 = vld [vmem:[%s1] sm:$0xf]
    %v56 = vld [vmem:[%s1 + $0x4] sm:$0xf]
    %v57 = vld [vmem:[%s1 + $0x8] sm:$0xf]
    %v58 = vld [vmem:[%s1 + $0xc] sm:$0xf]
    %v59 = vld [vmem:[%s2] sm:$0x1]
    %v61 = vperm.slane %v59, 0
    %v67 = vunpack.c.l.b16 %v55
    %v68 = vunpack.c.l.b16 %v56
    %v69 = vunpack.c.l.b16 %v57
    %v70 = vunpack.c.l.b16 %v58
    %v71 = vpack.c.b16 %v68, %v67
    %v72 = vpack.c.b16 %v70, %v69
    %vm75 = vcmask 261120
    %v77 = vsel %vm75, %v54, 0
    %79 = vmatpush.bf16.msra.mxu0 0
    %80 = vmatpush.bf16.msra.mxu0 0
    %81 = vmatpush.bf16.msra.mxu0 0
    %82 = vmatpush.bf16.msra.mxu0 0
    %83 = vmatpush.bf16.msra.mxu0 0
    %84 = vmatpush.bf16.msra.mxu0 0
    %85 = vmatpush.bf16.msra.mxu0 %v72
    %86 = vmatpush.bf16.msra.mxu0 %v71
    %87 = vmatmul.bf16.gmra.mxu0 %v77
    %v88 = vpop.f32.mrf.mxu0
    %v89 = vadd.f32 %v61, %v88
    %v90 = vpop.f32.mrf.mxu0
    %v91 = vadd.f32 %v61, %v90
    %92 = vdwg.mxu0
    %v93 = vld [vmem:[%s3] sm:$0xf]
    %v94 = vld [vmem:[%s3 + $0x4] sm:$0xf]
    %v95 = vld [vmem:[%s3 + $0x8] sm:$0xf]
    %v96 = vld [vmem:[%s3 + $0xc] sm:$0xf]
    %98 = vrot.lane.b32.xlu0 %v89, 96
    %v99 = vpop.permute.xlu0 %98
    %vm100 = vcmask 64512
    %v101 = vsel %vm100, %v89, 0
    %v103 = vsel %vm100, %v99, 0
    %105 = vmatpush.xpose.msra.mxu0 0.0
    %106 = vmatpush.xpose.msra.mxu0 0.0
    %107 = vmatpush.xpose.msra.mxu0 0.0
    %108 = vmatpush.xpose.msra.mxu0 0.0
    %109 = vmatpush.xpose.msra.mxu0 0.0
    %110 = vmatpush.xpose.msra.mxu0 0.0
    %111 = vmatpush.xpose.msra.mxu0 0.0
    %112 = vmatpush.xpose.msra.mxu0 0.0
    %113 = vmatpush.xpose.msra.mxu0 0.0
    %114 = vmatpush.xpose.msra.mxu0 0.0
    %115 = vmatpush.xpose.msra.mxu0 0.0
    %116 = vmatpush.xpose.msra.mxu0 0.0
    %117 = vmatpush.xpose.msra.mxu0 0.0
    %118 = vmatpush.xpose.msra.mxu0 0.0
    %119 = vmatpush.xpose.msra.mxu0 0.0
    %120 = vmatpush.xpose.msra.mxu0 %v103
    %121 = vmatmul.f32.gmra.mxu0 %v101
    %v122 = vpop.f32.mrf.mxu0
    %v123 = vadd.f32 0.0, %v122
    %124 = vdwg.mxu0
    %126 = vrot.lane.b32.xlu0 %v91, 96
    %v127 = vpop.permute.xlu0 %126
    %v128 = vsel %vm100, %v91, 0
    %v130 = vsel %vm100, %v127, 0
    %132 = vmatpush.xpose.msra.mxu0 0.0
    %133 = vmatpush.xpose.msra.mxu0 0.0
    %134 = vmatpush.xpose.msra.mxu0 0.0
    %135 = vmatpush.xpose.msra.mxu0 0.0
    %136 = vmatpush.xpose.msra.mxu0 0.0
    %137 = vmatpush.xpose.msra.mxu0 0.0
    %138 = vmatpush.xpose.msra.mxu0 0.0
    %139 = vmatpush.xpose.msra.mxu0 0.0
    %140 = vmatpush.xpose.msra.mxu0 0.0
    %141 = vmatpush.xpose.msra.mxu0 0.0
    %142 = vmatpush.xpose.msra.mxu0 0.0
    %143 = vmatpush.xpose.msra.mxu0 0.0
    %144 = vmatpush.xpose.msra.mxu0 0.0
    %145 = vmatpush.xpose.msra.mxu0 0.0
    %146 = vmatpush.xpose.msra.mxu0 0.0
    %147 = vmatpush.xpose.msra.mxu0 %v130
    %148 = vmatmul.f32.gmra.mxu0 %v128
    %v149 = vpop.f32.mrf.mxu0
    %v150 = vadd.f32 0.0, %v149
    %151 = vdwg.mxu0
    %v152 = vmul.f32 %v123, 0.35355338
    %v153 = vmul.f32 %v150, 0.35355338
    %v154 = vsel %vm100, %v152, -inf
    %155 = vmax.xlane.f32.xlu0 %v154
    %v156 = vpop.xlane.xlu0 %155
    %v157 = vsel %vm100, %v153, -inf
    %158 = vmax.xlane.f32.xlu0 %v157
    %v159 = vpop.xlane.xlu0 %158
    %v160 = vsub.f32 %v152, %v156
    %v161 = vsub.f32 %v153, %v159
    %v162 = vmul.f32 %v160, 1.442695
    %v163 = vpow.pop %v162
    %v164 = vmul.f32 %v161, 1.442695
    %v165 = vpow.pop %v164
    %v166 = vsel %vm100, %v163, 0.0
    %167 = vadd.xlane.f32.xlu0 %v166
    %v168 = vpop.xlane.xlu0 %167
    %v169 = vsel %vm100, %v165, 0.0
    %170 = vadd.xlane.f32.xlu0 %v169
    %v171 = vpop.xlane.xlu0 %170
    %v172 = vrcp.pop %v168
    %v173 = vrcp.pop %v171
    %v174 = vmul.f32 %v163, %v172
    %v175 = vmul.f32 %v165, %v173
    %176 = vrot.lane.b32.xlu0 %v89, 64
    %v177 = vpop.permute.xlu0 %176
    %v180 = vsel %vm100, %v174, 0
    %182 = vmatpush.msra.mxu0 0.0
    %183 = vmatpush.msra.mxu0 0.0
    %184 = vmatpush.msra.mxu0 0.0
    %185 = vmatpush.msra.mxu0 0.0
    %186 = vmatpush.msra.mxu0 0.0
    %187 = vmatpush.msra.mxu0 0.0
    %188 = vmatpush.msra.mxu0 0.0
    %189 = vmatpush.msra.mxu0 0.0
    %190 = vmatpush.msra.mxu0 0.0
    %191 = vmatpush.msra.mxu0 0.0
    %192 = vmatpush.msra.mxu0 0.0
    %193 = vmatpush.msra.mxu0 0.0
    %194 = vmatpush.msra.mxu0 0.0
    %195 = vmatpush.msra.mxu0 0.0
    %196 = vmatpush.msra.mxu0 0.0
    %197 = vmatpush.msra.mxu0 %v177
    %198 = vmatmul.f32.gmra.mxu0 %v180
    %v199 = vpop.f32.mrf.mxu0
    %v200 = vadd.f32 0.0, %v199
    %201 = vdwg.mxu0
    %202 = vrot.lane.b32.xlu0 %v91, 64
    %v203 = vpop.permute.xlu0 %202
    %v206 = vsel %vm100, %v175, 0
    %208 = vmatpush.msra.mxu0 0.0
    %209 = vmatpush.msra.mxu0 0.0
    %210 = vmatpush.msra.mxu0 0.0
    %211 = vmatpush.msra.mxu0 0.0
    %212 = vmatpush.msra.mxu0 0.0
    %213 = vmatpush.msra.mxu0 0.0
    %214 = vmatpush.msra.mxu0 0.0
    %215 = vmatpush.msra.mxu0 0.0
    %216 = vmatpush.msra.mxu0 0.0
    %217 = vmatpush.msra.mxu0 0.0
    %218 = vmatpush.msra.mxu0 0.0
    %219 = vmatpush.msra.mxu0 0.0
    %220 = vmatpush.msra.mxu0 0.0
    %221 = vmatpush.msra.mxu0 0.0
    %222 = vmatpush.msra.mxu0 0.0
    %223 = vmatpush.msra.mxu0 %v203
    %224 = vmatmul.f32.gmra.mxu0 %v206
    %v225 = vpop.f32.mrf.mxu0
    %v226 = vadd.f32 0.0, %v225
    %227 = vdwg.mxu0
    %v228 = vpack.c.bf16 %v226, %v200
    %229 = vrot.lane.b32.xlu0 %v89, 120
    %v230 = vpop.permute.xlu0 %229
    %231 = vrot.lane.b32.xlu0 %v89, 88
    %v232 = vpop.permute.xlu0 %231
    %v233 = vsel %vm100, %v230, 0
    %v235 = vsel %vm100, %v232, 0
    %237 = vmatpush.xpose.msra.mxu0 0.0
    %238 = vmatpush.xpose.msra.mxu0 0.0
    %239 = vmatpush.xpose.msra.mxu0 0.0
    %240 = vmatpush.xpose.msra.mxu0 0.0
    %241 = vmatpush.xpose.msra.mxu0 0.0
    %242 = vmatpush.xpose.msra.mxu0 0.0
    %243 = vmatpush.xpose.msra.mxu0 0.0
    %244 = vmatpush.xpose.msra.mxu0 0.0
    %245 = vmatpush.xpose.msra.mxu0 0.0
    %246 = vmatpush.xpose.msra.mxu0 0.0
    %247 = vmatpush.xpose.msra.mxu0 0.0
    %248 = vmatpush.xpose.msra.mxu0 0.0
    %249 = vmatpush.xpose.msra.mxu0 0.0
    %250 = vmatpush.xpose.msra.mxu0 0.0
    %251 = vmatpush.xpose.msra.mxu0 0.0
    %252 = vmatpush.xpose.msra.mxu0 %v235
    %253 = vmatmul.f32.gmra.mxu0 %v233
    %v254 = vpop.f32.mrf.mxu0
    %v255 = vadd.f32 0.0, %v254
    %256 = vdwg.mxu0
    %257 = vrot.lane.b32.xlu0 %v91, 120
    %v258 = vpop.permute.xlu0 %257
    %259 = vrot.lane.b32.xlu0 %v91, 88
    %v260 = vpop.permute.xlu0 %259
    %v261 = vsel %vm100, %v258, 0
    %v263 = vsel %vm100, %v260, 0
    %265 = vmatpush.xpose.msra.mxu0 0.0
    %266 = vmatpush.xpose.msra.mxu0 0.0
    %267 = vmatpush.xpose.msra.mxu0 0.0
    %268 = vmatpush.xpose.msra.mxu0 0.0
    %269 = vmatpush.xpose.msra.mxu0 0.0
    %270 = vmatpush.xpose.msra.mxu0 0.0
    %271 = vmatpush.xpose.msra.mxu0 0.0
    %272 = vmatpush.xpose.msra.mxu0 0.0
    %273 = vmatpush.xpose.msra.mxu0 0.0
    %274 = vmatpush.xpose.msra.mxu0 0.0
    %275 = vmatpush.xpose.msra.mxu0 0.0
    %276 = vmatpush.xpose.msra.mxu0 0.0
    %277 = vmatpush.xpose.msra.mxu0 0.0
    %278 = vmatpush.xpose.msra.mxu0 0.0
    %279 = vmatpush.xpose.msra.mxu0 0.0
    %280 = vmatpush.xpose.msra.mxu0 %v263
    %281 = vmatmul.f32.gmra.mxu0 %v261
    %v282 = vpop.f32.mrf.mxu0
    %v283 = vadd.f32 0.0, %v282
    %284 = vdwg.mxu0
    %v285 = vmul.f32 %v255, 0.35355338
    %v286 = vmul.f32 %v283, 0.35355338
    %v287 = vsel %vm100, %v285, -inf
    %288 = vmax.xlane.f32.xlu0 %v287
    %v289 = vpop.xlane.xlu0 %288
    %v290 = vsel %vm100, %v286, -inf
    %291 = vmax.xlane.f32.xlu0 %v290
    %v292 = vpop.xlane.xlu0 %291
    %v293 = vsub.f32 %v285, %v289
    %v294 = vsub.f32 %v286, %v292
    %v295 = vmul.f32 %v293, 1.442695
    %v296 = vpow.pop %v295
    %v297 = vmul.f32 %v294, 1.442695
    %v298 = vpow.pop %v297
    %v299 = vsel %vm100, %v296, 0.0
    %300 = vadd.xlane.f32.xlu0 %v299
    %v301 = vpop.xlane.xlu0 %300
    %v302 = vsel %vm100, %v298, 0.0
    %303 = vadd.xlane.f32.xlu0 %v302
    %v304 = vpop.xlane.xlu0 %303
    %v305 = vrcp.pop %v301
    %v306 = vrcp.pop %v304
    %v307 = vmul.f32 %v296, %v305
    %v308 = vmul.f32 %v298, %v306
    %309 = vrot.lane.b32.xlu0 %v89, 56
    %v310 = vpop.permute.xlu0 %309
    %v313 = vsel %vm100, %v307, 0
    %315 = vmatpush.msra.mxu0 0.0
    %316 = vmatpush.msra.mxu0 0.0
    %317 = vmatpush.msra.mxu0 0.0
    %318 = vmatpush.msra.mxu0 0.0
    %319 = vmatpush.msra.mxu0 0.0
    %320 = vmatpush.msra.mxu0 0.0
    %321 = vmatpush.msra.mxu0 0.0
    %322 = vmatpush.msra.mxu0 0.0
    %323 = vmatpush.msra.mxu0 0.0
    %324 = vmatpush.msra.mxu0 0.0
    %325 = vmatpush.msra.mxu0 0.0
    %326 = vmatpush.msra.mxu0 0.0
    %327 = vmatpush.msra.mxu0 0.0
    %328 = vmatpush.msra.mxu0 0.0
    %329 = vmatpush.msra.mxu0 0.0
    %330 = vmatpush.msra.mxu0 %v310
    %331 = vmatmul.f32.gmra.mxu0 %v313
    %v332 = vpop.f32.mrf.mxu0
    %v333 = vadd.f32 0.0, %v332
    %334 = vdwg.mxu0
    %335 = vrot.lane.b32.xlu0 %v91, 56
    %v336 = vpop.permute.xlu0 %335
    %v339 = vsel %vm100, %v308, 0
    %341 = vmatpush.msra.mxu0 0.0
    %342 = vmatpush.msra.mxu0 0.0
    %343 = vmatpush.msra.mxu0 0.0
    %344 = vmatpush.msra.mxu0 0.0
    %345 = vmatpush.msra.mxu0 0.0
    %346 = vmatpush.msra.mxu0 0.0
    %347 = vmatpush.msra.mxu0 0.0
    %348 = vmatpush.msra.mxu0 0.0
    %349 = vmatpush.msra.mxu0 0.0
    %350 = vmatpush.msra.mxu0 0.0
    %351 = vmatpush.msra.mxu0 0.0
    %352 = vmatpush.msra.mxu0 0.0
    %353 = vmatpush.msra.mxu0 0.0
    %354 = vmatpush.msra.mxu0 0.0
    %355 = vmatpush.msra.mxu0 0.0
    %356 = vmatpush.msra.mxu0 %v336
    %357 = vmatmul.f32.gmra.mxu0 %v339
    %v358 = vpop.f32.mrf.mxu0
    %v359 = vadd.f32 0.0, %v358
    %360 = vdwg.mxu0
    %v361 = vpack.c.bf16 %v359, %v333
    %v363 = vsel %vm100, %v361, 0
    %vm365 = vcmask 1043456
    %v367 = vsel %vm365, %v94, 0
    %369 = vmatpush.bf16.msra.mxu0 0
    %370 = vmatpush.bf16.msra.mxu0 0
    %371 = vmatpush.bf16.msra.mxu0 0
    %372 = vmatpush.bf16.msra.mxu0 0
    %373 = vmatpush.bf16.msra.mxu0 0
    %374 = vmatpush.bf16.msra.mxu0 0
    %375 = vmatpush.bf16.msra.mxu0 0
    %376 = vmatpush.bf16.msra.mxu0 %v367
    %377 = vmatmul.bf16.gmra.mxu0 %v363
    %v378 = vpop.f32.mrf.mxu0
    %v379 = vadd.f32 0.0, %v378
    %v380 = vpop.f32.mrf.mxu0
    %v381 = vadd.f32 0.0, %v380
    %382 = vdwg.mxu0
    %v384 = vsel %vm100, %v228, 0
    %v387 = vsel %vm365, %v93, 0
    %389 = vmatpush.bf16.msra.mxu0 0
    %390 = vmatpush.bf16.msra.mxu0 0
    %391 = vmatpush.bf16.msra.mxu0 0
    %392 = vmatpush.bf16.msra.mxu0 0
    %393 = vmatpush.bf16.msra.mxu0 0
    %394 = vmatpush.bf16.msra.mxu0 0
    %395 = vmatpush.bf16.msra.mxu0 0
    %396 = vmatpush.bf16.msra.mxu0 %v387
    %397 = vmatmul.bf16.gmra.mxu0 %v384
    %v398 = vpop.f32.mrf.mxu0
    %v399 = vadd.f32 %v379, %v398
    %v400 = vpop.f32.mrf.mxu0
    %v401 = vadd.f32 %v381, %v400
    %402 = vdwg.mxu0
    %403 = vrot.lane.b32.xlu0 %v89, 112
    %v404 = vpop.permute.xlu0 %403
    %405 = vrot.lane.b32.xlu0 %v89, 80
    %v406 = vpop.permute.xlu0 %405
    %v407 = vsel %vm100, %v404, 0
    %v409 = vsel %vm100, %v406, 0
    %411 = vmatpush.xpose.msra.mxu0 0.0
    %412 = vmatpush.xpose.msra.mxu0 0.0
    %413 = vmatpush.xpose.msra.mxu0 0.0
    %414 = vmatpush.xpose.msra.mxu0 0.0
    %415 = vmatpush.xpose.msra.mxu0 0.0
    %416 = vmatpush.xpose.msra.mxu0 0.0
    %417 = vmatpush.xpose.msra.mxu0 0.0
    %418 = vmatpush.xpose.msra.mxu0 0.0
    %419 = vmatpush.xpose.msra.mxu0 0.0
    %420 = vmatpush.xpose.msra.mxu0 0.0
    %421 = vmatpush.xpose.msra.mxu0 0.0
    %422 = vmatpush.xpose.msra.mxu0 0.0
    %423 = vmatpush.xpose.msra.mxu0 0.0
    %424 = vmatpush.xpose.msra.mxu0 0.0
    %425 = vmatpush.xpose.msra.mxu0 0.0
    %426 = vmatpush.xpose.msra.mxu0 %v409
    %427 = vmatmul.f32.gmra.mxu0 %v407
    %v428 = vpop.f32.mrf.mxu0
    %v429 = vadd.f32 0.0, %v428
    %430 = vdwg.mxu0
    %431 = vrot.lane.b32.xlu0 %v91, 112
    %v432 = vpop.permute.xlu0 %431
    %433 = vrot.lane.b32.xlu0 %v91, 80
    %v434 = vpop.permute.xlu0 %433
    %v435 = vsel %vm100, %v432, 0
    %v437 = vsel %vm100, %v434, 0
    %439 = vmatpush.xpose.msra.mxu0 0.0
    %440 = vmatpush.xpose.msra.mxu0 0.0
    %441 = vmatpush.xpose.msra.mxu0 0.0
    %442 = vmatpush.xpose.msra.mxu0 0.0
    %443 = vmatpush.xpose.msra.mxu0 0.0
    %444 = vmatpush.xpose.msra.mxu0 0.0
    %445 = vmatpush.xpose.msra.mxu0 0.0
    %446 = vmatpush.xpose.msra.mxu0 0.0
    %447 = vmatpush.xpose.msra.mxu0 0.0
    %448 = vmatpush.xpose.msra.mxu0 0.0
    %449 = vmatpush.xpose.msra.mxu0 0.0
    %450 = vmatpush.xpose.msra.mxu0 0.0
    %451 = vmatpush.xpose.msra.mxu0 0.0
    %452 = vmatpush.xpose.msra.mxu0 0.0
    %453 = vmatpush.xpose.msra.mxu0 0.0
    %454 = vmatpush.xpose.msra.mxu0 %v437
    %455 = vmatmul.f32.gmra.mxu0 %v435
    %v456 = vpop.f32.mrf.mxu0
    %v457 = vadd.f32 0.0, %v456
    %458 = vdwg.mxu0
    %v459 = vmul.f32 %v429, 0.35355338
    %v460 = vmul.f32 %v457, 0.35355338
    %v461 = vsel %vm100, %v459, -inf
    %462 = vmax.xlane.f32.xlu0 %v461
    %v463 = vpop.xlane.xlu0 %462
    %v464 = vsel %vm100, %v460, -inf
    %465 = vmax.xlane.f32.xlu0 %v464
    %v466 = vpop.xlane.xlu0 %465
    %v467 = vsub.f32 %v459, %v463
    %v468 = vsub.f32 %v460, %v466
    %v469 = vmul.f32 %v467, 1.442695
    %v470 = vpow.pop %v469
    %v471 = vmul.f32 %v468, 1.442695
    %v472 = vpow.pop %v471
    %v473 = vsel %vm100, %v470, 0.0
    %474 = vadd.xlane.f32.xlu0 %v473
    %v475 = vpop.xlane.xlu0 %474
    %v476 = vsel %vm100, %v472, 0.0
    %477 = vadd.xlane.f32.xlu0 %v476
    %v478 = vpop.xlane.xlu0 %477
    %v479 = vrcp.pop %v475
    %v480 = vrcp.pop %v478
    %v481 = vmul.f32 %v470, %v479
    %v482 = vmul.f32 %v472, %v480
    %483 = vrot.lane.b32.xlu0 %v89, 48
    %v484 = vpop.permute.xlu0 %483
    %v487 = vsel %vm100, %v481, 0
    %489 = vmatpush.msra.mxu0 0.0
    %490 = vmatpush.msra.mxu0 0.0
    %491 = vmatpush.msra.mxu0 0.0
    %492 = vmatpush.msra.mxu0 0.0
    %493 = vmatpush.msra.mxu0 0.0
    %494 = vmatpush.msra.mxu0 0.0
    %495 = vmatpush.msra.mxu0 0.0
    %496 = vmatpush.msra.mxu0 0.0
    %497 = vmatpush.msra.mxu0 0.0
    %498 = vmatpush.msra.mxu0 0.0
    %499 = vmatpush.msra.mxu0 0.0
    %500 = vmatpush.msra.mxu0 0.0
    %501 = vmatpush.msra.mxu0 0.0
    %502 = vmatpush.msra.mxu0 0.0
    %503 = vmatpush.msra.mxu0 0.0
    %504 = vmatpush.msra.mxu0 %v484
    %505 = vmatmul.f32.gmra.mxu0 %v487
    %v506 = vpop.f32.mrf.mxu0
    %v507 = vadd.f32 0.0, %v506
    %508 = vdwg.mxu0
    %509 = vrot.lane.b32.xlu0 %v91, 48
    %v510 = vpop.permute.xlu0 %509
    %v513 = vsel %vm100, %v482, 0
    %515 = vmatpush.msra.mxu0 0.0
    %516 = vmatpush.msra.mxu0 0.0
    %517 = vmatpush.msra.mxu0 0.0
    %518 = vmatpush.msra.mxu0 0.0
    %519 = vmatpush.msra.mxu0 0.0
    %520 = vmatpush.msra.mxu0 0.0
    %521 = vmatpush.msra.mxu0 0.0
    %522 = vmatpush.msra.mxu0 0.0
    %523 = vmatpush.msra.mxu0 0.0
    %524 = vmatpush.msra.mxu0 0.0
    %525 = vmatpush.msra.mxu0 0.0
    %526 = vmatpush.msra.mxu0 0.0
    %527 = vmatpush.msra.mxu0 0.0
    %528 = vmatpush.msra.mxu0 0.0
    %529 = vmatpush.msra.mxu0 0.0
    %530 = vmatpush.msra.mxu0 %v510
    %531 = vmatmul.f32.gmra.mxu0 %v513
    %v532 = vpop.f32.mrf.mxu0
    %v533 = vadd.f32 0.0, %v532
    %534 = vdwg.mxu0
    %v535 = vpack.c.bf16 %v533, %v507
    %v537 = vsel %vm100, %v535, 0
    %v540 = vsel %vm365, %v95, 0
    %542 = vmatpush.bf16.msra.mxu0 0
    %543 = vmatpush.bf16.msra.mxu0 0
    %544 = vmatpush.bf16.msra.mxu0 0
    %545 = vmatpush.bf16.msra.mxu0 0
    %546 = vmatpush.bf16.msra.mxu0 0
    %547 = vmatpush.bf16.msra.mxu0 0
    %548 = vmatpush.bf16.msra.mxu0 0
    %549 = vmatpush.bf16.msra.mxu0 %v540
    %550 = vmatmul.bf16.gmra.mxu0 %v537
    %v551 = vpop.f32.mrf.mxu0
    %v552 = vadd.f32 0.0, %v551
    %v553 = vpop.f32.mrf.mxu0
    %v554 = vadd.f32 0.0, %v553
    %555 = vdwg.mxu0
    %v556 = vadd.f32 %v399, %v552
    %v557 = vadd.f32 %v401, %v554
    %558 = vrot.lane.b32.xlu0 %v89, 104
    %v559 = vpop.permute.xlu0 %558
    %560 = vrot.lane.b32.xlu0 %v89, 72
    %v561 = vpop.permute.xlu0 %560
    %v562 = vsel %vm100, %v559, 0
    %v564 = vsel %vm100, %v561, 0
    %566 = vmatpush.xpose.msra.mxu0 0.0
    %567 = vmatpush.xpose.msra.mxu0 0.0
    %568 = vmatpush.xpose.msra.mxu0 0.0
    %569 = vmatpush.xpose.msra.mxu0 0.0
    %570 = vmatpush.xpose.msra.mxu0 0.0
    %571 = vmatpush.xpose.msra.mxu0 0.0
    %572 = vmatpush.xpose.msra.mxu0 0.0
    %573 = vmatpush.xpose.msra.mxu0 0.0
    %574 = vmatpush.xpose.msra.mxu0 0.0
    %575 = vmatpush.xpose.msra.mxu0 0.0
    %576 = vmatpush.xpose.msra.mxu0 0.0
    %577 = vmatpush.xpose.msra.mxu0 0.0
    %578 = vmatpush.xpose.msra.mxu0 0.0
    %579 = vmatpush.xpose.msra.mxu0 0.0
    %580 = vmatpush.xpose.msra.mxu0 0.0
    %581 = vmatpush.xpose.msra.mxu0 %v564
    %582 = vmatmul.f32.gmra.mxu0 %v562
    %v583 = vpop.f32.mrf.mxu0
    %v584 = vadd.f32 0.0, %v583
    %585 = vdwg.mxu0
    %586 = vrot.lane.b32.xlu0 %v91, 104
    %v587 = vpop.permute.xlu0 %586
    %588 = vrot.lane.b32.xlu0 %v91, 72
    %v589 = vpop.permute.xlu0 %588
    %v590 = vsel %vm100, %v587, 0
    %v592 = vsel %vm100, %v589, 0
    %594 = vmatpush.xpose.msra.mxu0 0.0
    %595 = vmatpush.xpose.msra.mxu0 0.0
    %596 = vmatpush.xpose.msra.mxu0 0.0
    %597 = vmatpush.xpose.msra.mxu0 0.0
    %598 = vmatpush.xpose.msra.mxu0 0.0
    %599 = vmatpush.xpose.msra.mxu0 0.0
    %600 = vmatpush.xpose.msra.mxu0 0.0
    %601 = vmatpush.xpose.msra.mxu0 0.0
    %602 = vmatpush.xpose.msra.mxu0 0.0
    %603 = vmatpush.xpose.msra.mxu0 0.0
    %604 = vmatpush.xpose.msra.mxu0 0.0
    %605 = vmatpush.xpose.msra.mxu0 0.0
    %606 = vmatpush.xpose.msra.mxu0 0.0
    %607 = vmatpush.xpose.msra.mxu0 0.0
    %608 = vmatpush.xpose.msra.mxu0 0.0
    %609 = vmatpush.xpose.msra.mxu0 %v592
    %610 = vmatmul.f32.gmra.mxu0 %v590
    %v611 = vpop.f32.mrf.mxu0
    %v612 = vadd.f32 0.0, %v611
    %613 = vdwg.mxu0
    %v614 = vmul.f32 %v584, 0.35355338
    %v615 = vmul.f32 %v612, 0.35355338
    %v616 = vsel %vm100, %v614, -inf
    %617 = vmax.xlane.f32.xlu0 %v616
    %v618 = vpop.xlane.xlu0 %617
    %v619 = vsel %vm100, %v615, -inf
    %620 = vmax.xlane.f32.xlu0 %v619
    %v621 = vpop.xlane.xlu0 %620
    %v622 = vsub.f32 %v614, %v618
    %v623 = vsub.f32 %v615, %v621
    %v624 = vmul.f32 %v622, 1.442695
    %v625 = vpow.pop %v624
    %v626 = vmul.f32 %v623, 1.442695
    %v627 = vpow.pop %v626
    %v628 = vsel %vm100, %v625, 0.0
    %629 = vadd.xlane.f32.xlu0 %v628
    %v630 = vpop.xlane.xlu0 %629
    %v631 = vsel %vm100, %v627, 0.0
    %632 = vadd.xlane.f32.xlu0 %v631
    %v633 = vpop.xlane.xlu0 %632
    %v634 = vrcp.pop %v630
    %v635 = vrcp.pop %v633
    %v636 = vmul.f32 %v625, %v634
    %v637 = vmul.f32 %v627, %v635
    %638 = vrot.lane.b32.xlu0 %v89, 40
    %v639 = vpop.permute.xlu0 %638
    %v642 = vsel %vm100, %v636, 0
    %644 = vmatpush.msra.mxu0 0.0
    %645 = vmatpush.msra.mxu0 0.0
    %646 = vmatpush.msra.mxu0 0.0
    %647 = vmatpush.msra.mxu0 0.0
    %648 = vmatpush.msra.mxu0 0.0
    %649 = vmatpush.msra.mxu0 0.0
    %650 = vmatpush.msra.mxu0 0.0
    %651 = vmatpush.msra.mxu0 0.0
    %652 = vmatpush.msra.mxu0 0.0
    %653 = vmatpush.msra.mxu0 0.0
    %654 = vmatpush.msra.mxu0 0.0
    %655 = vmatpush.msra.mxu0 0.0
    %656 = vmatpush.msra.mxu0 0.0
    %657 = vmatpush.msra.mxu0 0.0
    %658 = vmatpush.msra.mxu0 0.0
    %659 = vmatpush.msra.mxu0 %v639
    %660 = vmatmul.f32.gmra.mxu0 %v642
    %v661 = vpop.f32.mrf.mxu0
    %v662 = vadd.f32 0.0, %v661
    %663 = vdwg.mxu0
    %664 = vrot.lane.b32.xlu0 %v91, 40
    %v665 = vpop.permute.xlu0 %664
    %v668 = vsel %vm100, %v637, 0
    %670 = vmatpush.msra.mxu0 0.0
    %671 = vmatpush.msra.mxu0 0.0
    %672 = vmatpush.msra.mxu0 0.0
    %673 = vmatpush.msra.mxu0 0.0
    %674 = vmatpush.msra.mxu0 0.0
    %675 = vmatpush.msra.mxu0 0.0
    %676 = vmatpush.msra.mxu0 0.0
    %677 = vmatpush.msra.mxu0 0.0
    %678 = vmatpush.msra.mxu0 0.0
    %679 = vmatpush.msra.mxu0 0.0
    %680 = vmatpush.msra.mxu0 0.0
    %681 = vmatpush.msra.mxu0 0.0
    %682 = vmatpush.msra.mxu0 0.0
    %683 = vmatpush.msra.mxu0 0.0
    %684 = vmatpush.msra.mxu0 0.0
    %685 = vmatpush.msra.mxu0 %v665
    %686 = vmatmul.f32.gmra.mxu0 %v668
    %v687 = vpop.f32.mrf.mxu0
    %v688 = vadd.f32 0.0, %v687
    %689 = vdwg.mxu0
    %v690 = vpack.c.bf16 %v688, %v662
    %v692 = vsel %vm100, %v690, 0
    %v695 = vsel %vm365, %v96, 0
    %697 = vmatpush.bf16.msra.mxu0 0
    %698 = vmatpush.bf16.msra.mxu0 0
    %699 = vmatpush.bf16.msra.mxu0 0
    %700 = vmatpush.bf16.msra.mxu0 0
    %701 = vmatpush.bf16.msra.mxu0 0
    %702 = vmatpush.bf16.msra.mxu0 0
    %703 = vmatpush.bf16.msra.mxu0 0
    %704 = vmatpush.bf16.msra.mxu0 %v695
    %705 = vmatmul.bf16.gmra.mxu0 %v692
    %v706 = vpop.f32.mrf.mxu0
    %v707 = vadd.f32 0.0, %v706
    %v708 = vpop.f32.mrf.mxu0
    %v709 = vadd.f32 0.0, %v708
    %710 = vdwg.mxu0
    %v711 = vadd.f32 %v556, %v707
    %v712 = vadd.f32 %v557, %v709
    %v713 = vld [vmem:[%s4] sm:$0x1]
    %v715 = vperm.slane %v713, 0
    %v717 = vadd.f32 %v711, %v715
    %v718 = vadd.f32 %v712, %v715
    %v719 = vadd.f32 %v52, %v717
    %v720 = vadd.f32 %v53, %v718
    %v721 = vsel %vm75, %v719, 0.0
    %722 = vadd.xlane.f32.xlu0 %v721
    %v723 = vpop.xlane.xlu0 %722
    %v724 = vsel %vm75, %v720, 0.0
    %725 = vadd.xlane.f32.xlu0 %v724
    %v726 = vpop.xlane.xlu0 %725
    %v727 = vrcp.pop 32.0
    %v728 = vmul.f32 32.0, %v727
    %v729 = vsub.f32 1.0, %v728
    %v730 = vmul.f32 %v727, %v729
    %v731 = vadd.f32 %v727, %v730
    %vm732 = vweird.f32 %v727
    %v733 = vsel %vm732, %v727, %v731
    %v734 = vmul.f32 %v723, %v733
    %v735 = vmul.f32 %v726, %v733
    %v736 = vsub.f32 %v719, %v734
    %v737 = vsub.f32 %v720, %v735
    %v738 = vmul.f32 %v736, %v736
    %v739 = vmul.f32 %v737, %v737
    %v740 = vsel %vm75, %v738, 0.0
    %741 = vadd.xlane.f32.xlu0 %v740
    %v742 = vpop.xlane.xlu0 %741
    %v743 = vsel %vm75, %v739, 0.0
    %744 = vadd.xlane.f32.xlu0 %v743
    %v745 = vpop.xlane.xlu0 %744
    %v746 = vmul.f32 %v742, %v733
    %v747 = vmul.f32 %v745, %v733
    %v748 = vadd.f32 %v746, 1e-05
    %v749 = vadd.f32 %v747, 1e-05
    %v750 = vrsqrt.pop %v748
    %v751 = vmul.f32 %v750, %v748
    %v752 = vmul.f32 %v751, %v750
    %v753 = vmul.f32 0.5, %v752
    %v754 = vsub.f32 1.5, %v753
    %v755 = vmul.f32 %v750, %v754
    %vm756 = vweird.f32 %v748
    %vm757 = vweird.f32 %v750
    %vm758 = vmor %vm756, %vm757
    %v759 = vsel %vm758, %v750, %v755
    %v760 = vrsqrt.pop %v749
    %v761 = vmul.f32 %v760, %v749
    %v762 = vmul.f32 %v761, %v760
    %v763 = vmul.f32 0.5, %v762
    %v764 = vsub.f32 1.5, %v763
    %v765 = vmul.f32 %v760, %v764
    %vm766 = vweird.f32 %v749
    %vm767 = vweird.f32 %v760
    %vm768 = vmor %vm766, %vm767
    %v769 = vsel %vm768, %v760, %v765
    %v770 = vmul.f32 %v736, %v759
    %v771 = vmul.f32 %v737, %v769
    %v772 = vld [vmem:[%s5] sm:$0x1]
    %v774 = vperm.slane %v772, 0
    %v776 = vmul.f32 %v770, %v774
    %v777 = vmul.f32 %v771, %v774
    %v778 = vld [vmem:[%s6] sm:$0x1]
    %v780 = vperm.slane %v778, 0
    %v782 = vadd.f32 %v776, %v780
    %v783 = vadd.f32 %v777, %v780
    %v784 = vpack.c.bf16 %v783, %v782
    %v785 = vld [vmem:[%s7] sm:$0xff]
    %v786 = vld [vmem:[%s7 + $0x8] sm:$0xff]
    %v787 = vld [vmem:[%s7 + $0x10] sm:$0xff]
    %v788 = vld [vmem:[%s7 + $0x18] sm:$0xff]
    %v789 = vld [vmem:[%s7 + $0x20] sm:$0xff]
    %v790 = vld [vmem:[%s7 + $0x28] sm:$0xff]
    %v791 = vld [vmem:[%s7 + $0x30] sm:$0xff]
    %v792 = vld [vmem:[%s7 + $0x38] sm:$0xff]
    %v793 = vld [vmem:[%s7 + $0x40] sm:$0xff]
    %v794 = vld [vmem:[%s7 + $0x48] sm:$0xff]
    %v795 = vld [vmem:[%s7 + $0x50] sm:$0xff]
    %v796 = vld [vmem:[%s7 + $0x58] sm:$0xff]
    %v797 = vld [vmem:[%s7 + $0x60] sm:$0xff]
    %v798 = vld [vmem:[%s7 + $0x68] sm:$0xff]
    %v799 = vld [vmem:[%s7 + $0x70] sm:$0xff]
    %v800 = vld [vmem:[%s7 + $0x78] sm:$0xff]
    %v801 = vld [vmem:[%s7 + $0x80] sm:$0xff]
    %v802 = vld [vmem:[%s7 + $0x88] sm:$0xff]
    %v803 = vld [vmem:[%s7 + $0x90] sm:$0xff]
    %v804 = vld [vmem:[%s7 + $0x98] sm:$0xff]
    %v805 = vld [vmem:[%s7 + $0xa0] sm:$0xff]
    %v806 = vld [vmem:[%s7 + $0xa8] sm:$0xff]
    %v807 = vld [vmem:[%s7 + $0xb0] sm:$0xff]
    %v808 = vld [vmem:[%s7 + $0xb8] sm:$0xff]
    %v809 = vld [vmem:[%s7 + $0xc0] sm:$0xff]
    %v810 = vld [vmem:[%s7 + $0xc8] sm:$0xff]
    %v811 = vld [vmem:[%s7 + $0xd0] sm:$0xff]
    %v812 = vld [vmem:[%s7 + $0xd8] sm:$0xff]
    %v813 = vld [vmem:[%s7 + $0xe0] sm:$0xff]
    %v814 = vld [vmem:[%s7 + $0xe8] sm:$0xff]
    %v815 = vld [vmem:[%s7 + $0xf0] sm:$0xff]
    %v816 = vld [vmem:[%s7 + $0xf8] sm:$0xff]
    %v817 = vld [vmem:[%s8] sm:$0xff]
    %v818 = vld [vmem:[%s8 + $0x8] sm:$0xff]
    %v821 = vperm.slane %v817, 0
    %v822 = vperm.slane %v817, 1
    %v823 = vperm.slane %v817, 2
    %v824 = vperm.slane %v817, 3
    %v825 = vperm.slane %v817, 4
    %v826 = vperm.slane %v817, 5
    %v827 = vperm.slane %v817, 6
    %v828 = vperm.slane %v817, 7
    %v829 = vperm.slane %v818, 0
    %v830 = vperm.slane %v818, 1
    %v831 = vperm.slane %v818, 2
    %v832 = vperm.slane %v818, 3
    %v833 = vperm.slane %v818, 4
    %v834 = vperm.slane %v818, 5
    %v835 = vperm.slane %v818, 6
    %v836 = vperm.slane %v818, 7
    %v885 = vunpack.c.l.b16 %v785
    %v886 = vunpack.c.h.b16 %v785
    %v887 = vunpack.c.l.b16 %v786
    %v888 = vunpack.c.h.b16 %v786
    %v889 = vunpack.c.l.b16 %v787
    %v890 = vunpack.c.h.b16 %v787
    %v891 = vunpack.c.l.b16 %v788
    %v892 = vunpack.c.h.b16 %v788
    %v893 = vunpack.c.l.b16 %v789
    %v894 = vunpack.c.h.b16 %v789
    %v895 = vunpack.c.l.b16 %v790
    %v896 = vunpack.c.h.b16 %v790
    %v897 = vunpack.c.l.b16 %v791
    %v898 = vunpack.c.h.b16 %v791
    %v899 = vunpack.c.l.b16 %v792
    %v900 = vunpack.c.h.b16 %v792
    %v901 = vunpack.c.l.b16 %v793
    %v902 = vunpack.c.h.b16 %v793
    %v903 = vunpack.c.l.b16 %v794
    %v904 = vunpack.c.h.b16 %v794
    %v905 = vunpack.c.l.b16 %v795
    %v906 = vunpack.c.h.b16 %v795
    %v907 = vunpack.c.l.b16 %v796
    %v908 = vunpack.c.h.b16 %v796
    %v909 = vunpack.c.l.b16 %v797
    %v910 = vunpack.c.h.b16 %v797
    %v911 = vunpack.c.l.b16 %v798
    %v912 = vunpack.c.h.b16 %v798
    %v913 = vunpack.c.l.b16 %v799
    %v914 = vunpack.c.h.b16 %v799
    %v915 = vunpack.c.l.b16 %v800
    %v916 = vunpack.c.h.b16 %v800
    %v917 = vunpack.c.l.b16 %v801
    %v918 = vunpack.c.h.b16 %v801
    %v919 = vunpack.c.l.b16 %v802
    %v920 = vunpack.c.h.b16 %v802
    %v921 = vunpack.c.l.b16 %v803
    %v922 = vunpack.c.h.b16 %v803
    %v923 = vunpack.c.l.b16 %v804
    %v924 = vunpack.c.h.b16 %v804
    %v925 = vunpack.c.l.b16 %v805
    %v926 = vunpack.c.h.b16 %v805
    %v927 = vunpack.c.l.b16 %v806
    %v928 = vunpack.c.h.b16 %v806
    %v929 = vunpack.c.l.b16 %v807
    %v930 = vunpack.c.h.b16 %v807
    %v931 = vunpack.c.l.b16 %v808
    %v932 = vunpack.c.h.b16 %v808
    %v933 = vunpack.c.l.b16 %v809
    %v934 = vunpack.c.h.b16 %v809
    %v935 = vunpack.c.l.b16 %v810
    %v936 = vunpack.c.h.b16 %v810
    %v937 = vunpack.c.l.b16 %v811
    %v938 = vunpack.c.h.b16 %v811
    %v939 = vunpack.c.l.b16 %v812
    %v940 = vunpack.c.h.b16 %v812
    %v941 = vunpack.c.l.b16 %v813
    %v942 = vunpack.c.h.b16 %v813
    %v943 = vunpack.c.l.b16 %v814
    %v944 = vunpack.c.h.b16 %v814
    %v945 = vunpack.c.l.b16 %v815
    %v946 = vunpack.c.h.b16 %v815
    %v947 = vunpack.c.l.b16 %v816
    %v948 = vunpack.c.h.b16 %v816
    %v949 = vpack.c.b16 %v901, %v885
    %v950 = vpack.c.b16 %v902, %v886
    %v951 = vpack.c.b16 %v903, %v887
    %v952 = vpack.c.b16 %v904, %v888
    %v953 = vpack.c.b16 %v905, %v889
    %v954 = vpack.c.b16 %v906, %v890
    %v955 = vpack.c.b16 %v907, %v891
    %v956 = vpack.c.b16 %v908, %v892
    %v957 = vpack.c.b16 %v909, %v893
    %v958 = vpack.c.b16 %v910, %v894
    %v959 = vpack.c.b16 %v911, %v895
    %v960 = vpack.c.b16 %v912, %v896
    %v961 = vpack.c.b16 %v913, %v897
    %v962 = vpack.c.b16 %v914, %v898
    %v963 = vpack.c.b16 %v915, %v899
    %v964 = vpack.c.b16 %v916, %v900
    %v965 = vpack.c.b16 %v933, %v917
    %v966 = vpack.c.b16 %v934, %v918
    %v967 = vpack.c.b16 %v935, %v919
    %v968 = vpack.c.b16 %v936, %v920
    %v969 = vpack.c.b16 %v937, %v921
    %v970 = vpack.c.b16 %v938, %v922
    %v971 = vpack.c.b16 %v939, %v923
    %v972 = vpack.c.b16 %v940, %v924
    %v973 = vpack.c.b16 %v941, %v925
    %v974 = vpack.c.b16 %v942, %v926
    %v975 = vpack.c.b16 %v943, %v927
    %v976 = vpack.c.b16 %v944, %v928
    %v977 = vpack.c.b16 %v945, %v929
    %v978 = vpack.c.b16 %v946, %v930
    %v979 = vpack.c.b16 %v947, %v931
    %v980 = vpack.c.b16 %v948, %v932
    %v1014 = vsel %vm75, %v784, 0
    %1016 = vmatpush.bf16.msra.mxu0 0
    %1017 = vmatpush.bf16.msra.mxu0 0
    %1018 = vmatpush.bf16.msra.mxu0 0
    %1019 = vmatpush.bf16.msra.mxu0 0
    %1020 = vmatpush.bf16.msra.mxu0 0
    %1021 = vmatpush.bf16.msra.mxu0 0
    %1022 = vmatpush.bf16.msra.mxu0 %v965
    %1023 = vmatpush.bf16.msra.mxu0 %v949
    %1024 = vmatmul.bf16.gmra.mxu0 %v1014
    %v1025 = vpop.f32.mrf.mxu0
    %v1026 = vadd.f32 %v821, %v1025
    %v1027 = vpop.f32.mrf.mxu0
    %v1028 = vadd.f32 %v821, %v1027
    %1029 = vdwg.mxu0
    %1030 = vmatpush.bf16.msra.mxu0 0
    %1031 = vmatpush.bf16.msra.mxu0 0
    %1032 = vmatpush.bf16.msra.mxu0 0
    %1033 = vmatpush.bf16.msra.mxu0 0
    %1034 = vmatpush.bf16.msra.mxu0 0
    %1035 = vmatpush.bf16.msra.mxu0 0
    %1036 = vmatpush.bf16.msra.mxu0 %v966
    %1037 = vmatpush.bf16.msra.mxu0 %v950
    %1038 = vmatmul.bf16.gmra.mxu0 %v1014
    %v1039 = vpop.f32.mrf.mxu0
    %v1040 = vadd.f32 %v822, %v1039
    %v1041 = vpop.f32.mrf.mxu0
    %v1042 = vadd.f32 %v822, %v1041
    %1043 = vdwg.mxu0
    %1044 = vmatpush.bf16.msra.mxu0 0
    %1045 = vmatpush.bf16.msra.mxu0 0
    %1046 = vmatpush.bf16.msra.mxu0 0
    %1047 = vmatpush.bf16.msra.mxu0 0
    %1048 = vmatpush.bf16.msra.mxu0 0
    %1049 = vmatpush.bf16.msra.mxu0 0
    %1050 = vmatpush.bf16.msra.mxu0 %v967
    %1051 = vmatpush.bf16.msra.mxu0 %v951
    %1052 = vmatmul.bf16.gmra.mxu0 %v1014
    %v1053 = vpop.f32.mrf.mxu0
    %v1054 = vadd.f32 %v823, %v1053
    %v1055 = vpop.f32.mrf.mxu0
    %v1056 = vadd.f32 %v823, %v1055
    %1057 = vdwg.mxu0
    %1058 = vmatpush.bf16.msra.mxu0 0
    %1059 = vmatpush.bf16.msra.mxu0 0
    %1060 = vmatpush.bf16.msra.mxu0 0
    %1061 = vmatpush.bf16.msra.mxu0 0
    %1062 = vmatpush.bf16.msra.mxu0 0
    %1063 = vmatpush.bf16.msra.mxu0 0
    %1064 = vmatpush.bf16.msra.mxu0 %v968
    %1065 = vmatpush.bf16.msra.mxu0 %v952
    %1066 = vmatmul.bf16.gmra.mxu0 %v1014
    %v1067 = vpop.f32.mrf.mxu0
    %v1068 = vadd.f32 %v824, %v1067
    %v1069 = vpop.f32.mrf.mxu0
    %v1070 = vadd.f32 %v824, %v1069
    %1071 = vdwg.mxu0
    %1072 = vmatpush.bf16.msra.mxu0 0
    %1073 = vmatpush.bf16.msra.mxu0 0
    %1074 = vmatpush.bf16.msra.mxu0 0
    %1075 = vmatpush.bf16.msra.mxu0 0
    %1076 = vmatpush.bf16.msra.mxu0 0
    %1077 = vmatpush.bf16.msra.mxu0 0
    %1078 = vmatpush.bf16.msra.mxu0 %v969
    %1079 = vmatpush.bf16.msra.mxu0 %v953
    %1080 = vmatmul.bf16.gmra.mxu0 %v1014
    %v1081 = vpop.f32.mrf.mxu0
    %v1082 = vadd.f32 %v825, %v1081
    %v1083 = vpop.f32.mrf.mxu0
    %v1084 = vadd.f32 %v825, %v1083
    %1085 = vdwg.mxu0
    %1086 = vmatpush.bf16.msra.mxu0 0
    %1087 = vmatpush.bf16.msra.mxu0 0
    %1088 = vmatpush.bf16.msra.mxu0 0
    %1089 = vmatpush.bf16.msra.mxu0 0
    %1090 = vmatpush.bf16.msra.mxu0 0
    %1091 = vmatpush.bf16.msra.mxu0 0
    %1092 = vmatpush.bf16.msra.mxu0 %v970
    %1093 = vmatpush.bf16.msra.mxu0 %v954
    %1094 = vmatmul.bf16.gmra.mxu0 %v1014
    %v1095 = vpop.f32.mrf.mxu0
    %v1096 = vadd.f32 %v826, %v1095
    %v1097 = vpop.f32.mrf.mxu0
    %v1098 = vadd.f32 %v826, %v1097
    %1099 = vdwg.mxu0
    %1100 = vmatpush.bf16.msra.mxu0 0
    %1101 = vmatpush.bf16.msra.mxu0 0
    %1102 = vmatpush.bf16.msra.mxu0 0
    %1103 = vmatpush.bf16.msra.mxu0 0
    %1104 = vmatpush.bf16.msra.mxu0 0
    %1105 = vmatpush.bf16.msra.mxu0 0
    %1106 = vmatpush.bf16.msra.mxu0 %v971
    %1107 = vmatpush.bf16.msra.mxu0 %v955
    %1108 = vmatmul.bf16.gmra.mxu0 %v1014
    %v1109 = vpop.f32.mrf.mxu0
    %v1110 = vadd.f32 %v827, %v1109
    %v1111 = vpop.f32.mrf.mxu0
    %v1112 = vadd.f32 %v827, %v1111
    %1113 = vdwg.mxu0
    %1114 = vmatpush.bf16.msra.mxu0 0
    %1115 = vmatpush.bf16.msra.mxu0 0
    %1116 = vmatpush.bf16.msra.mxu0 0
    %1117 = vmatpush.bf16.msra.mxu0 0
    %1118 = vmatpush.bf16.msra.mxu0 0
    %1119 = vmatpush.bf16.msra.mxu0 0
    %1120 = vmatpush.bf16.msra.mxu0 %v972
    %1121 = vmatpush.bf16.msra.mxu0 %v956
    %1122 = vmatmul.bf16.gmra.mxu0 %v1014
    %v1123 = vpop.f32.mrf.mxu0
    %v1124 = vadd.f32 %v828, %v1123
    %v1125 = vpop.f32.mrf.mxu0
    %v1126 = vadd.f32 %v828, %v1125
    %1127 = vdwg.mxu0
    %1128 = vmatpush.bf16.msra.mxu0 0
    %1129 = vmatpush.bf16.msra.mxu0 0
    %1130 = vmatpush.bf16.msra.mxu0 0
    %1131 = vmatpush.bf16.msra.mxu0 0
    %1132 = vmatpush.bf16.msra.mxu0 0
    %1133 = vmatpush.bf16.msra.mxu0 0
    %1134 = vmatpush.bf16.msra.mxu0 %v973
    %1135 = vmatpush.bf16.msra.mxu0 %v957
    %1136 = vmatmul.bf16.gmra.mxu0 %v1014
    %v1137 = vpop.f32.mrf.mxu0
    %v1138 = vadd.f32 %v829, %v1137
    %v1139 = vpop.f32.mrf.mxu0
    %v1140 = vadd.f32 %v829, %v1139
    %1141 = vdwg.mxu0
    %1142 = vmatpush.bf16.msra.mxu0 0
    %1143 = vmatpush.bf16.msra.mxu0 0
    %1144 = vmatpush.bf16.msra.mxu0 0
    %1145 = vmatpush.bf16.msra.mxu0 0
    %1146 = vmatpush.bf16.msra.mxu0 0
    %1147 = vmatpush.bf16.msra.mxu0 0
    %1148 = vmatpush.bf16.msra.mxu0 %v974
    %1149 = vmatpush.bf16.msra.mxu0 %v958
    %1150 = vmatmul.bf16.gmra.mxu0 %v1014
    %v1151 = vpop.f32.mrf.mxu0
    %v1152 = vadd.f32 %v830, %v1151
    %v1153 = vpop.f32.mrf.mxu0
    %v1154 = vadd.f32 %v830, %v1153
    %1155 = vdwg.mxu0
    %1156 = vmatpush.bf16.msra.mxu0 0
    %1157 = vmatpush.bf16.msra.mxu0 0
    %1158 = vmatpush.bf16.msra.mxu0 0
    %1159 = vmatpush.bf16.msra.mxu0 0
    %1160 = vmatpush.bf16.msra.mxu0 0
    %1161 = vmatpush.bf16.msra.mxu0 0
    %1162 = vmatpush.bf16.msra.mxu0 %v975
    %1163 = vmatpush.bf16.msra.mxu0 %v959
    %1164 = vmatmul.bf16.gmra.mxu0 %v1014
    %v1165 = vpop.f32.mrf.mxu0
    %v1166 = vadd.f32 %v831, %v1165
    %v1167 = vpop.f32.mrf.mxu0
    %v1168 = vadd.f32 %v831, %v1167
    %1169 = vdwg.mxu0
    %1170 = vmatpush.bf16.msra.mxu0 0
    %1171 = vmatpush.bf16.msra.mxu0 0
    %1172 = vmatpush.bf16.msra.mxu0 0
    %1173 = vmatpush.bf16.msra.mxu0 0
    %1174 = vmatpush.bf16.msra.mxu0 0
    %1175 = vmatpush.bf16.msra.mxu0 0
    %1176 = vmatpush.bf16.msra.mxu0 %v976
    %1177 = vmatpush.bf16.msra.mxu0 %v960
    %1178 = vmatmul.bf16.gmra.mxu0 %v1014
    %v1179 = vpop.f32.mrf.mxu0
    %v1180 = vadd.f32 %v832, %v1179
    %v1181 = vpop.f32.mrf.mxu0
    %v1182 = vadd.f32 %v832, %v1181
    %1183 = vdwg.mxu0
    %1184 = vmatpush.bf16.msra.mxu0 0
    %1185 = vmatpush.bf16.msra.mxu0 0
    %1186 = vmatpush.bf16.msra.mxu0 0
    %1187 = vmatpush.bf16.msra.mxu0 0
    %1188 = vmatpush.bf16.msra.mxu0 0
    %1189 = vmatpush.bf16.msra.mxu0 0
    %1190 = vmatpush.bf16.msra.mxu0 %v977
    %1191 = vmatpush.bf16.msra.mxu0 %v961
    %1192 = vmatmul.bf16.gmra.mxu0 %v1014
    %v1193 = vpop.f32.mrf.mxu0
    %v1194 = vadd.f32 %v833, %v1193
    %v1195 = vpop.f32.mrf.mxu0
    %v1196 = vadd.f32 %v833, %v1195
    %1197 = vdwg.mxu0
    %1198 = vmatpush.bf16.msra.mxu0 0
    %1199 = vmatpush.bf16.msra.mxu0 0
    %1200 = vmatpush.bf16.msra.mxu0 0
    %1201 = vmatpush.bf16.msra.mxu0 0
    %1202 = vmatpush.bf16.msra.mxu0 0
    %1203 = vmatpush.bf16.msra.mxu0 0
    %1204 = vmatpush.bf16.msra.mxu0 %v978
    %1205 = vmatpush.bf16.msra.mxu0 %v962
    %1206 = vmatmul.bf16.gmra.mxu0 %v1014
    %v1207 = vpop.f32.mrf.mxu0
    %v1208 = vadd.f32 %v834, %v1207
    %v1209 = vpop.f32.mrf.mxu0
    %v1210 = vadd.f32 %v834, %v1209
    %1211 = vdwg.mxu0
    %1212 = vmatpush.bf16.msra.mxu0 0
    %1213 = vmatpush.bf16.msra.mxu0 0
    %1214 = vmatpush.bf16.msra.mxu0 0
    %1215 = vmatpush.bf16.msra.mxu0 0
    %1216 = vmatpush.bf16.msra.mxu0 0
    %1217 = vmatpush.bf16.msra.mxu0 0
    %1218 = vmatpush.bf16.msra.mxu0 %v979
    %1219 = vmatpush.bf16.msra.mxu0 %v963
    %1220 = vmatmul.bf16.gmra.mxu0 %v1014
    %v1221 = vpop.f32.mrf.mxu0
    %v1222 = vadd.f32 %v835, %v1221
    %v1223 = vpop.f32.mrf.mxu0
    %v1224 = vadd.f32 %v835, %v1223
    %1225 = vdwg.mxu0
    %1226 = vmatpush.bf16.msra.mxu0 0
    %1227 = vmatpush.bf16.msra.mxu0 0
    %1228 = vmatpush.bf16.msra.mxu0 0
    %1229 = vmatpush.bf16.msra.mxu0 0
    %1230 = vmatpush.bf16.msra.mxu0 0
    %1231 = vmatpush.bf16.msra.mxu0 0
    %1232 = vmatpush.bf16.msra.mxu0 %v980
    %1233 = vmatpush.bf16.msra.mxu0 %v964
    %1234 = vmatmul.bf16.gmra.mxu0 %v1014
    %v1235 = vpop.f32.mrf.mxu0
    %v1236 = vadd.f32 %v836, %v1235
    %v1237 = vpop.f32.mrf.mxu0
    %v1238 = vadd.f32 %v836, %v1237
    %1239 = vdwg.mxu0
    %v1240 = vmax.f32 %v1026, 0.0
    %v1241 = vmax.f32 %v1040, 0.0
    %v1242 = vmax.f32 %v1054, 0.0
    %v1243 = vmax.f32 %v1068, 0.0
    %v1244 = vmax.f32 %v1082, 0.0
    %v1245 = vmax.f32 %v1096, 0.0
    %v1246 = vmax.f32 %v1110, 0.0
    %v1247 = vmax.f32 %v1124, 0.0
    %v1248 = vmax.f32 %v1138, 0.0
    %v1249 = vmax.f32 %v1152, 0.0
    %v1250 = vmax.f32 %v1166, 0.0
    %v1251 = vmax.f32 %v1180, 0.0
    %v1252 = vmax.f32 %v1194, 0.0
    %v1253 = vmax.f32 %v1208, 0.0
    %v1254 = vmax.f32 %v1222, 0.0
    %v1255 = vmax.f32 %v1236, 0.0
    %v1256 = vmax.f32 %v1028, 0.0
    %v1257 = vmax.f32 %v1042, 0.0
    %v1258 = vmax.f32 %v1056, 0.0
    %v1259 = vmax.f32 %v1070, 0.0
    %v1260 = vmax.f32 %v1084, 0.0
    %v1261 = vmax.f32 %v1098, 0.0
    %v1262 = vmax.f32 %v1112, 0.0
    %v1263 = vmax.f32 %v1126, 0.0
    %v1264 = vmax.f32 %v1140, 0.0
    %v1265 = vmax.f32 %v1154, 0.0
    %v1266 = vmax.f32 %v1168, 0.0
    %v1267 = vmax.f32 %v1182, 0.0
    %v1268 = vmax.f32 %v1196, 0.0
    %v1269 = vmax.f32 %v1210, 0.0
    %v1270 = vmax.f32 %v1224, 0.0
    %v1271 = vmax.f32 %v1238, 0.0
    %v1272 = vpack.c.bf16 %v1256, %v1240
    %v1273 = vpack.c.bf16 %v1257, %v1241
    %v1274 = vpack.c.bf16 %v1258, %v1242
    %v1275 = vpack.c.bf16 %v1259, %v1243
    %v1276 = vpack.c.bf16 %v1260, %v1244
    %v1277 = vpack.c.bf16 %v1261, %v1245
    %v1278 = vpack.c.bf16 %v1262, %v1246
    %v1279 = vpack.c.bf16 %v1263, %v1247
    %v1280 = vpack.c.bf16 %v1264, %v1248
    %v1281 = vpack.c.bf16 %v1265, %v1249
    %v1282 = vpack.c.bf16 %v1266, %v1250
    %v1283 = vpack.c.bf16 %v1267, %v1251
    %v1284 = vpack.c.bf16 %v1268, %v1252
    %v1285 = vpack.c.bf16 %v1269, %v1253
    %v1286 = vpack.c.bf16 %v1270, %v1254
    %v1287 = vpack.c.bf16 %v1271, %v1255
    %v1288 = vld [vmem:[%s9] sm:$0xf]
    %v1289 = vld [vmem:[%s9 + $0x4] sm:$0xf]
    %v1290 = vld [vmem:[%s9 + $0x8] sm:$0xf]
    %v1291 = vld [vmem:[%s9 + $0xc] sm:$0xf]
    %v1292 = vld [vmem:[%s9 + $0x10] sm:$0xf]
    %v1293 = vld [vmem:[%s9 + $0x14] sm:$0xf]
    %v1294 = vld [vmem:[%s9 + $0x18] sm:$0xf]
    %v1295 = vld [vmem:[%s9 + $0x1c] sm:$0xf]
    %v1296 = vld [vmem:[%s9 + $0x20] sm:$0xf]
    %v1297 = vld [vmem:[%s9 + $0x24] sm:$0xf]
    %v1298 = vld [vmem:[%s9 + $0x28] sm:$0xf]
    %v1299 = vld [vmem:[%s9 + $0x2c] sm:$0xf]
    %v1300 = vld [vmem:[%s9 + $0x30] sm:$0xf]
    %v1301 = vld [vmem:[%s9 + $0x34] sm:$0xf]
    %v1302 = vld [vmem:[%s9 + $0x38] sm:$0xf]
    %v1303 = vld [vmem:[%s9 + $0x3c] sm:$0xf]
    %v1304 = vld [vmem:[%s9 + $0x40] sm:$0xf]
    %v1305 = vld [vmem:[%s9 + $0x44] sm:$0xf]
    %v1306 = vld [vmem:[%s9 + $0x48] sm:$0xf]
    %v1307 = vld [vmem:[%s9 + $0x4c] sm:$0xf]
    %v1308 = vld [vmem:[%s9 + $0x50] sm:$0xf]
    %v1309 = vld [vmem:[%s9 + $0x54] sm:$0xf]
    %v1310 = vld [vmem:[%s9 + $0x58] sm:$0xf]
    %v1311 = vld [vmem:[%s9 + $0x5c] sm:$0xf]
    %v1312 = vld [vmem:[%s9 + $0x60] sm:$0xf]
    %v1313 = vld [vmem:[%s9 + $0x64] sm:$0xf]
    %v1314 = vld [vmem:[%s9 + $0x68] sm:$0xf]
    %v1315 = vld [vmem:[%s9 + $0x6c] sm:$0xf]
    %v1316 = vld [vmem:[%s9 + $0x70] sm:$0xf]
    %v1317 = vld [vmem:[%s9 + $0x74] sm:$0xf]
    %v1318 = vld [vmem:[%s9 + $0x78] sm:$0xf]
    %v1319 = vld [vmem:[%s9 + $0x7c] sm:$0xf]
    %v1320 = vld [vmem:[%s9 + $0x80] sm:$0xf]
    %v1321 = vld [vmem:[%s9 + $0x84] sm:$0xf]
    %v1322 = vld [vmem:[%s9 + $0x88] sm:$0xf]
    %v1323 = vld [vmem:[%s9 + $0x8c] sm:$0xf]
    %v1324 = vld [vmem:[%s9 + $0x90] sm:$0xf]
    %v1325 = vld [vmem:[%s9 + $0x94] sm:$0xf]
    %v1326 = vld [vmem:[%s9 + $0x98] sm:$0xf]
    %v1327 = vld [vmem:[%s9 + $0x9c] sm:$0xf]
    %v1328 = vld [vmem:[%s9 + $0xa0] sm:$0xf]
    %v1329 = vld [vmem:[%s9 + $0xa4] sm:$0xf]
    %v1330 = vld [vmem:[%s9 + $0xa8] sm:$0xf]
    %v1331 = vld [vmem:[%s9 + $0xac] sm:$0xf]
    %v1332 = vld [vmem:[%s9 + $0xb0] sm:$0xf]
    %v1333 = vld [vmem:[%s9 + $0xb4] sm:$0xf]
    %v1334 = vld [vmem:[%s9 + $0xb8] sm:$0xf]
    %v1335 = vld [vmem:[%s9 + $0xbc] sm:$0xf]
    %v1336 = vld [vmem:[%s9 + $0xc0] sm:$0xf]
    %v1337 = vld [vmem:[%s9 + $0xc4] sm:$0xf]
    %v1338 = vld [vmem:[%s9 + $0xc8] sm:$0xf]
    %v1339 = vld [vmem:[%s9 + $0xcc] sm:$0xf]
    %v1340 = vld [vmem:[%s9 + $0xd0] sm:$0xf]
    %v1341 = vld [vmem:[%s9 + $0xd4] sm:$0xf]
    %v1342 = vld [vmem:[%s9 + $0xd8] sm:$0xf]
    %v1343 = vld [vmem:[%s9 + $0xdc] sm:$0xf]
    %v1344 = vld [vmem:[%s9 + $0xe0] sm:$0xf]
    %v1345 = vld [vmem:[%s9 + $0xe4] sm:$0xf]
    %v1346 = vld [vmem:[%s9 + $0xe8] sm:$0xf]
    %v1347 = vld [vmem:[%s9 + $0xec] sm:$0xf]
    %v1348 = vld [vmem:[%s9 + $0xf0] sm:$0xf]
    %v1349 = vld [vmem:[%s9 + $0xf4] sm:$0xf]
    %v1350 = vld [vmem:[%s9 + $0xf8] sm:$0xf]
    %v1351 = vld [vmem:[%s9 + $0xfc] sm:$0xf]
    %v1352 = vld [vmem:[%s9 + $0x100] sm:$0xf]
    %v1353 = vld [vmem:[%s9 + $0x104] sm:$0xf]
    %v1354 = vld [vmem:[%s9 + $0x108] sm:$0xf]
    %v1355 = vld [vmem:[%s9 + $0x10c] sm:$0xf]
    %v1356 = vld [vmem:[%s9 + $0x110] sm:$0xf]
    %v1357 = vld [vmem:[%s9 + $0x114] sm:$0xf]
    %v1358 = vld [vmem:[%s9 + $0x118] sm:$0xf]
    %v1359 = vld [vmem:[%s9 + $0x11c] sm:$0xf]
    %v1360 = vld [vmem:[%s9 + $0x120] sm:$0xf]
    %v1361 = vld [vmem:[%s9 + $0x124] sm:$0xf]
    %v1362 = vld [vmem:[%s9 + $0x128] sm:$0xf]
    %v1363 = vld [vmem:[%s9 + $0x12c] sm:$0xf]
    %v1364 = vld [vmem:[%s9 + $0x130] sm:$0xf]
    %v1365 = vld [vmem:[%s9 + $0x134] sm:$0xf]
    %v1366 = vld [vmem:[%s9 + $0x138] sm:$0xf]
    %v1367 = vld [vmem:[%s9 + $0x13c] sm:$0xf]
    %v1368 = vld [vmem:[%s9 + $0x140] sm:$0xf]
    %v1369 = vld [vmem:[%s9 + $0x144] sm:$0xf]
    %v1370 = vld [vmem:[%s9 + $0x148] sm:$0xf]
    %v1371 = vld [vmem:[%s9 + $0x14c] sm:$0xf]
    %v1372 = vld [vmem:[%s9 + $0x150] sm:$0xf]
    %v1373 = vld [vmem:[%s9 + $0x154] sm:$0xf]
    %v1374 = vld [vmem:[%s9 + $0x158] sm:$0xf]
    %v1375 = vld [vmem:[%s9 + $0x15c] sm:$0xf]
    %v1376 = vld [vmem:[%s9 + $0x160] sm:$0xf]
    %v1377 = vld [vmem:[%s9 + $0x164] sm:$0xf]
    %v1378 = vld [vmem:[%s9 + $0x168] sm:$0xf]
    %v1379 = vld [vmem:[%s9 + $0x16c] sm:$0xf]
    %v1380 = vld [vmem:[%s9 + $0x170] sm:$0xf]
    %v1381 = vld [vmem:[%s9 + $0x174] sm:$0xf]
    %v1382 = vld [vmem:[%s9 + $0x178] sm:$0xf]
    %v1383 = vld [vmem:[%s9 + $0x17c] sm:$0xf]
    %v1384 = vld [vmem:[%s9 + $0x180] sm:$0xf]
    %v1385 = vld [vmem:[%s9 + $0x184] sm:$0xf]
    %v1386 = vld [vmem:[%s9 + $0x188] sm:$0xf]
    %v1387 = vld [vmem:[%s9 + $0x18c] sm:$0xf]
    %v1388 = vld [vmem:[%s9 + $0x190] sm:$0xf]
    %v1389 = vld [vmem:[%s9 + $0x194] sm:$0xf]
    %v1390 = vld [vmem:[%s9 + $0x198] sm:$0xf]
    %v1391 = vld [vmem:[%s9 + $0x19c] sm:$0xf]
    %v1392 = vld [vmem:[%s9 + $0x1a0] sm:$0xf]
    %v1393 = vld [vmem:[%s9 + $0x1a4] sm:$0xf]
    %v1394 = vld [vmem:[%s9 + $0x1a8] sm:$0xf]
    %v1395 = vld [vmem:[%s9 + $0x1ac] sm:$0xf]
    %v1396 = vld [vmem:[%s9 + $0x1b0] sm:$0xf]
    %v1397 = vld [vmem:[%s9 + $0x1b4] sm:$0xf]
    %v1398 = vld [vmem:[%s9 + $0x1b8] sm:$0xf]
    %v1399 = vld [vmem:[%s9 + $0x1bc] sm:$0xf]
    %v1400 = vld [vmem:[%s9 + $0x1c0] sm:$0xf]
    %v1401 = vld [vmem:[%s9 + $0x1c4] sm:$0xf]
    %v1402 = vld [vmem:[%s9 + $0x1c8] sm:$0xf]
    %v1403 = vld [vmem:[%s9 + $0x1cc] sm:$0xf]
    %v1404 = vld [vmem:[%s9 + $0x1d0] sm:$0xf]
    %v1405 = vld [vmem:[%s9 + $0x1d4] sm:$0xf]
    %v1406 = vld [vmem:[%s9 + $0x1d8] sm:$0xf]
    %v1407 = vld [vmem:[%s9 + $0x1dc] sm:$0xf]
    %v1408 = vld [vmem:[%s9 + $0x1e0] sm:$0xf]
    %v1409 = vld [vmem:[%s9 + $0x1e4] sm:$0xf]
    %v1410 = vld [vmem:[%s9 + $0x1e8] sm:$0xf]
    %v1411 = vld [vmem:[%s9 + $0x1ec] sm:$0xf]
    %v1412 = vld [vmem:[%s9 + $0x1f0] sm:$0xf]
    %v1413 = vld [vmem:[%s9 + $0x1f4] sm:$0xf]
    %v1414 = vld [vmem:[%s9 + $0x1f8] sm:$0xf]
    %v1415 = vld [vmem:[%s9 + $0x1fc] sm:$0xf]
    %v1416 = vld [vmem:[%s9 + $0x200] sm:$0xf]
    %v1417 = vld [vmem:[%s9 + $0x204] sm:$0xf]
    %v1418 = vld [vmem:[%s9 + $0x208] sm:$0xf]
    %v1419 = vld [vmem:[%s9 + $0x20c] sm:$0xf]
    %v1420 = vld [vmem:[%s9 + $0x210] sm:$0xf]
    %v1421 = vld [vmem:[%s9 + $0x214] sm:$0xf]
    %v1422 = vld [vmem:[%s9 + $0x218] sm:$0xf]
    %v1423 = vld [vmem:[%s9 + $0x21c] sm:$0xf]
    %v1424 = vld [vmem:[%s9 + $0x220] sm:$0xf]
    %v1425 = vld [vmem:[%s9 + $0x224] sm:$0xf]
    %v1426 = vld [vmem:[%s9 + $0x228] sm:$0xf]
    %v1427 = vld [vmem:[%s9 + $0x22c] sm:$0xf]
    %v1428 = vld [vmem:[%s9 + $0x230] sm:$0xf]
    %v1429 = vld [vmem:[%s9 + $0x234] sm:$0xf]
    %v1430 = vld [vmem:[%s9 + $0x238] sm:$0xf]
    %v1431 = vld [vmem:[%s9 + $0x23c] sm:$0xf]
    %v1432 = vld [vmem:[%s9 + $0x240] sm:$0xf]
    %v1433 = vld [vmem:[%s9 + $0x244] sm:$0xf]
    %v1434 = vld [vmem:[%s9 + $0x248] sm:$0xf]
    %v1435 = vld [vmem:[%s9 + $0x24c] sm:$0xf]
    %v1436 = vld [vmem:[%s9 + $0x250] sm:$0xf]
    %v1437 = vld [vmem:[%s9 + $0x254] sm:$0xf]
    %v1438 = vld [vmem:[%s9 + $0x258] sm:$0xf]
    %v1439 = vld [vmem:[%s9 + $0x25c] sm:$0xf]
    %v1440 = vld [vmem:[%s9 + $0x260] sm:$0xf]
    %v1441 = vld [vmem:[%s9 + $0x264] sm:$0xf]
    %v1442 = vld [vmem:[%s9 + $0x268] sm:$0xf]
    %v1443 = vld [vmem:[%s9 + $0x26c] sm:$0xf]
    %v1444 = vld [vmem:[%s9 + $0x270] sm:$0xf]
    %v1445 = vld [vmem:[%s9 + $0x274] sm:$0xf]
    %v1446 = vld [vmem:[%s9 + $0x278] sm:$0xf]
    %v1447 = vld [vmem:[%s9 + $0x27c] sm:$0xf]
    %v1448 = vld [vmem:[%s9 + $0x280] sm:$0xf]
    %v1449 = vld [vmem:[%s9 + $0x284] sm:$0xf]
    %v1450 = vld [vmem:[%s9 + $0x288] sm:$0xf]
    %v1451 = vld [vmem:[%s9 + $0x28c] sm:$0xf]
    %v1452 = vld [vmem:[%s9 + $0x290] sm:$0xf]
    %v1453 = vld [vmem:[%s9 + $0x294] sm:$0xf]
    %v1454 = vld [vmem:[%s9 + $0x298] sm:$0xf]
    %v1455 = vld [vmem:[%s9 + $0x29c] sm:$0xf]
    %v1456 = vld [vmem:[%s9 + $0x2a0] sm:$0xf]
    %v1457 = vld [vmem:[%s9 + $0x2a4] sm:$0xf]
    %v1458 = vld [vmem:[%s9 + $0x2a8] sm:$0xf]
    %v1459 = vld [vmem:[%s9 + $0x2ac] sm:$0xf]
    %v1460 = vld [vmem:[%s9 + $0x2b0] sm:$0xf]
    %v1461 = vld [vmem:[%s9 + $0x2b4] sm:$0xf]
    %v1462 = vld [vmem:[%s9 + $0x2b8] sm:$0xf]
    %v1463 = vld [vmem:[%s9 + $0x2bc] sm:$0xf]
    %v1464 = vld [vmem:[%s9 + $0x2c0] sm:$0xf]
    %v1465 = vld [vmem:[%s9 + $0x2c4] sm:$0xf]
    %v1466 = vld [vmem:[%s9 + $0x2c8] sm:$0xf]
    %v1467 = vld [vmem:[%s9 + $0x2cc] sm:$0xf]
    %v1468 = vld [vmem:[%s9 + $0x2d0] sm:$0xf]
    %v1469 = vld [vmem:[%s9 + $0x2d4] sm:$0xf]
    %v1470 = vld [vmem:[%s9 + $0x2d8] sm:$0xf]
    %v1471 = vld [vmem:[%s9 + $0x2dc] sm:$0xf]
    %v1472 = vld [vmem:[%s9 + $0x2e0] sm:$0xf]
    %v1473 = vld [vmem:[%s9 + $0x2e4] sm:$0xf]
    %v1474 = vld [vmem:[%s9 + $0x2e8] sm:$0xf]
    %v1475 = vld [vmem:[%s9 + $0x2ec] sm:$0xf]
    %v1476 = vld [vmem:[%s9 + $0x2f0] sm:$0xf]
    %v1477 = vld [vmem:[%s9 + $0x2f4] sm:$0xf]
    %v1478 = vld [vmem:[%s9 + $0x2f8] sm:$0xf]
    %v1479 = vld [vmem:[%s9 + $0x2fc] sm:$0xf]
    %v1480 = vld [vmem:[%s9 + $0x300] sm:$0xf]
    %v1481 = vld [vmem:[%s9 + $0x304] sm:$0xf]
    %v1482 = vld [vmem:[%s9 + $0x308] sm:$0xf]
    %v1483 = vld [vmem:[%s9 + $0x30c] sm:$0xf]
    %v1484 = vld [vmem:[%s9 + $0x310] sm:$0xf]
    %v1485 = vld [vmem:[%s9 + $0x314] sm:$0xf]
    %v1486 = vld [vmem:[%s9 + $0x318] sm:$0xf]
    %v1487 = vld [vmem:[%s9 + $0x31c] sm:$0xf]
    %v1488 = vld [vmem:[%s9 + $0x320] sm:$0xf]
    %v1489 = vld [vmem:[%s9 + $0x324] sm:$0xf]
    %v1490 = vld [vmem:[%s9 + $0x328] sm:$0xf]
    %v1491 = vld [vmem:[%s9 + $0x32c] sm:$0xf]
    %v1492 = vld [vmem:[%s9 + $0x330] sm:$0xf]
    %v1493 = vld [vmem:[%s9 + $0x334] sm:$0xf]
    %v1494 = vld [vmem:[%s9 + $0x338] sm:$0xf]
    %v1495 = vld [vmem:[%s9 + $0x33c] sm:$0xf]
    %v1496 = vld [vmem:[%s9 + $0x340] sm:$0xf]
    %v1497 = vld [vmem:[%s9 + $0x344] sm:$0xf]
    %v1498 = vld [vmem:[%s9 + $0x348] sm:$0xf]
    %v1499 = vld [vmem:[%s9 + $0x34c] sm:$0xf]
    %v1500 = vld [vmem:[%s9 + $0x350] sm:$0xf]
    %v1501 = vld [vmem:[%s9 + $0x354] sm:$0xf]
    %v1502 = vld [vmem:[%s9 + $0x358] sm:$0xf]
    %v1503 = vld [vmem:[%s9 + $0x35c] sm:$0xf]
    %v1504 = vld [vmem:[%s9 + $0x360] sm:$0xf]
    %v1505 = vld [vmem:[%s9 + $0x364] sm:$0xf]
    %v1506 = vld [vmem:[%s9 + $0x368] sm:$0xf]
    %v1507 = vld [vmem:[%s9 + $0x36c] sm:$0xf]
    %v1508 = vld [vmem:[%s9 + $0x370] sm:$0xf]
    %v1509 = vld [vmem:[%s9 + $0x374] sm:$0xf]
    %v1510 = vld [vmem:[%s9 + $0x378] sm:$0xf]
    %v1511 = vld [vmem:[%s9 + $0x37c] sm:$0xf]
    %v1512 = vld [vmem:[%s9 + $0x380] sm:$0xf]
    %v1513 = vld [vmem:[%s9 + $0x384] sm:$0xf]
    %v1514 = vld [vmem:[%s9 + $0x388] sm:$0xf]
    %v1515 = vld [vmem:[%s9 + $0x38c] sm:$0xf]
    %v1516 = vld [vmem:[%s9 + $0x390] sm:$0xf]
    %v1517 = vld [vmem:[%s9 + $0x394] sm:$0xf]
    %v1518 = vld [vmem:[%s9 + $0x398] sm:$0xf]
    %v1519 = vld [vmem:[%s9 + $0x39c] sm:$0xf]
    %v1520 = vld [vmem:[%s9 + $0x3a0] sm:$0xf]
    %v1521 = vld [vmem:[%s9 + $0x3a4] sm:$0xf]
    %v1522 = vld [vmem:[%s9 + $0x3a8] sm:$0xf]
    %v1523 = vld [vmem:[%s9 + $0x3ac] sm:$0xf]
    %v1524 = vld [vmem:[%s9 + $0x3b0] sm:$0xf]
    %v1525 = vld [vmem:[%s9 + $0x3b4] sm:$0xf]
    %v1526 = vld [vmem:[%s9 + $0x3b8] sm:$0xf]
    %v1527 = vld [vmem:[%s9 + $0x3bc] sm:$0xf]
    %v1528 = vld [vmem:[%s9 + $0x3c0] sm:$0xf]
    %v1529 = vld [vmem:[%s9 + $0x3c4] sm:$0xf]
    %v1530 = vld [vmem:[%s9 + $0x3c8] sm:$0xf]
    %v1531 = vld [vmem:[%s9 + $0x3cc] sm:$0xf]
    %v1532 = vld [vmem:[%s9 + $0x3d0] sm:$0xf]
    %v1533 = vld [vmem:[%s9 + $0x3d4] sm:$0xf]
    %v1534 = vld [vmem:[%s9 + $0x3d8] sm:$0xf]
    %v1535 = vld [vmem:[%s9 + $0x3dc] sm:$0xf]
    %v1536 = vld [vmem:[%s9 + $0x3e0] sm:$0xf]
    %v1537 = vld [vmem:[%s9 + $0x3e4] sm:$0xf]
    %v1538 = vld [vmem:[%s9 + $0x3e8] sm:$0xf]
    %v1539 = vld [vmem:[%s9 + $0x3ec] sm:$0xf]
    %v1540 = vld [vmem:[%s9 + $0x3f0] sm:$0xf]
    %v1541 = vld [vmem:[%s9 + $0x3f4] sm:$0xf]
    %v1542 = vld [vmem:[%s9 + $0x3f8] sm:$0xf]
    %v1543 = vld [vmem:[%s9 + $0x3fc] sm:$0xf]
    %v1544 = vld [vmem:[%s10] sm:$0x1]
    %v1546 = vperm.slane %v1544, 0
    %v1804 = vunpack.c.l.b16 %v1288
    %v1805 = vunpack.c.l.b16 %v1289
    %v1806 = vunpack.c.l.b16 %v1290
    %v1807 = vunpack.c.l.b16 %v1291
    %v1808 = vunpack.c.l.b16 %v1292
    %v1809 = vunpack.c.l.b16 %v1293
    %v1810 = vunpack.c.l.b16 %v1294
    %v1811 = vunpack.c.l.b16 %v1295
    %v1812 = vunpack.c.l.b16 %v1296
    %v1813 = vunpack.c.l.b16 %v1297
    %v1814 = vunpack.c.l.b16 %v1298
    %v1815 = vunpack.c.l.b16 %v1299
    %v1816 = vunpack.c.l.b16 %v1300
    %v1817 = vunpack.c.l.b16 %v1301
    %v1818 = vunpack.c.l.b16 %v1302
    %v1819 = vunpack.c.l.b16 %v1303
    %v1820 = vunpack.c.l.b16 %v1304
    %v1821 = vunpack.c.l.b16 %v1305
    %v1822 = vunpack.c.l.b16 %v1306
    %v1823 = vunpack.c.l.b16 %v1307
    %v1824 = vunpack.c.l.b16 %v1308
    %v1825 = vunpack.c.l.b16 %v1309
    %v1826 = vunpack.c.l.b16 %v1310
    %v1827 = vunpack.c.l.b16 %v1311
    %v1828 = vunpack.c.l.b16 %v1312
    %v1829 = vunpack.c.l.b16 %v1313
    %v1830 = vunpack.c.l.b16 %v1314
    %v1831 = vunpack.c.l.b16 %v1315
    %v1832 = vunpack.c.l.b16 %v1316
    %v1833 = vunpack.c.l.b16 %v1317
    %v1834 = vunpack.c.l.b16 %v1318
    %v1835 = vunpack.c.l.b16 %v1319
    %v1836 = vunpack.c.l.b16 %v1320
    %v1837 = vunpack.c.l.b16 %v1321
    %v1838 = vunpack.c.l.b16 %v1322
    %v1839 = vunpack.c.l.b16 %v1323
    %v1840 = vunpack.c.l.b16 %v1324
    %v1841 = vunpack.c.l.b16 %v1325
    %v1842 = vunpack.c.l.b16 %v1326
    %v1843 = vunpack.c.l.b16 %v1327
    %v1844 = vunpack.c.l.b16 %v1328
    %v1845 = vunpack.c.l.b16 %v1329
    %v1846 = vunpack.c.l.b16 %v1330
    %v1847 = vunpack.c.l.b16 %v1331
    %v1848 = vunpack.c.l.b16 %v1332
    %v1849 = vunpack.c.l.b16 %v1333
    %v1850 = vunpack.c.l.b16 %v1334
    %v1851 = vunpack.c.l.b16 %v1335
    %v1852 = vunpack.c.l.b16 %v1336
    %v1853 = vunpack.c.l.b16 %v1337
    %v1854 = vunpack.c.l.b16 %v1338
    %v1855 = vunpack.c.l.b16 %v1339
    %v1856 = vunpack.c.l.b16 %v1340
    %v1857 = vunpack.c.l.b16 %v1341
    %v1858 = vunpack.c.l.b16 %v1342
    %v1859 = vunpack.c.l.b16 %v1343
    %v1860 = vunpack.c.l.b16 %v1344
    %v1861 = vunpack.c.l.b16 %v1345
    %v1862 = vunpack.c.l.b16 %v1346
    %v1863 = vunpack.c.l.b16 %v1347
    %v1864 = vunpack.c.l.b16 %v1348
    %v1865 = vunpack.c.l.b16 %v1349
    %v1866 = vunpack.c.l.b16 %v1350
    %v1867 = vunpack.c.l.b16 %v1351
    %v1868 = vunpack.c.l.b16 %v1352
    %v1869 = vunpack.c.l.b16 %v1353
    %v1870 = vunpack.c.l.b16 %v1354
    %v1871 = vunpack.c.l.b16 %v1355
    %v1872 = vunpack.c.l.b16 %v1356
    %v1873 = vunpack.c.l.b16 %v1357
    %v1874 = vunpack.c.l.b16 %v1358
    %v1875 = vunpack.c.l.b16 %v1359
    %v1876 = vunpack.c.l.b16 %v1360
    %v1877 = vunpack.c.l.b16 %v1361
    %v1878 = vunpack.c.l.b16 %v1362
    %v1879 = vunpack.c.l.b16 %v1363
    %v1880 = vunpack.c.l.b16 %v1364
    %v1881 = vunpack.c.l.b16 %v1365
    %v1882 = vunpack.c.l.b16 %v1366
    %v1883 = vunpack.c.l.b16 %v1367
    %v1884 = vunpack.c.l.b16 %v1368
    %v1885 = vunpack.c.l.b16 %v1369
    %v1886 = vunpack.c.l.b16 %v1370
    %v1887 = vunpack.c.l.b16 %v1371
    %v1888 = vunpack.c.l.b16 %v1372
    %v1889 = vunpack.c.l.b16 %v1373
    %v1890 = vunpack.c.l.b16 %v1374
    %v1891 = vunpack.c.l.b16 %v1375
    %v1892 = vunpack.c.l.b16 %v1376
    %v1893 = vunpack.c.l.b16 %v1377
    %v1894 = vunpack.c.l.b16 %v1378
    %v1895 = vunpack.c.l.b16 %v1379
    %v1896 = vunpack.c.l.b16 %v1380
    %v1897 = vunpack.c.l.b16 %v1381
    %v1898 = vunpack.c.l.b16 %v1382
    %v1899 = vunpack.c.l.b16 %v1383
    %v1900 = vunpack.c.l.b16 %v1384
    %v1901 = vunpack.c.l.b16 %v1385
    %v1902 = vunpack.c.l.b16 %v1386
    %v1903 = vunpack.c.l.b16 %v1387
    %v1904 = vunpack.c.l.b16 %v1388
    %v1905 = vunpack.c.l.b16 %v1389
    %v1906 = vunpack.c.l.b16 %v1390
    %v1907 = vunpack.c.l.b16 %v1391
    %v1908 = vunpack.c.l.b16 %v1392
    %v1909 = vunpack.c.l.b16 %v1393
    %v1910 = vunpack.c.l.b16 %v1394
    %v1911 = vunpack.c.l.b16 %v1395
    %v1912 = vunpack.c.l.b16 %v1396
    %v1913 = vunpack.c.l.b16 %v1397
    %v1914 = vunpack.c.l.b16 %v1398
    %v1915 = vunpack.c.l.b16 %v1399
    %v1916 = vunpack.c.l.b16 %v1400
    %v1917 = vunpack.c.l.b16 %v1401
    %v1918 = vunpack.c.l.b16 %v1402
    %v1919 = vunpack.c.l.b16 %v1403
    %v1920 = vunpack.c.l.b16 %v1404
    %v1921 = vunpack.c.l.b16 %v1405
    %v1922 = vunpack.c.l.b16 %v1406
    %v1923 = vunpack.c.l.b16 %v1407
    %v1924 = vunpack.c.l.b16 %v1408
    %v1925 = vunpack.c.l.b16 %v1409
    %v1926 = vunpack.c.l.b16 %v1410
    %v1927 = vunpack.c.l.b16 %v1411
    %v1928 = vunpack.c.l.b16 %v1412
    %v1929 = vunpack.c.l.b16 %v1413
    %v1930 = vunpack.c.l.b16 %v1414
    %v1931 = vunpack.c.l.b16 %v1415
    %v1932 = vunpack.c.l.b16 %v1416
    %v1933 = vunpack.c.l.b16 %v1417
    %v1934 = vunpack.c.l.b16 %v1418
    %v1935 = vunpack.c.l.b16 %v1419
    %v1936 = vunpack.c.l.b16 %v1420
    %v1937 = vunpack.c.l.b16 %v1421
    %v1938 = vunpack.c.l.b16 %v1422
    %v1939 = vunpack.c.l.b16 %v1423
    %v1940 = vunpack.c.l.b16 %v1424
    %v1941 = vunpack.c.l.b16 %v1425
    %v1942 = vunpack.c.l.b16 %v1426
    %v1943 = vunpack.c.l.b16 %v1427
    %v1944 = vunpack.c.l.b16 %v1428
    %v1945 = vunpack.c.l.b16 %v1429
    %v1946 = vunpack.c.l.b16 %v1430
    %v1947 = vunpack.c.l.b16 %v1431
    %v1948 = vunpack.c.l.b16 %v1432
    %v1949 = vunpack.c.l.b16 %v1433
    %v1950 = vunpack.c.l.b16 %v1434
    %v1951 = vunpack.c.l.b16 %v1435
    %v1952 = vunpack.c.l.b16 %v1436
    %v1953 = vunpack.c.l.b16 %v1437
    %v1954 = vunpack.c.l.b16 %v1438
    %v1955 = vunpack.c.l.b16 %v1439
    %v1956 = vunpack.c.l.b16 %v1440
    %v1957 = vunpack.c.l.b16 %v1441
    %v1958 = vunpack.c.l.b16 %v1442
    %v1959 = vunpack.c.l.b16 %v1443
    %v1960 = vunpack.c.l.b16 %v1444
    %v1961 = vunpack.c.l.b16 %v1445
    %v1962 = vunpack.c.l.b16 %v1446
    %v1963 = vunpack.c.l.b16 %v1447
    %v1964 = vunpack.c.l.b16 %v1448
    %v1965 = vunpack.c.l.b16 %v1449
    %v1966 = vunpack.c.l.b16 %v1450
    %v1967 = vunpack.c.l.b16 %v1451
    %v1968 = vunpack.c.l.b16 %v1452
    %v1969 = vunpack.c.l.b16 %v1453
    %v1970 = vunpack.c.l.b16 %v1454
    %v1971 = vunpack.c.l.b16 %v1455
    %v1972 = vunpack.c.l.b16 %v1456
    %v1973 = vunpack.c.l.b16 %v1457
    %v1974 = vunpack.c.l.b16 %v1458
    %v1975 = vunpack.c.l.b16 %v1459
    %v1976 = vunpack.c.l.b16 %v1460
    %v1977 = vunpack.c.l.b16 %v1461
    %v1978 = vunpack.c.l.b16 %v1462
    %v1979 = vunpack.c.l.b16 %v1463
    %v1980 = vunpack.c.l.b16 %v1464
    %v1981 = vunpack.c.l.b16 %v1465
    %v1982 = vunpack.c.l.b16 %v1466
    %v1983 = vunpack.c.l.b16 %v1467
    %v1984 = vunpack.c.l.b16 %v1468
    %v1985 = vunpack.c.l.b16 %v1469
    %v1986 = vunpack.c.l.b16 %v1470
    %v1987 = vunpack.c.l.b16 %v1471
    %v1988 = vunpack.c.l.b16 %v1472
    %v1989 = vunpack.c.l.b16 %v1473
    %v1990 = vunpack.c.l.b16 %v1474
    %v1991 = vunpack.c.l.b16 %v1475
    %v1992 = vunpack.c.l.b16 %v1476
    %v1993 = vunpack.c.l.b16 %v1477
    %v1994 = vunpack.c.l.b16 %v1478
    %v1995 = vunpack.c.l.b16 %v1479
    %v1996 = vunpack.c.l.b16 %v1480
    %v1997 = vunpack.c.l.b16 %v1481
    %v1998 = vunpack.c.l.b16 %v1482
    %v1999 = vunpack.c.l.b16 %v1483
    %v2000 = vunpack.c.l.b16 %v1484
    %v2001 = vunpack.c.l.b16 %v1485
    %v2002 = vunpack.c.l.b16 %v1486
    %v2003 = vunpack.c.l.b16 %v1487
    %v2004 = vunpack.c.l.b16 %v1488
    %v2005 = vunpack.c.l.b16 %v1489
    %v2006 = vunpack.c.l.b16 %v1490
    %v2007 = vunpack.c.l.b16 %v1491
    %v2008 = vunpack.c.l.b16 %v1492
    %v2009 = vunpack.c.l.b16 %v1493
    %v2010 = vunpack.c.l.b16 %v1494
    %v2011 = vunpack.c.l.b16 %v1495
    %v2012 = vunpack.c.l.b16 %v1496
    %v2013 = vunpack.c.l.b16 %v1497
    %v2014 = vunpack.c.l.b16 %v1498
    %v2015 = vunpack.c.l.b16 %v1499
    %v2016 = vunpack.c.l.b16 %v1500
    %v2017 = vunpack.c.l.b16 %v1501
    %v2018 = vunpack.c.l.b16 %v1502
    %v2019 = vunpack.c.l.b16 %v1503
    %v2020 = vunpack.c.l.b16 %v1504
    %v2021 = vunpack.c.l.b16 %v1505
    %v2022 = vunpack.c.l.b16 %v1506
    %v2023 = vunpack.c.l.b16 %v1507
    %v2024 = vunpack.c.l.b16 %v1508
    %v2025 = vunpack.c.l.b16 %v1509
    %v2026 = vunpack.c.l.b16 %v1510
    %v2027 = vunpack.c.l.b16 %v1511
    %v2028 = vunpack.c.l.b16 %v1512
    %v2029 = vunpack.c.l.b16 %v1513
    %v2030 = vunpack.c.l.b16 %v1514
    %v2031 = vunpack.c.l.b16 %v1515
    %v2032 = vunpack.c.l.b16 %v1516
    %v2033 = vunpack.c.l.b16 %v1517
    %v2034 = vunpack.c.l.b16 %v1518
    %v2035 = vunpack.c.l.b16 %v1519
    %v2036 = vunpack.c.l.b16 %v1520
    %v2037 = vunpack.c.l.b16 %v1521
    %v2038 = vunpack.c.l.b16 %v1522
    %v2039 = vunpack.c.l.b16 %v1523
    %v2040 = vunpack.c.l.b16 %v1524
    %v2041 = vunpack.c.l.b16 %v1525
    %v2042 = vunpack.c.l.b16 %v1526
    %v2043 = vunpack.c.l.b16 %v1527
    %v2044 = vunpack.c.l.b16 %v1528
    %v2045 = vunpack.c.l.b16 %v1529
    %v2046 = vunpack.c.l.b16 %v1530
    %v2047 = vunpack.c.l.b16 %v1531
    %v2048 = vunpack.c.l.b16 %v1532
    %v2049 = vunpack.c.l.b16 %v1533
    %v2050 = vunpack.c.l.b16 %v1534
    %v2051 = vunpack.c.l.b16 %v1535
    %v2052 = vunpack.c.l.b16 %v1536
    %v2053 = vunpack.c.l.b16 %v1537
    %v2054 = vunpack.c.l.b16 %v1538
    %v2055 = vunpack.c.l.b16 %v1539
    %v2056 = vunpack.c.l.b16 %v1540
    %v2057 = vunpack.c.l.b16 %v1541
    %v2058 = vunpack.c.l.b16 %v1542
    %v2059 = vunpack.c.l.b16 %v1543
    %v2060 = vpack.c.b16 %v1805, %v1804
    %v2061 = vpack.c.b16 %v1807, %v1806
    %v2062 = vpack.c.b16 %v1809, %v1808
    %v2063 = vpack.c.b16 %v1811, %v1810
    %v2064 = vpack.c.b16 %v1813, %v1812
    %v2065 = vpack.c.b16 %v1815, %v1814
    %v2066 = vpack.c.b16 %v1817, %v1816
    %v2067 = vpack.c.b16 %v1819, %v1818
    %v2068 = vpack.c.b16 %v1821, %v1820
    %v2069 = vpack.c.b16 %v1823, %v1822
    %v2070 = vpack.c.b16 %v1825, %v1824
    %v2071 = vpack.c.b16 %v1827, %v1826
    %v2072 = vpack.c.b16 %v1829, %v1828
    %v2073 = vpack.c.b16 %v1831, %v1830
    %v2074 = vpack.c.b16 %v1833, %v1832
    %v2075 = vpack.c.b16 %v1835, %v1834
    %v2076 = vpack.c.b16 %v1837, %v1836
    %v2077 = vpack.c.b16 %v1839, %v1838
    %v2078 = vpack.c.b16 %v1841, %v1840
    %v2079 = vpack.c.b16 %v1843, %v1842
    %v2080 = vpack.c.b16 %v1845, %v1844
    %v2081 = vpack.c.b16 %v1847, %v1846
    %v2082 = vpack.c.b16 %v1849, %v1848
    %v2083 = vpack.c.b16 %v1851, %v1850
    %v2084 = vpack.c.b16 %v1853, %v1852
    %v2085 = vpack.c.b16 %v1855, %v1854
    %v2086 = vpack.c.b16 %v1857, %v1856
    %v2087 = vpack.c.b16 %v1859, %v1858
    %v2088 = vpack.c.b16 %v1861, %v1860
    %v2089 = vpack.c.b16 %v1863, %v1862
    %v2090 = vpack.c.b16 %v1865, %v1864
    %v2091 = vpack.c.b16 %v1867, %v1866
    %v2092 = vpack.c.b16 %v1869, %v1868
    %v2093 = vpack.c.b16 %v1871, %v1870
    %v2094 = vpack.c.b16 %v1873, %v1872
    %v2095 = vpack.c.b16 %v1875, %v1874
    %v2096 = vpack.c.b16 %v1877, %v1876
    %v2097 = vpack.c.b16 %v1879, %v1878
    %v2098 = vpack.c.b16 %v1881, %v1880
    %v2099 = vpack.c.b16 %v1883, %v1882
    %v2100 = vpack.c.b16 %v1885, %v1884
    %v2101 = vpack.c.b16 %v1887, %v1886
    %v2102 = vpack.c.b16 %v1889, %v1888
    %v2103 = vpack.c.b16 %v1891, %v1890
    %v2104 = vpack.c.b16 %v1893, %v1892
    %v2105 = vpack.c.b16 %v1895, %v1894
    %v2106 = vpack.c.b16 %v1897, %v1896
    %v2107 = vpack.c.b16 %v1899, %v1898
    %v2108 = vpack.c.b16 %v1901, %v1900
    %v2109 = vpack.c.b16 %v1903, %v1902
    %v2110 = vpack.c.b16 %v1905, %v1904
    %v2111 = vpack.c.b16 %v1907, %v1906
    %v2112 = vpack.c.b16 %v1909, %v1908
    %v2113 = vpack.c.b16 %v1911, %v1910
    %v2114 = vpack.c.b16 %v1913, %v1912
    %v2115 = vpack.c.b16 %v1915, %v1914
    %v2116 = vpack.c.b16 %v1917, %v1916
    %v2117 = vpack.c.b16 %v1919, %v1918
    %v2118 = vpack.c.b16 %v1921, %v1920
    %v2119 = vpack.c.b16 %v1923, %v1922
    %v2120 = vpack.c.b16 %v1925, %v1924
    %v2121 = vpack.c.b16 %v1927, %v1926
    %v2122 = vpack.c.b16 %v1929, %v1928
    %v2123 = vpack.c.b16 %v1931, %v1930
    %v2124 = vpack.c.b16 %v1933, %v1932
    %v2125 = vpack.c.b16 %v1935, %v1934
    %v2126 = vpack.c.b16 %v1937, %v1936
    %v2127 = vpack.c.b16 %v1939, %v1938
    %v2128 = vpack.c.b16 %v1941, %v1940
    %v2129 = vpack.c.b16 %v1943, %v1942
    %v2130 = vpack.c.b16 %v1945, %v1944
    %v2131 = vpack.c.b16 %v1947, %v1946
    %v2132 = vpack.c.b16 %v1949, %v1948
    %v2133 = vpack.c.b16 %v1951, %v1950
    %v2134 = vpack.c.b16 %v1953, %v1952
    %v2135 = vpack.c.b16 %v1955, %v1954
    %v2136 = vpack.c.b16 %v1957, %v1956
    %v2137 = vpack.c.b16 %v1959, %v1958
    %v2138 = vpack.c.b16 %v1961, %v1960
    %v2139 = vpack.c.b16 %v1963, %v1962
    %v2140 = vpack.c.b16 %v1965, %v1964
    %v2141 = vpack.c.b16 %v1967, %v1966
    %v2142 = vpack.c.b16 %v1969, %v1968
    %v2143 = vpack.c.b16 %v1971, %v1970
    %v2144 = vpack.c.b16 %v1973, %v1972
    %v2145 = vpack.c.b16 %v1975, %v1974
    %v2146 = vpack.c.b16 %v1977, %v1976
    %v2147 = vpack.c.b16 %v1979, %v1978
    %v2148 = vpack.c.b16 %v1981, %v1980
    %v2149 = vpack.c.b16 %v1983, %v1982
    %v2150 = vpack.c.b16 %v1985, %v1984
    %v2151 = vpack.c.b16 %v1987, %v1986
    %v2152 = vpack.c.b16 %v1989, %v1988
    %v2153 = vpack.c.b16 %v1991, %v1990
    %v2154 = vpack.c.b16 %v1993, %v1992
    %v2155 = vpack.c.b16 %v1995, %v1994
    %v2156 = vpack.c.b16 %v1997, %v1996
    %v2157 = vpack.c.b16 %v1999, %v1998
    %v2158 = vpack.c.b16 %v2001, %v2000
    %v2159 = vpack.c.b16 %v2003, %v2002
    %v2160 = vpack.c.b16 %v2005, %v2004
    %v2161 = vpack.c.b16 %v2007, %v2006
    %v2162 = vpack.c.b16 %v2009, %v2008
    %v2163 = vpack.c.b16 %v2011, %v2010
    %v2164 = vpack.c.b16 %v2013, %v2012
    %v2165 = vpack.c.b16 %v2015, %v2014
    %v2166 = vpack.c.b16 %v2017, %v2016
    %v2167 = vpack.c.b16 %v2019, %v2018
    %v2168 = vpack.c.b16 %v2021, %v2020
    %v2169 = vpack.c.b16 %v2023, %v2022
    %v2170 = vpack.c.b16 %v2025, %v2024
    %v2171 = vpack.c.b16 %v2027, %v2026
    %v2172 = vpack.c.b16 %v2029, %v2028
    %v2173 = vpack.c.b16 %v2031, %v2030
    %v2174 = vpack.c.b16 %v2033, %v2032
    %v2175 = vpack.c.b16 %v2035, %v2034
    %v2176 = vpack.c.b16 %v2037, %v2036
    %v2177 = vpack.c.b16 %v2039, %v2038
    %v2178 = vpack.c.b16 %v2041, %v2040
    %v2179 = vpack.c.b16 %v2043, %v2042
    %v2180 = vpack.c.b16 %v2045, %v2044
    %v2181 = vpack.c.b16 %v2047, %v2046
    %v2182 = vpack.c.b16 %v2049, %v2048
    %v2183 = vpack.c.b16 %v2051, %v2050
    %v2184 = vpack.c.b16 %v2053, %v2052
    %v2185 = vpack.c.b16 %v2055, %v2054
    %v2186 = vpack.c.b16 %v2057, %v2056
    %v2187 = vpack.c.b16 %v2059, %v2058
    %2316 = vmatpush.bf16.msra.mxu0 %v2067
    %2317 = vmatpush.bf16.msra.mxu0 %v2066
    %2318 = vmatpush.bf16.msra.mxu0 %v2065
    %2319 = vmatpush.bf16.msra.mxu0 %v2064
    %2320 = vmatpush.bf16.msra.mxu0 %v2063
    %2321 = vmatpush.bf16.msra.mxu0 %v2062
    %2322 = vmatpush.bf16.msra.mxu0 %v2061
    %2323 = vmatpush.bf16.msra.mxu0 %v2060
    %2324 = vmatmul.bf16.gmra.mxu0 %v1272
    %v2325 = vpop.f32.mrf.mxu0
    %v2326 = vadd.f32 %v1546, %v2325
    %v2327 = vpop.f32.mrf.mxu0
    %v2328 = vadd.f32 %v1546, %v2327
    %2329 = vdwg.mxu0
    %2330 = vmatpush.bf16.msra.mxu0 %v2075
    %2331 = vmatpush.bf16.msra.mxu0 %v2074
    %2332 = vmatpush.bf16.msra.mxu0 %v2073
    %2333 = vmatpush.bf16.msra.mxu0 %v2072
    %2334 = vmatpush.bf16.msra.mxu0 %v2071
    %2335 = vmatpush.bf16.msra.mxu0 %v2070
    %2336 = vmatpush.bf16.msra.mxu0 %v2069
    %2337 = vmatpush.bf16.msra.mxu0 %v2068
    %2338 = vmatmul.bf16.gmra.mxu0 %v1273
    %v2339 = vpop.f32.mrf.mxu0
    %v2340 = vadd.f32 %v2326, %v2339
    %v2341 = vpop.f32.mrf.mxu0
    %v2342 = vadd.f32 %v2328, %v2341
    %2343 = vdwg.mxu0
    %2344 = vmatpush.bf16.msra.mxu0 %v2083
    %2345 = vmatpush.bf16.msra.mxu0 %v2082
    %2346 = vmatpush.bf16.msra.mxu0 %v2081
    %2347 = vmatpush.bf16.msra.mxu0 %v2080
    %2348 = vmatpush.bf16.msra.mxu0 %v2079
    %2349 = vmatpush.bf16.msra.mxu0 %v2078
    %2350 = vmatpush.bf16.msra.mxu0 %v2077
    %2351 = vmatpush.bf16.msra.mxu0 %v2076
    %2352 = vmatmul.bf16.gmra.mxu0 %v1274
    %v2353 = vpop.f32.mrf.mxu0
    %v2354 = vadd.f32 %v2340, %v2353
    %v2355 = vpop.f32.mrf.mxu0
    %v2356 = vadd.f32 %v2342, %v2355
    %2357 = vdwg.mxu0
    %2358 = vmatpush.bf16.msra.mxu0 %v2091
    %2359 = vmatpush.bf16.msra.mxu0 %v2090
    %2360 = vmatpush.bf16.msra.mxu0 %v2089
    %2361 = vmatpush.bf16.msra.mxu0 %v2088
    %2362 = vmatpush.bf16.msra.mxu0 %v2087
    %2363 = vmatpush.bf16.msra.mxu0 %v2086
    %2364 = vmatpush.bf16.msra.mxu0 %v2085
    %2365 = vmatpush.bf16.msra.mxu0 %v2084
    %2366 = vmatmul.bf16.gmra.mxu0 %v1275
    %v2367 = vpop.f32.mrf.mxu0
    %v2368 = vadd.f32 %v2354, %v2367
    %v2369 = vpop.f32.mrf.mxu0
    %v2370 = vadd.f32 %v2356, %v2369
    %2371 = vdwg.mxu0
    %2372 = vmatpush.bf16.msra.mxu0 %v2099
    %2373 = vmatpush.bf16.msra.mxu0 %v2098
    %2374 = vmatpush.bf16.msra.mxu0 %v2097
    %2375 = vmatpush.bf16.msra.mxu0 %v2096
    %2376 = vmatpush.bf16.msra.mxu0 %v2095
    %2377 = vmatpush.bf16.msra.mxu0 %v2094
    %2378 = vmatpush.bf16.msra.mxu0 %v2093
    %2379 = vmatpush.bf16.msra.mxu0 %v2092
    %2380 = vmatmul.bf16.gmra.mxu0 %v1276
    %v2381 = vpop.f32.mrf.mxu0
    %v2382 = vadd.f32 %v2368, %v2381
    %v2383 = vpop.f32.mrf.mxu0
    %v2384 = vadd.f32 %v2370, %v2383
    %2385 = vdwg.mxu0
    %2386 = vmatpush.bf16.msra.mxu0 %v2107
    %2387 = vmatpush.bf16.msra.mxu0 %v2106
    %2388 = vmatpush.bf16.msra.mxu0 %v2105
    %2389 = vmatpush.bf16.msra.mxu0 %v2104
    %2390 = vmatpush.bf16.msra.mxu0 %v2103
    %2391 = vmatpush.bf16.msra.mxu0 %v2102
    %2392 = vmatpush.bf16.msra.mxu0 %v2101
    %2393 = vmatpush.bf16.msra.mxu0 %v2100
    %2394 = vmatmul.bf16.gmra.mxu0 %v1277
    %v2395 = vpop.f32.mrf.mxu0
    %v2396 = vadd.f32 %v2382, %v2395
    %v2397 = vpop.f32.mrf.mxu0
    %v2398 = vadd.f32 %v2384, %v2397
    %2399 = vdwg.mxu0
    %2400 = vmatpush.bf16.msra.mxu0 %v2115
    %2401 = vmatpush.bf16.msra.mxu0 %v2114
    %2402 = vmatpush.bf16.msra.mxu0 %v2113
    %2403 = vmatpush.bf16.msra.mxu0 %v2112
    %2404 = vmatpush.bf16.msra.mxu0 %v2111
    %2405 = vmatpush.bf16.msra.mxu0 %v2110
    %2406 = vmatpush.bf16.msra.mxu0 %v2109
    %2407 = vmatpush.bf16.msra.mxu0 %v2108
    %2408 = vmatmul.bf16.gmra.mxu0 %v1278
    %v2409 = vpop.f32.mrf.mxu0
    %v2410 = vadd.f32 %v2396, %v2409
    %v2411 = vpop.f32.mrf.mxu0
    %v2412 = vadd.f32 %v2398, %v2411
    %2413 = vdwg.mxu0
    %2414 = vmatpush.bf16.msra.mxu0 %v2123
    %2415 = vmatpush.bf16.msra.mxu0 %v2122
    %2416 = vmatpush.bf16.msra.mxu0 %v2121
    %2417 = vmatpush.bf16.msra.mxu0 %v2120
    %2418 = vmatpush.bf16.msra.mxu0 %v2119
    %2419 = vmatpush.bf16.msra.mxu0 %v2118
    %2420 = vmatpush.bf16.msra.mxu0 %v2117
    %2421 = vmatpush.bf16.msra.mxu0 %v2116
    %2422 = vmatmul.bf16.gmra.mxu0 %v1279
    %v2423 = vpop.f32.mrf.mxu0
    %v2424 = vadd.f32 %v2410, %v2423
    %v2425 = vpop.f32.mrf.mxu0
    %v2426 = vadd.f32 %v2412, %v2425
    %2427 = vdwg.mxu0
    %2428 = vmatpush.bf16.msra.mxu0 %v2131
    %2429 = vmatpush.bf16.msra.mxu0 %v2130
    %2430 = vmatpush.bf16.msra.mxu0 %v2129
    %2431 = vmatpush.bf16.msra.mxu0 %v2128
    %2432 = vmatpush.bf16.msra.mxu0 %v2127
    %2433 = vmatpush.bf16.msra.mxu0 %v2126
    %2434 = vmatpush.bf16.msra.mxu0 %v2125
    %2435 = vmatpush.bf16.msra.mxu0 %v2124
    %2436 = vmatmul.bf16.gmra.mxu0 %v1280
    %v2437 = vpop.f32.mrf.mxu0
    %v2438 = vadd.f32 %v2424, %v2437
    %v2439 = vpop.f32.mrf.mxu0
    %v2440 = vadd.f32 %v2426, %v2439
    %2441 = vdwg.mxu0
    %2442 = vmatpush.bf16.msra.mxu0 %v2139
    %2443 = vmatpush.bf16.msra.mxu0 %v2138
    %2444 = vmatpush.bf16.msra.mxu0 %v2137
    %2445 = vmatpush.bf16.msra.mxu0 %v2136
    %2446 = vmatpush.bf16.msra.mxu0 %v2135
    %2447 = vmatpush.bf16.msra.mxu0 %v2134
    %2448 = vmatpush.bf16.msra.mxu0 %v2133
    %2449 = vmatpush.bf16.msra.mxu0 %v2132
    %2450 = vmatmul.bf16.gmra.mxu0 %v1281
    %v2451 = vpop.f32.mrf.mxu0
    %v2452 = vadd.f32 %v2438, %v2451
    %v2453 = vpop.f32.mrf.mxu0
    %v2454 = vadd.f32 %v2440, %v2453
    %2455 = vdwg.mxu0
    %2456 = vmatpush.bf16.msra.mxu0 %v2147
    %2457 = vmatpush.bf16.msra.mxu0 %v2146
    %2458 = vmatpush.bf16.msra.mxu0 %v2145
    %2459 = vmatpush.bf16.msra.mxu0 %v2144
    %2460 = vmatpush.bf16.msra.mxu0 %v2143
    %2461 = vmatpush.bf16.msra.mxu0 %v2142
    %2462 = vmatpush.bf16.msra.mxu0 %v2141
    %2463 = vmatpush.bf16.msra.mxu0 %v2140
    %2464 = vmatmul.bf16.gmra.mxu0 %v1282
    %v2465 = vpop.f32.mrf.mxu0
    %v2466 = vadd.f32 %v2452, %v2465
    %v2467 = vpop.f32.mrf.mxu0
    %v2468 = vadd.f32 %v2454, %v2467
    %2469 = vdwg.mxu0
    %2470 = vmatpush.bf16.msra.mxu0 %v2155
    %2471 = vmatpush.bf16.msra.mxu0 %v2154
    %2472 = vmatpush.bf16.msra.mxu0 %v2153
    %2473 = vmatpush.bf16.msra.mxu0 %v2152
    %2474 = vmatpush.bf16.msra.mxu0 %v2151
    %2475 = vmatpush.bf16.msra.mxu0 %v2150
    %2476 = vmatpush.bf16.msra.mxu0 %v2149
    %2477 = vmatpush.bf16.msra.mxu0 %v2148
    %2478 = vmatmul.bf16.gmra.mxu0 %v1283
    %v2479 = vpop.f32.mrf.mxu0
    %v2480 = vadd.f32 %v2466, %v2479
    %v2481 = vpop.f32.mrf.mxu0
    %v2482 = vadd.f32 %v2468, %v2481
    %2483 = vdwg.mxu0
    %2484 = vmatpush.bf16.msra.mxu0 %v2163
    %2485 = vmatpush.bf16.msra.mxu0 %v2162
    %2486 = vmatpush.bf16.msra.mxu0 %v2161
    %2487 = vmatpush.bf16.msra.mxu0 %v2160
    %2488 = vmatpush.bf16.msra.mxu0 %v2159
    %2489 = vmatpush.bf16.msra.mxu0 %v2158
    %2490 = vmatpush.bf16.msra.mxu0 %v2157
    %2491 = vmatpush.bf16.msra.mxu0 %v2156
    %2492 = vmatmul.bf16.gmra.mxu0 %v1284
    %v2493 = vpop.f32.mrf.mxu0
    %v2494 = vadd.f32 %v2480, %v2493
    %v2495 = vpop.f32.mrf.mxu0
    %v2496 = vadd.f32 %v2482, %v2495
    %2497 = vdwg.mxu0
    %2498 = vmatpush.bf16.msra.mxu0 %v2171
    %2499 = vmatpush.bf16.msra.mxu0 %v2170
    %2500 = vmatpush.bf16.msra.mxu0 %v2169
    %2501 = vmatpush.bf16.msra.mxu0 %v2168
    %2502 = vmatpush.bf16.msra.mxu0 %v2167
    %2503 = vmatpush.bf16.msra.mxu0 %v2166
    %2504 = vmatpush.bf16.msra.mxu0 %v2165
    %2505 = vmatpush.bf16.msra.mxu0 %v2164
    %2506 = vmatmul.bf16.gmra.mxu0 %v1285
    %v2507 = vpop.f32.mrf.mxu0
    %v2508 = vadd.f32 %v2494, %v2507
    %v2509 = vpop.f32.mrf.mxu0
    %v2510 = vadd.f32 %v2496, %v2509
    %2511 = vdwg.mxu0
    %2512 = vmatpush.bf16.msra.mxu0 %v2179
    %2513 = vmatpush.bf16.msra.mxu0 %v2178
    %2514 = vmatpush.bf16.msra.mxu0 %v2177
    %2515 = vmatpush.bf16.msra.mxu0 %v2176
    %2516 = vmatpush.bf16.msra.mxu0 %v2175
    %2517 = vmatpush.bf16.msra.mxu0 %v2174
    %2518 = vmatpush.bf16.msra.mxu0 %v2173
    %2519 = vmatpush.bf16.msra.mxu0 %v2172
    %2520 = vmatmul.bf16.gmra.mxu0 %v1286
    %v2521 = vpop.f32.mrf.mxu0
    %v2522 = vadd.f32 %v2508, %v2521
    %v2523 = vpop.f32.mrf.mxu0
    %v2524 = vadd.f32 %v2510, %v2523
    %2525 = vdwg.mxu0
    %2526 = vmatpush.bf16.msra.mxu0 %v2187
    %2527 = vmatpush.bf16.msra.mxu0 %v2186
    %2528 = vmatpush.bf16.msra.mxu0 %v2185
    %2529 = vmatpush.bf16.msra.mxu0 %v2184
    %2530 = vmatpush.bf16.msra.mxu0 %v2183
    %2531 = vmatpush.bf16.msra.mxu0 %v2182
    %2532 = vmatpush.bf16.msra.mxu0 %v2181
    %2533 = vmatpush.bf16.msra.mxu0 %v2180
    %2534 = vmatmul.bf16.gmra.mxu0 %v1287
    %v2535 = vpop.f32.mrf.mxu0
    %v2536 = vadd.f32 %v2522, %v2535
    %v2537 = vpop.f32.mrf.mxu0
    %v2538 = vadd.f32 %v2524, %v2537
    %2539 = vdwg.mxu0
    %v2540 = vadd.f32 %v782, %v2536
    %v2541 = vadd.f32 %v783, %v2538
    %v2542 = vsel %vm75, %v2540, 0.0
    %2543 = vadd.xlane.f32.xlu0 %v2542
    %v2544 = vpop.xlane.xlu0 %2543
    %v2545 = vsel %vm75, %v2541, 0.0
    %2546 = vadd.xlane.f32.xlu0 %v2545
    %v2547 = vpop.xlane.xlu0 %2546
    %v2548 = vmul.f32 %v2544, %v733
    %v2549 = vmul.f32 %v2547, %v733
    %v2550 = vsub.f32 %v2540, %v2548
    %v2551 = vsub.f32 %v2541, %v2549
    %v2552 = vmul.f32 %v2550, %v2550
    %v2553 = vmul.f32 %v2551, %v2551
    %v2554 = vsel %vm75, %v2552, 0.0
    %2555 = vadd.xlane.f32.xlu0 %v2554
    %v2556 = vpop.xlane.xlu0 %2555
    %v2557 = vsel %vm75, %v2553, 0.0
    %2558 = vadd.xlane.f32.xlu0 %v2557
    %v2559 = vpop.xlane.xlu0 %2558
    %v2560 = vmul.f32 %v2556, %v733
    %v2561 = vmul.f32 %v2559, %v733
    %v2562 = vadd.f32 %v2560, 1e-05
    %v2563 = vadd.f32 %v2561, 1e-05
    %v2564 = vrsqrt.pop %v2562
    %v2565 = vmul.f32 %v2564, %v2562
    %v2566 = vmul.f32 %v2565, %v2564
    %v2567 = vmul.f32 0.5, %v2566
    %v2568 = vsub.f32 1.5, %v2567
    %v2569 = vmul.f32 %v2564, %v2568
    %vm2570 = vweird.f32 %v2562
    %vm2571 = vweird.f32 %v2564
    %vm2572 = vmor %vm2570, %vm2571
    %v2573 = vsel %vm2572, %v2564, %v2569
    %v2574 = vrsqrt.pop %v2563
    %v2575 = vmul.f32 %v2574, %v2563
    %v2576 = vmul.f32 %v2575, %v2574
    %v2577 = vmul.f32 0.5, %v2576
    %v2578 = vsub.f32 1.5, %v2577
    %v2579 = vmul.f32 %v2574, %v2578
    %vm2580 = vweird.f32 %v2563
    %vm2581 = vweird.f32 %v2574
    %vm2582 = vmor %vm2580, %vm2581
    %v2583 = vsel %vm2582, %v2574, %v2579
    %v2584 = vmul.f32 %v2550, %v2573
    %v2585 = vmul.f32 %v2551, %v2583
    %v2586 = vld [vmem:[%s11] sm:$0x1]
    %v2588 = vperm.slane %v2586, 0
    %v2590 = vmul.f32 %v2584, %v2588
    %v2591 = vmul.f32 %v2585, %v2588
    %v2592 = vld [vmem:[%s12] sm:$0x1]
    %v2594 = vperm.slane %v2592, 0
    %v2596 = vadd.f32 %v2590, %v2594
    %v2597 = vadd.f32 %v2591, %v2594
    %v2598 = vpack.c.bf16 %v2597, %v2596
    %s2599 = scalar_lea.vmem %s1, 16
    %v2600 = vld [vmem:[%s2599] sm:$0xf]
    %v2601 = vld [vmem:[%s2599 + $0x4] sm:$0xf]
    %v2602 = vld [vmem:[%s2599 + $0x8] sm:$0xf]
    %v2603 = vld [vmem:[%s2599 + $0xc] sm:$0xf]
    %s2604 = scalar_lea.vmem %s2, 1
    %v2605 = vld [vmem:[%s2604] sm:$0x1]
    %v2607 = vperm.slane %v2605, 0
    %v2613 = vunpack.c.l.b16 %v2600
    %v2614 = vunpack.c.l.b16 %v2601
    %v2615 = vunpack.c.l.b16 %v2602
    %v2616 = vunpack.c.l.b16 %v2603
    %v2617 = vpack.c.b16 %v2614, %v2613
    %v2618 = vpack.c.b16 %v2616, %v2615
    %v2622 = vsel %vm75, %v2598, 0
    %2624 = vmatpush.bf16.msra.mxu0 0
    %2625 = vmatpush.bf16.msra.mxu0 0
    %2626 = vmatpush.bf16.msra.mxu0 0
    %2627 = vmatpush.bf16.msra.mxu0 0
    %2628 = vmatpush.bf16.msra.mxu0 0
    %2629 = vmatpush.bf16.msra.mxu0 0
    %2630 = vmatpush.bf16.msra.mxu0 %v2618
    %2631 = vmatpush.bf16.msra.mxu0 %v2617
    %2632 = vmatmul.bf16.gmra.mxu0 %v2622
    %v2633 = vpop.f32.mrf.mxu0
    %v2634 = vadd.f32 %v2607, %v2633
    %v2635 = vpop.f32.mrf.mxu0
    %v2636 = vadd.f32 %v2607, %v2635
    %2637 = vdwg.mxu0
    %s2638 = scalar_lea.vmem %s3, 16
    %v2639 = vld [vmem:[%s2638] sm:$0xf]
    %v2640 = vld [vmem:[%s2638 + $0x4] sm:$0xf]
    %v2641 = vld [vmem:[%s2638 + $0x8] sm:$0xf]
    %v2642 = vld [vmem:[%s2638 + $0xc] sm:$0xf]
    %2644 = vrot.lane.b32.xlu0 %v2634, 96
    %v2645 = vpop.permute.xlu0 %2644
    %v2646 = vsel %vm100, %v2634, 0
    %v2648 = vsel %vm100, %v2645, 0
    %2650 = vmatpush.xpose.msra.mxu0 0.0
    %2651 = vmatpush.xpose.msra.mxu0 0.0
    %2652 = vmatpush.xpose.msra.mxu0 0.0
    %2653 = vmatpush.xpose.msra.mxu0 0.0
    %2654 = vmatpush.xpose.msra.mxu0 0.0
    %2655 = vmatpush.xpose.msra.mxu0 0.0
    %2656 = vmatpush.xpose.msra.mxu0 0.0
    %2657 = vmatpush.xpose.msra.mxu0 0.0
    %2658 = vmatpush.xpose.msra.mxu0 0.0
    %2659 = vmatpush.xpose.msra.mxu0 0.0
    %2660 = vmatpush.xpose.msra.mxu0 0.0
    %2661 = vmatpush.xpose.msra.mxu0 0.0
    %2662 = vmatpush.xpose.msra.mxu0 0.0
    %2663 = vmatpush.xpose.msra.mxu0 0.0
    %2664 = vmatpush.xpose.msra.mxu0 0.0
    %2665 = vmatpush.xpose.msra.mxu0 %v2648
    %2666 = vmatmul.f32.gmra.mxu0 %v2646
    %v2667 = vpop.f32.mrf.mxu0
    %v2668 = vadd.f32 0.0, %v2667
    %2669 = vdwg.mxu0
    %2671 = vrot.lane.b32.xlu0 %v2636, 96
    %v2672 = vpop.permute.xlu0 %2671
    %v2673 = vsel %vm100, %v2636, 0
    %v2675 = vsel %vm100, %v2672, 0
    %2677 = vmatpush.xpose.msra.mxu0 0.0
    %2678 = vmatpush.xpose.msra.mxu0 0.0
    %2679 = vmatpush.xpose.msra.mxu0 0.0
    %2680 = vmatpush.xpose.msra.mxu0 0.0
    %2681 = vmatpush.xpose.msra.mxu0 0.0
    %2682 = vmatpush.xpose.msra.mxu0 0.0
    %2683 = vmatpush.xpose.msra.mxu0 0.0
    %2684 = vmatpush.xpose.msra.mxu0 0.0
    %2685 = vmatpush.xpose.msra.mxu0 0.0
    %2686 = vmatpush.xpose.msra.mxu0 0.0
    %2687 = vmatpush.xpose.msra.mxu0 0.0
    %2688 = vmatpush.xpose.msra.mxu0 0.0
    %2689 = vmatpush.xpose.msra.mxu0 0.0
    %2690 = vmatpush.xpose.msra.mxu0 0.0
    %2691 = vmatpush.xpose.msra.mxu0 0.0
    %2692 = vmatpush.xpose.msra.mxu0 %v2675
    %2693 = vmatmul.f32.gmra.mxu0 %v2673
    %v2694 = vpop.f32.mrf.mxu0
    %v2695 = vadd.f32 0.0, %v2694
    %2696 = vdwg.mxu0
    %v2697 = vmul.f32 %v2668, 0.35355338
    %v2698 = vmul.f32 %v2695, 0.35355338
    %v2699 = vsel %vm100, %v2697, -inf
    %2700 = vmax.xlane.f32.xlu0 %v2699
    %v2701 = vpop.xlane.xlu0 %2700
    %v2702 = vsel %vm100, %v2698, -inf
    %2703 = vmax.xlane.f32.xlu0 %v2702
    %v2704 = vpop.xlane.xlu0 %2703
    %v2705 = vsub.f32 %v2697, %v2701
    %v2706 = vsub.f32 %v2698, %v2704
    %v2707 = vmul.f32 %v2705, 1.442695
    %v2708 = vpow.pop %v2707
    %v2709 = vmul.f32 %v2706, 1.442695
    %v2710 = vpow.pop %v2709
    %v2711 = vsel %vm100, %v2708, 0.0
    %2712 = vadd.xlane.f32.xlu0 %v2711
    %v2713 = vpop.xlane.xlu0 %2712
    %v2714 = vsel %vm100, %v2710, 0.0
    %2715 = vadd.xlane.f32.xlu0 %v2714
    %v2716 = vpop.xlane.xlu0 %2715
    %v2717 = vrcp.pop %v2713
    %v2718 = vrcp.pop %v2716
    %v2719 = vmul.f32 %v2708, %v2717
    %v2720 = vmul.f32 %v2710, %v2718
    %2721 = vrot.lane.b32.xlu0 %v2634, 64
    %v2722 = vpop.permute.xlu0 %2721
    %v2725 = vsel %vm100, %v2719, 0
    %2727 = vmatpush.msra.mxu0 0.0
    %2728 = vmatpush.msra.mxu0 0.0
    %2729 = vmatpush.msra.mxu0 0.0
    %2730 = vmatpush.msra.mxu0 0.0
    %2731 = vmatpush.msra.mxu0 0.0
    %2732 = vmatpush.msra.mxu0 0.0
    %2733 = vmatpush.msra.mxu0 0.0
    %2734 = vmatpush.msra.mxu0 0.0
    %2735 = vmatpush.msra.mxu0 0.0
    %2736 = vmatpush.msra.mxu0 0.0
    %2737 = vmatpush.msra.mxu0 0.0
    %2738 = vmatpush.msra.mxu0 0.0
    %2739 = vmatpush.msra.mxu0 0.0
    %2740 = vmatpush.msra.mxu0 0.0
    %2741 = vmatpush.msra.mxu0 0.0
    %2742 = vmatpush.msra.mxu0 %v2722
    %2743 = vmatmul.f32.gmra.mxu0 %v2725
    %v2744 = vpop.f32.mrf.mxu0
    %v2745 = vadd.f32 0.0, %v2744
    %2746 = vdwg.mxu0
    %2747 = vrot.lane.b32.xlu0 %v2636, 64
    %v2748 = vpop.permute.xlu0 %2747
    %v2751 = vsel %vm100, %v2720, 0
    %2753 = vmatpush.msra.mxu0 0.0
    %2754 = vmatpush.msra.mxu0 0.0
    %2755 = vmatpush.msra.mxu0 0.0
    %2756 = vmatpush.msra.mxu0 0.0
    %2757 = vmatpush.msra.mxu0 0.0
    %2758 = vmatpush.msra.mxu0 0.0
    %2759 = vmatpush.msra.mxu0 0.0
    %2760 = vmatpush.msra.mxu0 0.0
    %2761 = vmatpush.msra.mxu0 0.0
    %2762 = vmatpush.msra.mxu0 0.0
    %2763 = vmatpush.msra.mxu0 0.0
    %2764 = vmatpush.msra.mxu0 0.0
    %2765 = vmatpush.msra.mxu0 0.0
    %2766 = vmatpush.msra.mxu0 0.0
    %2767 = vmatpush.msra.mxu0 0.0
    %2768 = vmatpush.msra.mxu0 %v2748
    %2769 = vmatmul.f32.gmra.mxu0 %v2751
    %v2770 = vpop.f32.mrf.mxu0
    %v2771 = vadd.f32 0.0, %v2770
    %2772 = vdwg.mxu0
    %v2773 = vpack.c.bf16 %v2771, %v2745
    %2774 = vrot.lane.b32.xlu0 %v2634, 120
    %v2775 = vpop.permute.xlu0 %2774
    %2776 = vrot.lane.b32.xlu0 %v2634, 88
    %v2777 = vpop.permute.xlu0 %2776
    %v2778 = vsel %vm100, %v2775, 0
    %v2780 = vsel %vm100, %v2777, 0
    %2782 = vmatpush.xpose.msra.mxu0 0.0
    %2783 = vmatpush.xpose.msra.mxu0 0.0
    %2784 = vmatpush.xpose.msra.mxu0 0.0
    %2785 = vmatpush.xpose.msra.mxu0 0.0
    %2786 = vmatpush.xpose.msra.mxu0 0.0
    %2787 = vmatpush.xpose.msra.mxu0 0.0
    %2788 = vmatpush.xpose.msra.mxu0 0.0
    %2789 = vmatpush.xpose.msra.mxu0 0.0
    %2790 = vmatpush.xpose.msra.mxu0 0.0
    %2791 = vmatpush.xpose.msra.mxu0 0.0
    %2792 = vmatpush.xpose.msra.mxu0 0.0
    %2793 = vmatpush.xpose.msra.mxu0 0.0
    %2794 = vmatpush.xpose.msra.mxu0 0.0
    %2795 = vmatpush.xpose.msra.mxu0 0.0
    %2796 = vmatpush.xpose.msra.mxu0 0.0
    %2797 = vmatpush.xpose.msra.mxu0 %v2780
    %2798 = vmatmul.f32.gmra.mxu0 %v2778
    %v2799 = vpop.f32.mrf.mxu0
    %v2800 = vadd.f32 0.0, %v2799
    %2801 = vdwg.mxu0
    %2802 = vrot.lane.b32.xlu0 %v2636, 120
    %v2803 = vpop.permute.xlu0 %2802
    %2804 = vrot.lane.b32.xlu0 %v2636, 88
    %v2805 = vpop.permute.xlu0 %2804
    %v2806 = vsel %vm100, %v2803, 0
    %v2808 = vsel %vm100, %v2805, 0
    %2810 = vmatpush.xpose.msra.mxu0 0.0
    %2811 = vmatpush.xpose.msra.mxu0 0.0
    %2812 = vmatpush.xpose.msra.mxu0 0.0
    %2813 = vmatpush.xpose.msra.mxu0 0.0
    %2814 = vmatpush.xpose.msra.mxu0 0.0
    %2815 = vmatpush.xpose.msra.mxu0 0.0
    %2816 = vmatpush.xpose.msra.mxu0 0.0
    %2817 = vmatpush.xpose.msra.mxu0 0.0
    %2818 = vmatpush.xpose.msra.mxu0 0.0
    %2819 = vmatpush.xpose.msra.mxu0 0.0
    %2820 = vmatpush.xpose.msra.mxu0 0.0
    %2821 = vmatpush.xpose.msra.mxu0 0.0
    %2822 = vmatpush.xpose.msra.mxu0 0.0
    %2823 = vmatpush.xpose.msra.mxu0 0.0
    %2824 = vmatpush.xpose.msra.mxu0 0.0
    %2825 = vmatpush.xpose.msra.mxu0 %v2808
    %2826 = vmatmul.f32.gmra.mxu0 %v2806
    %v2827 = vpop.f32.mrf.mxu0
    %v2828 = vadd.f32 0.0, %v2827
    %2829 = vdwg.mxu0
    %v2830 = vmul.f32 %v2800, 0.35355338
    %v2831 = vmul.f32 %v2828, 0.35355338
    %v2832 = vsel %vm100, %v2830, -inf
    %2833 = vmax.xlane.f32.xlu0 %v2832
    %v2834 = vpop.xlane.xlu0 %2833
    %v2835 = vsel %vm100, %v2831, -inf
    %2836 = vmax.xlane.f32.xlu0 %v2835
    %v2837 = vpop.xlane.xlu0 %2836
    %v2838 = vsub.f32 %v2830, %v2834
    %v2839 = vsub.f32 %v2831, %v2837
    %v2840 = vmul.f32 %v2838, 1.442695
    %v2841 = vpow.pop %v2840
    %v2842 = vmul.f32 %v2839, 1.442695
    %v2843 = vpow.pop %v2842
    %v2844 = vsel %vm100, %v2841, 0.0
    %2845 = vadd.xlane.f32.xlu0 %v2844
    %v2846 = vpop.xlane.xlu0 %2845
    %v2847 = vsel %vm100, %v2843, 0.0
    %2848 = vadd.xlane.f32.xlu0 %v2847
    %v2849 = vpop.xlane.xlu0 %2848
    %v2850 = vrcp.pop %v2846
    %v2851 = vrcp.pop %v2849
    %v2852 = vmul.f32 %v2841, %v2850
    %v2853 = vmul.f32 %v2843, %v2851
    %2854 = vrot.lane.b32.xlu0 %v2634, 56
    %v2855 = vpop.permute.xlu0 %2854
    %v2858 = vsel %vm100, %v2852, 0
    %2860 = vmatpush.msra.mxu0 0.0
    %2861 = vmatpush.msra.mxu0 0.0
    %2862 = vmatpush.msra.mxu0 0.0
    %2863 = vmatpush.msra.mxu0 0.0
    %2864 = vmatpush.msra.mxu0 0.0
    %2865 = vmatpush.msra.mxu0 0.0
    %2866 = vmatpush.msra.mxu0 0.0
    %2867 = vmatpush.msra.mxu0 0.0
    %2868 = vmatpush.msra.mxu0 0.0
    %2869 = vmatpush.msra.mxu0 0.0
    %2870 = vmatpush.msra.mxu0 0.0
    %2871 = vmatpush.msra.mxu0 0.0
    %2872 = vmatpush.msra.mxu0 0.0
    %2873 = vmatpush.msra.mxu0 0.0
    %2874 = vmatpush.msra.mxu0 0.0
    %2875 = vmatpush.msra.mxu0 %v2855
    %2876 = vmatmul.f32.gmra.mxu0 %v2858
    %v2877 = vpop.f32.mrf.mxu0
    %v2878 = vadd.f32 0.0, %v2877
    %2879 = vdwg.mxu0
    %2880 = vrot.lane.b32.xlu0 %v2636, 56
    %v2881 = vpop.permute.xlu0 %2880
    %v2884 = vsel %vm100, %v2853, 0
    %2886 = vmatpush.msra.mxu0 0.0
    %2887 = vmatpush.msra.mxu0 0.0
    %2888 = vmatpush.msra.mxu0 0.0
    %2889 = vmatpush.msra.mxu0 0.0
    %2890 = vmatpush.msra.mxu0 0.0
    %2891 = vmatpush.msra.mxu0 0.0
    %2892 = vmatpush.msra.mxu0 0.0
    %2893 = vmatpush.msra.mxu0 0.0
    %2894 = vmatpush.msra.mxu0 0.0
    %2895 = vmatpush.msra.mxu0 0.0
    %2896 = vmatpush.msra.mxu0 0.0
    %2897 = vmatpush.msra.mxu0 0.0
    %2898 = vmatpush.msra.mxu0 0.0
    %2899 = vmatpush.msra.mxu0 0.0
    %2900 = vmatpush.msra.mxu0 0.0
    %2901 = vmatpush.msra.mxu0 %v2881
    %2902 = vmatmul.f32.gmra.mxu0 %v2884
    %v2903 = vpop.f32.mrf.mxu0
    %v2904 = vadd.f32 0.0, %v2903
    %2905 = vdwg.mxu0
    %v2906 = vpack.c.bf16 %v2904, %v2878
    %v2908 = vsel %vm100, %v2906, 0
    %v2911 = vsel %vm365, %v2640, 0
    %2913 = vmatpush.bf16.msra.mxu0 0
    %2914 = vmatpush.bf16.msra.mxu0 0
    %2915 = vmatpush.bf16.msra.mxu0 0
    %2916 = vmatpush.bf16.msra.mxu0 0
    %2917 = vmatpush.bf16.msra.mxu0 0
    %2918 = vmatpush.bf16.msra.mxu0 0
    %2919 = vmatpush.bf16.msra.mxu0 0
    %2920 = vmatpush.bf16.msra.mxu0 %v2911
    %2921 = vmatmul.bf16.gmra.mxu0 %v2908
    %v2922 = vpop.f32.mrf.mxu0
    %v2923 = vadd.f32 0.0, %v2922
    %v2924 = vpop.f32.mrf.mxu0
    %v2925 = vadd.f32 0.0, %v2924
    %2926 = vdwg.mxu0
    %v2928 = vsel %vm100, %v2773, 0
    %v2931 = vsel %vm365, %v2639, 0
    %2933 = vmatpush.bf16.msra.mxu0 0
    %2934 = vmatpush.bf16.msra.mxu0 0
    %2935 = vmatpush.bf16.msra.mxu0 0
    %2936 = vmatpush.bf16.msra.mxu0 0
    %2937 = vmatpush.bf16.msra.mxu0 0
    %2938 = vmatpush.bf16.msra.mxu0 0
    %2939 = vmatpush.bf16.msra.mxu0 0
    %2940 = vmatpush.bf16.msra.mxu0 %v2931
    %2941 = vmatmul.bf16.gmra.mxu0 %v2928
    %v2942 = vpop.f32.mrf.mxu0
    %v2943 = vadd.f32 %v2923, %v2942
    %v2944 = vpop.f32.mrf.mxu0
    %v2945 = vadd.f32 %v2925, %v2944
    %2946 = vdwg.mxu0
    %2947 = vrot.lane.b32.xlu0 %v2634, 112
    %v2948 = vpop.permute.xlu0 %2947
    %2949 = vrot.lane.b32.xlu0 %v2634, 80
    %v2950 = vpop.permute.xlu0 %2949
    %v2951 = vsel %vm100, %v2948, 0
    %v2953 = vsel %vm100, %v2950, 0
    %2955 = vmatpush.xpose.msra.mxu0 0.0
    %2956 = vmatpush.xpose.msra.mxu0 0.0
    %2957 = vmatpush.xpose.msra.mxu0 0.0
    %2958 = vmatpush.xpose.msra.mxu0 0.0
    %2959 = vmatpush.xpose.msra.mxu0 0.0
    %2960 = vmatpush.xpose.msra.mxu0 0.0
    %2961 = vmatpush.xpose.msra.mxu0 0.0
    %2962 = vmatpush.xpose.msra.mxu0 0.0
    %2963 = vmatpush.xpose.msra.mxu0 0.0
    %2964 = vmatpush.xpose.msra.mxu0 0.0
    %2965 = vmatpush.xpose.msra.mxu0 0.0
    %2966 = vmatpush.xpose.msra.mxu0 0.0
    %2967 = vmatpush.xpose.msra.mxu0 0.0
    %2968 = vmatpush.xpose.msra.mxu0 0.0
    %2969 = vmatpush.xpose.msra.mxu0 0.0
    %2970 = vmatpush.xpose.msra.mxu0 %v2953
    %2971 = vmatmul.f32.gmra.mxu0 %v2951
    %v2972 = vpop.f32.mrf.mxu0
    %v2973 = vadd.f32 0.0, %v2972
    %2974 = vdwg.mxu0
    %2975 = vrot.lane.b32.xlu0 %v2636, 112
    %v2976 = vpop.permute.xlu0 %2975
    %2977 = vrot.lane.b32.xlu0 %v2636, 80
    %v2978 = vpop.permute.xlu0 %2977
    %v2979 = vsel %vm100, %v2976, 0
    %v2981 = vsel %vm100, %v2978, 0
    %2983 = vmatpush.xpose.msra.mxu0 0.0
    %2984 = vmatpush.xpose.msra.mxu0 0.0
    %2985 = vmatpush.xpose.msra.mxu0 0.0
    %2986 = vmatpush.xpose.msra.mxu0 0.0
    %2987 = vmatpush.xpose.msra.mxu0 0.0
    %2988 = vmatpush.xpose.msra.mxu0 0.0
    %2989 = vmatpush.xpose.msra.mxu0 0.0
    %2990 = vmatpush.xpose.msra.mxu0 0.0
    %2991 = vmatpush.xpose.msra.mxu0 0.0
    %2992 = vmatpush.xpose.msra.mxu0 0.0
    %2993 = vmatpush.xpose.msra.mxu0 0.0
    %2994 = vmatpush.xpose.msra.mxu0 0.0
    %2995 = vmatpush.xpose.msra.mxu0 0.0
    %2996 = vmatpush.xpose.msra.mxu0 0.0
    %2997 = vmatpush.xpose.msra.mxu0 0.0
    %2998 = vmatpush.xpose.msra.mxu0 %v2981
    %2999 = vmatmul.f32.gmra.mxu0 %v2979
    %v3000 = vpop.f32.mrf.mxu0
    %v3001 = vadd.f32 0.0, %v3000
    %3002 = vdwg.mxu0
    %v3003 = vmul.f32 %v2973, 0.35355338
    %v3004 = vmul.f32 %v3001, 0.35355338
    %v3005 = vsel %vm100, %v3003, -inf
    %3006 = vmax.xlane.f32.xlu0 %v3005
    %v3007 = vpop.xlane.xlu0 %3006
    %v3008 = vsel %vm100, %v3004, -inf
    %3009 = vmax.xlane.f32.xlu0 %v3008
    %v3010 = vpop.xlane.xlu0 %3009
    %v3011 = vsub.f32 %v3003, %v3007
    %v3012 = vsub.f32 %v3004, %v3010
    %v3013 = vmul.f32 %v3011, 1.442695
    %v3014 = vpow.pop %v3013
    %v3015 = vmul.f32 %v3012, 1.442695
    %v3016 = vpow.pop %v3015
    %v3017 = vsel %vm100, %v3014, 0.0
    %3018 = vadd.xlane.f32.xlu0 %v3017
    %v3019 = vpop.xlane.xlu0 %3018
    %v3020 = vsel %vm100, %v3016, 0.0
    %3021 = vadd.xlane.f32.xlu0 %v3020
    %v3022 = vpop.xlane.xlu0 %3021
    %v3023 = vrcp.pop %v3019
    %v3024 = vrcp.pop %v3022
    %v3025 = vmul.f32 %v3014, %v3023
    %v3026 = vmul.f32 %v3016, %v3024
    %3027 = vrot.lane.b32.xlu0 %v2634, 48
    %v3028 = vpop.permute.xlu0 %3027
    %v3031 = vsel %vm100, %v3025, 0
    %3033 = vmatpush.msra.mxu0 0.0
    %3034 = vmatpush.msra.mxu0 0.0
    %3035 = vmatpush.msra.mxu0 0.0
    %3036 = vmatpush.msra.mxu0 0.0
    %3037 = vmatpush.msra.mxu0 0.0
    %3038 = vmatpush.msra.mxu0 0.0
    %3039 = vmatpush.msra.mxu0 0.0
    %3040 = vmatpush.msra.mxu0 0.0
    %3041 = vmatpush.msra.mxu0 0.0
    %3042 = vmatpush.msra.mxu0 0.0
    %3043 = vmatpush.msra.mxu0 0.0
    %3044 = vmatpush.msra.mxu0 0.0
    %3045 = vmatpush.msra.mxu0 0.0
    %3046 = vmatpush.msra.mxu0 0.0
    %3047 = vmatpush.msra.mxu0 0.0
    %3048 = vmatpush.msra.mxu0 %v3028
    %3049 = vmatmul.f32.gmra.mxu0 %v3031
    %v3050 = vpop.f32.mrf.mxu0
    %v3051 = vadd.f32 0.0, %v3050
    %3052 = vdwg.mxu0
    %3053 = vrot.lane.b32.xlu0 %v2636, 48
    %v3054 = vpop.permute.xlu0 %3053
    %v3057 = vsel %vm100, %v3026, 0
    %3059 = vmatpush.msra.mxu0 0.0
    %3060 = vmatpush.msra.mxu0 0.0
    %3061 = vmatpush.msra.mxu0 0.0
    %3062 = vmatpush.msra.mxu0 0.0
    %3063 = vmatpush.msra.mxu0 0.0
    %3064 = vmatpush.msra.mxu0 0.0
    %3065 = vmatpush.msra.mxu0 0.0
    %3066 = vmatpush.msra.mxu0 0.0
    %3067 = vmatpush.msra.mxu0 0.0
    %3068 = vmatpush.msra.mxu0 0.0
    %3069 = vmatpush.msra.mxu0 0.0
    %3070 = vmatpush.msra.mxu0 0.0
    %3071 = vmatpush.msra.mxu0 0.0
    %3072 = vmatpush.msra.mxu0 0.0
    %3073 = vmatpush.msra.mxu0 0.0
    %3074 = vmatpush.msra.mxu0 %v3054
    %3075 = vmatmul.f32.gmra.mxu0 %v3057
    %v3076 = vpop.f32.mrf.mxu0
    %v3077 = vadd.f32 0.0, %v3076
    %3078 = vdwg.mxu0
    %v3079 = vpack.c.bf16 %v3077, %v3051
    %v3081 = vsel %vm100, %v3079, 0
    %v3084 = vsel %vm365, %v2641, 0
    %3086 = vmatpush.bf16.msra.mxu0 0
    %3087 = vmatpush.bf16.msra.mxu0 0
    %3088 = vmatpush.bf16.msra.mxu0 0
    %3089 = vmatpush.bf16.msra.mxu0 0
    %3090 = vmatpush.bf16.msra.mxu0 0
    %3091 = vmatpush.bf16.msra.mxu0 0
    %3092 = vmatpush.bf16.msra.mxu0 0
    %3093 = vmatpush.bf16.msra.mxu0 %v3084
    %3094 = vmatmul.bf16.gmra.mxu0 %v3081
    %v3095 = vpop.f32.mrf.mxu0
    %v3096 = vadd.f32 0.0, %v3095
    %v3097 = vpop.f32.mrf.mxu0
    %v3098 = vadd.f32 0.0, %v3097
    %3099 = vdwg.mxu0
    %v3100 = vadd.f32 %v2943, %v3096
    %v3101 = vadd.f32 %v2945, %v3098
    %3102 = vrot.lane.b32.xlu0 %v2634, 104
    %v3103 = vpop.permute.xlu0 %3102
    %3104 = vrot.lane.b32.xlu0 %v2634, 72
    %v3105 = vpop.permute.xlu0 %3104
    %v3106 = vsel %vm100, %v3103, 0
    %v3108 = vsel %vm100, %v3105, 0
    %3110 = vmatpush.xpose.msra.mxu0 0.0
    %3111 = vmatpush.xpose.msra.mxu0 0.0
    %3112 = vmatpush.xpose.msra.mxu0 0.0
    %3113 = vmatpush.xpose.msra.mxu0 0.0
    %3114 = vmatpush.xpose.msra.mxu0 0.0
    %3115 = vmatpush.xpose.msra.mxu0 0.0
    %3116 = vmatpush.xpose.msra.mxu0 0.0
    %3117 = vmatpush.xpose.msra.mxu0 0.0
    %3118 = vmatpush.xpose.msra.mxu0 0.0
    %3119 = vmatpush.xpose.msra.mxu0 0.0
    %3120 = vmatpush.xpose.msra.mxu0 0.0
    %3121 = vmatpush.xpose.msra.mxu0 0.0
    %3122 = vmatpush.xpose.msra.mxu0 0.0
    %3123 = vmatpush.xpose.msra.mxu0 0.0
    %3124 = vmatpush.xpose.msra.mxu0 0.0
    %3125 = vmatpush.xpose.msra.mxu0 %v3108
    %3126 = vmatmul.f32.gmra.mxu0 %v3106
    %v3127 = vpop.f32.mrf.mxu0
    %v3128 = vadd.f32 0.0, %v3127
    %3129 = vdwg.mxu0
    %3130 = vrot.lane.b32.xlu0 %v2636, 104
    %v3131 = vpop.permute.xlu0 %3130
    %3132 = vrot.lane.b32.xlu0 %v2636, 72
    %v3133 = vpop.permute.xlu0 %3132
    %v3134 = vsel %vm100, %v3131, 0
    %v3136 = vsel %vm100, %v3133, 0
    %3138 = vmatpush.xpose.msra.mxu0 0.0
    %3139 = vmatpush.xpose.msra.mxu0 0.0
    %3140 = vmatpush.xpose.msra.mxu0 0.0
    %3141 = vmatpush.xpose.msra.mxu0 0.0
    %3142 = vmatpush.xpose.msra.mxu0 0.0
    %3143 = vmatpush.xpose.msra.mxu0 0.0
    %3144 = vmatpush.xpose.msra.mxu0 0.0
    %3145 = vmatpush.xpose.msra.mxu0 0.0
    %3146 = vmatpush.xpose.msra.mxu0 0.0
    %3147 = vmatpush.xpose.msra.mxu0 0.0
    %3148 = vmatpush.xpose.msra.mxu0 0.0
    %3149 = vmatpush.xpose.msra.mxu0 0.0
    %3150 = vmatpush.xpose.msra.mxu0 0.0
    %3151 = vmatpush.xpose.msra.mxu0 0.0
    %3152 = vmatpush.xpose.msra.mxu0 0.0
    %3153 = vmatpush.xpose.msra.mxu0 %v3136
    %3154 = vmatmul.f32.gmra.mxu0 %v3134
    %v3155 = vpop.f32.mrf.mxu0
    %v3156 = vadd.f32 0.0, %v3155
    %3157 = vdwg.mxu0
    %v3158 = vmul.f32 %v3128, 0.35355338
    %v3159 = vmul.f32 %v3156, 0.35355338
    %v3160 = vsel %vm100, %v3158, -inf
    %3161 = vmax.xlane.f32.xlu0 %v3160
    %v3162 = vpop.xlane.xlu0 %3161
    %v3163 = vsel %vm100, %v3159, -inf
    %3164 = vmax.xlane.f32.xlu0 %v3163
    %v3165 = vpop.xlane.xlu0 %3164
    %v3166 = vsub.f32 %v3158, %v3162
    %v3167 = vsub.f32 %v3159, %v3165
    %v3168 = vmul.f32 %v3166, 1.442695
    %v3169 = vpow.pop %v3168
    %v3170 = vmul.f32 %v3167, 1.442695
    %v3171 = vpow.pop %v3170
    %v3172 = vsel %vm100, %v3169, 0.0
    %3173 = vadd.xlane.f32.xlu0 %v3172
    %v3174 = vpop.xlane.xlu0 %3173
    %v3175 = vsel %vm100, %v3171, 0.0
    %3176 = vadd.xlane.f32.xlu0 %v3175
    %v3177 = vpop.xlane.xlu0 %3176
    %v3178 = vrcp.pop %v3174
    %v3179 = vrcp.pop %v3177
    %v3180 = vmul.f32 %v3169, %v3178
    %v3181 = vmul.f32 %v3171, %v3179
    %3182 = vrot.lane.b32.xlu0 %v2634, 40
    %v3183 = vpop.permute.xlu0 %3182
    %v3186 = vsel %vm100, %v3180, 0
    %3188 = vmatpush.msra.mxu0 0.0
    %3189 = vmatpush.msra.mxu0 0.0
    %3190 = vmatpush.msra.mxu0 0.0
    %3191 = vmatpush.msra.mxu0 0.0
    %3192 = vmatpush.msra.mxu0 0.0
    %3193 = vmatpush.msra.mxu0 0.0
    %3194 = vmatpush.msra.mxu0 0.0
    %3195 = vmatpush.msra.mxu0 0.0
    %3196 = vmatpush.msra.mxu0 0.0
    %3197 = vmatpush.msra.mxu0 0.0
    %3198 = vmatpush.msra.mxu0 0.0
    %3199 = vmatpush.msra.mxu0 0.0
    %3200 = vmatpush.msra.mxu0 0.0
    %3201 = vmatpush.msra.mxu0 0.0
    %3202 = vmatpush.msra.mxu0 0.0
    %3203 = vmatpush.msra.mxu0 %v3183
    %3204 = vmatmul.f32.gmra.mxu0 %v3186
    %v3205 = vpop.f32.mrf.mxu0
    %v3206 = vadd.f32 0.0, %v3205
    %3207 = vdwg.mxu0
    %3208 = vrot.lane.b32.xlu0 %v2636, 40
    %v3209 = vpop.permute.xlu0 %3208
    %v3212 = vsel %vm100, %v3181, 0
    %3214 = vmatpush.msra.mxu0 0.0
    %3215 = vmatpush.msra.mxu0 0.0
    %3216 = vmatpush.msra.mxu0 0.0
    %3217 = vmatpush.msra.mxu0 0.0
    %3218 = vmatpush.msra.mxu0 0.0
    %3219 = vmatpush.msra.mxu0 0.0
    %3220 = vmatpush.msra.mxu0 0.0
    %3221 = vmatpush.msra.mxu0 0.0
    %3222 = vmatpush.msra.mxu0 0.0
    %3223 = vmatpush.msra.mxu0 0.0
    %3224 = vmatpush.msra.mxu0 0.0
    %3225 = vmatpush.msra.mxu0 0.0
    %3226 = vmatpush.msra.mxu0 0.0
    %3227 = vmatpush.msra.mxu0 0.0
    %3228 = vmatpush.msra.mxu0 0.0
    %3229 = vmatpush.msra.mxu0 %v3209
    %3230 = vmatmul.f32.gmra.mxu0 %v3212
    %v3231 = vpop.f32.mrf.mxu0
    %v3232 = vadd.f32 0.0, %v3231
    %3233 = vdwg.mxu0
    %v3234 = vpack.c.bf16 %v3232, %v3206
    %v3236 = vsel %vm100, %v3234, 0
    %v3239 = vsel %vm365, %v2642, 0
    %3241 = vmatpush.bf16.msra.mxu0 0
    %3242 = vmatpush.bf16.msra.mxu0 0
    %3243 = vmatpush.bf16.msra.mxu0 0
    %3244 = vmatpush.bf16.msra.mxu0 0
    %3245 = vmatpush.bf16.msra.mxu0 0
    %3246 = vmatpush.bf16.msra.mxu0 0
    %3247 = vmatpush.bf16.msra.mxu0 0
    %3248 = vmatpush.bf16.msra.mxu0 %v3239
    %3249 = vmatmul.bf16.gmra.mxu0 %v3236
    %v3250 = vpop.f32.mrf.mxu0
    %v3251 = vadd.f32 0.0, %v3250
    %v3252 = vpop.f32.mrf.mxu0
    %v3253 = vadd.f32 0.0, %v3252
    %3254 = vdwg.mxu0
    %v3255 = vadd.f32 %v3100, %v3251
    %v3256 = vadd.f32 %v3101, %v3253
    %s3257 = scalar_lea.vmem %s4, 1
    %v3258 = vld [vmem:[%s3257] sm:$0x1]
    %v3260 = vperm.slane %v3258, 0
    %v3262 = vadd.f32 %v3255, %v3260
    %v3263 = vadd.f32 %v3256, %v3260
    %v3264 = vadd.f32 %v2596, %v3262
    %v3265 = vadd.f32 %v2597, %v3263
    %v3266 = vsel %vm75, %v3264, 0.0
    %3267 = vadd.xlane.f32.xlu0 %v3266
    %v3268 = vpop.xlane.xlu0 %3267
    %v3269 = vsel %vm75, %v3265, 0.0
    %3270 = vadd.xlane.f32.xlu0 %v3269
    %v3271 = vpop.xlane.xlu0 %3270
    %v3272 = vmul.f32 %v3268, %v733
    %v3273 = vmul.f32 %v3271, %v733
    %v3274 = vsub.f32 %v3264, %v3272
    %v3275 = vsub.f32 %v3265, %v3273
    %v3276 = vmul.f32 %v3274, %v3274
    %v3277 = vmul.f32 %v3275, %v3275
    %v3278 = vsel %vm75, %v3276, 0.0
    %3279 = vadd.xlane.f32.xlu0 %v3278
    %v3280 = vpop.xlane.xlu0 %3279
    %v3281 = vsel %vm75, %v3277, 0.0
    %3282 = vadd.xlane.f32.xlu0 %v3281
    %v3283 = vpop.xlane.xlu0 %3282
    %v3284 = vmul.f32 %v3280, %v733
    %v3285 = vmul.f32 %v3283, %v733
    %v3286 = vadd.f32 %v3284, 1e-05
    %v3287 = vadd.f32 %v3285, 1e-05
    %v3288 = vrsqrt.pop %v3286
    %v3289 = vmul.f32 %v3288, %v3286
    %v3290 = vmul.f32 %v3289, %v3288
    %v3291 = vmul.f32 0.5, %v3290
    %v3292 = vsub.f32 1.5, %v3291
    %v3293 = vmul.f32 %v3288, %v3292
    %vm3294 = vweird.f32 %v3286
    %vm3295 = vweird.f32 %v3288
    %vm3296 = vmor %vm3294, %vm3295
    %v3297 = vsel %vm3296, %v3288, %v3293
    %v3298 = vrsqrt.pop %v3287
    %v3299 = vmul.f32 %v3298, %v3287
    %v3300 = vmul.f32 %v3299, %v3298
    %v3301 = vmul.f32 0.5, %v3300
    %v3302 = vsub.f32 1.5, %v3301
    %v3303 = vmul.f32 %v3298, %v3302
    %vm3304 = vweird.f32 %v3287
    %vm3305 = vweird.f32 %v3298
    %vm3306 = vmor %vm3304, %vm3305
    %v3307 = vsel %vm3306, %v3298, %v3303
    %v3308 = vmul.f32 %v3274, %v3297
    %v3309 = vmul.f32 %v3275, %v3307
    %s3310 = scalar_lea.vmem %s5, 1
    %v3311 = vld [vmem:[%s3310] sm:$0x1]
    %v3313 = vperm.slane %v3311, 0
    %v3315 = vmul.f32 %v3308, %v3313
    %v3316 = vmul.f32 %v3309, %v3313
    %s3317 = scalar_lea.vmem %s6, 1
    %v3318 = vld [vmem:[%s3317] sm:$0x1]
    %v3320 = vperm.slane %v3318, 0
    %v3322 = vadd.f32 %v3315, %v3320
    %v3323 = vadd.f32 %v3316, %v3320
    %v3324 = vpack.c.bf16 %v3323, %v3322
    %s3325 = scalar_lea.vmem %s7, 256
    %v3326 = vld [vmem:[%s3325] sm:$0xff]
    %v3327 = vld [vmem:[%s3325 + $0x8] sm:$0xff]
    %v3328 = vld [vmem:[%s3325 + $0x10] sm:$0xff]
    %v3329 = vld [vmem:[%s3325 + $0x18] sm:$0xff]
    %v3330 = vld [vmem:[%s3325 + $0x20] sm:$0xff]
    %v3331 = vld [vmem:[%s3325 + $0x28] sm:$0xff]
    %v3332 = vld [vmem:[%s3325 + $0x30] sm:$0xff]
    %v3333 = vld [vmem:[%s3325 + $0x38] sm:$0xff]
    %v3334 = vld [vmem:[%s3325 + $0x40] sm:$0xff]
    %v3335 = vld [vmem:[%s3325 + $0x48] sm:$0xff]
    %v3336 = vld [vmem:[%s3325 + $0x50] sm:$0xff]
    %v3337 = vld [vmem:[%s3325 + $0x58] sm:$0xff]
    %v3338 = vld [vmem:[%s3325 + $0x60] sm:$0xff]
    %v3339 = vld [vmem:[%s3325 + $0x68] sm:$0xff]
    %v3340 = vld [vmem:[%s3325 + $0x70] sm:$0xff]
    %v3341 = vld [vmem:[%s3325 + $0x78] sm:$0xff]
    %v3342 = vld [vmem:[%s3325 + $0x80] sm:$0xff]
    %v3343 = vld [vmem:[%s3325 + $0x88] sm:$0xff]
    %v3344 = vld [vmem:[%s3325 + $0x90] sm:$0xff]
    %v3345 = vld [vmem:[%s3325 + $0x98] sm:$0xff]
    %v3346 = vld [vmem:[%s3325 + $0xa0] sm:$0xff]
    %v3347 = vld [vmem:[%s3325 + $0xa8] sm:$0xff]
    %v3348 = vld [vmem:[%s3325 + $0xb0] sm:$0xff]
    %v3349 = vld [vmem:[%s3325 + $0xb8] sm:$0xff]
    %v3350 = vld [vmem:[%s3325 + $0xc0] sm:$0xff]
    %v3351 = vld [vmem:[%s3325 + $0xc8] sm:$0xff]
    %v3352 = vld [vmem:[%s3325 + $0xd0] sm:$0xff]
    %v3353 = vld [vmem:[%s3325 + $0xd8] sm:$0xff]
    %v3354 = vld [vmem:[%s3325 + $0xe0] sm:$0xff]
    %v3355 = vld [vmem:[%s3325 + $0xe8] sm:$0xff]
    %v3356 = vld [vmem:[%s3325 + $0xf0] sm:$0xff]
    %v3357 = vld [vmem:[%s3325 + $0xf8] sm:$0xff]
    %s3358 = scalar_lea.vmem %s8, 16
    %v3359 = vld [vmem:[%s3358] sm:$0xff]
    %v3360 = vld [vmem:[%s3358 + $0x8] sm:$0xff]
    %v3363 = vperm.slane %v3359, 0
    %v3364 = vperm.slane %v3359, 1
    %v3365 = vperm.slane %v3359, 2
    %v3366 = vperm.slane %v3359, 3
    %v3367 = vperm.slane %v3359, 4
    %v3368 = vperm.slane %v3359, 5
    %v3369 = vperm.slane %v3359, 6
    %v3370 = vperm.slane %v3359, 7
    %v3371 = vperm.slane %v3360, 0
    %v3372 = vperm.slane %v3360, 1
    %v3373 = vperm.slane %v3360, 2
    %v3374 = vperm.slane %v3360, 3
    %v3375 = vperm.slane %v3360, 4
    %v3376 = vperm.slane %v3360, 5
    %v3377 = vperm.slane %v3360, 6
    %v3378 = vperm.slane %v3360, 7
    %v3427 = vunpack.c.l.b16 %v3326
    %v3428 = vunpack.c.h.b16 %v3326
    %v3429 = vunpack.c.l.b16 %v3327
    %v3430 = vunpack.c.h.b16 %v3327
    %v3431 = vunpack.c.l.b16 %v3328
    %v3432 = vunpack.c.h.b16 %v3328
    %v3433 = vunpack.c.l.b16 %v3329
    %v3434 = vunpack.c.h.b16 %v3329
    %v3435 = vunpack.c.l.b16 %v3330
    %v3436 = vunpack.c.h.b16 %v3330
    %v3437 = vunpack.c.l.b16 %v3331
    %v3438 = vunpack.c.h.b16 %v3331
    %v3439 = vunpack.c.l.b16 %v3332
    %v3440 = vunpack.c.h.b16 %v3332
    %v3441 = vunpack.c.l.b16 %v3333
    %v3442 = vunpack.c.h.b16 %v3333
    %v3443 = vunpack.c.l.b16 %v3334
    %v3444 = vunpack.c.h.b16 %v3334
    %v3445 = vunpack.c.l.b16 %v3335
    %v3446 = vunpack.c.h.b16 %v3335
    %v3447 = vunpack.c.l.b16 %v3336
    %v3448 = vunpack.c.h.b16 %v3336
    %v3449 = vunpack.c.l.b16 %v3337
    %v3450 = vunpack.c.h.b16 %v3337
    %v3451 = vunpack.c.l.b16 %v3338
    %v3452 = vunpack.c.h.b16 %v3338
    %v3453 = vunpack.c.l.b16 %v3339
    %v3454 = vunpack.c.h.b16 %v3339
    %v3455 = vunpack.c.l.b16 %v3340
    %v3456 = vunpack.c.h.b16 %v3340
    %v3457 = vunpack.c.l.b16 %v3341
    %v3458 = vunpack.c.h.b16 %v3341
    %v3459 = vunpack.c.l.b16 %v3342
    %v3460 = vunpack.c.h.b16 %v3342
    %v3461 = vunpack.c.l.b16 %v3343
    %v3462 = vunpack.c.h.b16 %v3343
    %v3463 = vunpack.c.l.b16 %v3344
    %v3464 = vunpack.c.h.b16 %v3344
    %v3465 = vunpack.c.l.b16 %v3345
    %v3466 = vunpack.c.h.b16 %v3345
    %v3467 = vunpack.c.l.b16 %v3346
    %v3468 = vunpack.c.h.b16 %v3346
    %v3469 = vunpack.c.l.b16 %v3347
    %v3470 = vunpack.c.h.b16 %v3347
    %v3471 = vunpack.c.l.b16 %v3348
    %v3472 = vunpack.c.h.b16 %v3348
    %v3473 = vunpack.c.l.b16 %v3349
    %v3474 = vunpack.c.h.b16 %v3349
    %v3475 = vunpack.c.l.b16 %v3350
    %v3476 = vunpack.c.h.b16 %v3350
    %v3477 = vunpack.c.l.b16 %v3351
    %v3478 = vunpack.c.h.b16 %v3351
    %v3479 = vunpack.c.l.b16 %v3352
    %v3480 = vunpack.c.h.b16 %v3352
    %v3481 = vunpack.c.l.b16 %v3353
    %v3482 = vunpack.c.h.b16 %v3353
    %v3483 = vunpack.c.l.b16 %v3354
    %v3484 = vunpack.c.h.b16 %v3354
    %v3485 = vunpack.c.l.b16 %v3355
    %v3486 = vunpack.c.h.b16 %v3355
    %v3487 = vunpack.c.l.b16 %v3356
    %v3488 = vunpack.c.h.b16 %v3356
    %v3489 = vunpack.c.l.b16 %v3357
    %v3490 = vunpack.c.h.b16 %v3357
    %v3491 = vpack.c.b16 %v3443, %v3427
    %v3492 = vpack.c.b16 %v3444, %v3428
    %v3493 = vpack.c.b16 %v3445, %v3429
    %v3494 = vpack.c.b16 %v3446, %v3430
    %v3495 = vpack.c.b16 %v3447, %v3431
    %v3496 = vpack.c.b16 %v3448, %v3432
    %v3497 = vpack.c.b16 %v3449, %v3433
    %v3498 = vpack.c.b16 %v3450, %v3434
    %v3499 = vpack.c.b16 %v3451, %v3435
    %v3500 = vpack.c.b16 %v3452, %v3436
    %v3501 = vpack.c.b16 %v3453, %v3437
    %v3502 = vpack.c.b16 %v3454, %v3438
    %v3503 = vpack.c.b16 %v3455, %v3439
    %v3504 = vpack.c.b16 %v3456, %v3440
    %v3505 = vpack.c.b16 %v3457, %v3441
    %v3506 = vpack.c.b16 %v3458, %v3442
    %v3507 = vpack.c.b16 %v3475, %v3459
    %v3508 = vpack.c.b16 %v3476, %v3460
    %v3509 = vpack.c.b16 %v3477, %v3461
    %v3510 = vpack.c.b16 %v3478, %v3462
    %v3511 = vpack.c.b16 %v3479, %v3463
    %v3512 = vpack.c.b16 %v3480, %v3464
    %v3513 = vpack.c.b16 %v3481, %v3465
    %v3514 = vpack.c.b16 %v3482, %v3466
    %v3515 = vpack.c.b16 %v3483, %v3467
    %v3516 = vpack.c.b16 %v3484, %v3468
    %v3517 = vpack.c.b16 %v3485, %v3469
    %v3518 = vpack.c.b16 %v3486, %v3470
    %v3519 = vpack.c.b16 %v3487, %v3471
    %v3520 = vpack.c.b16 %v3488, %v3472
    %v3521 = vpack.c.b16 %v3489, %v3473
    %v3522 = vpack.c.b16 %v3490, %v3474
    %v3556 = vsel %vm75, %v3324, 0
    %3558 = vmatpush.bf16.msra.mxu0 0
    %3559 = vmatpush.bf16.msra.mxu0 0
    %3560 = vmatpush.bf16.msra.mxu0 0
    %3561 = vmatpush.bf16.msra.mxu0 0
    %3562 = vmatpush.bf16.msra.mxu0 0
    %3563 = vmatpush.bf16.msra.mxu0 0
    %3564 = vmatpush.bf16.msra.mxu0 %v3507
    %3565 = vmatpush.bf16.msra.mxu0 %v3491
    %3566 = vmatmul.bf16.gmra.mxu0 %v3556
    %v3567 = vpop.f32.mrf.mxu0
    %v3568 = vadd.f32 %v3363, %v3567
    %v3569 = vpop.f32.mrf.mxu0
    %v3570 = vadd.f32 %v3363, %v3569
    %3571 = vdwg.mxu0
    %3572 = vmatpush.bf16.msra.mxu0 0
    %3573 = vmatpush.bf16.msra.mxu0 0
    %3574 = vmatpush.bf16.msra.mxu0 0
    %3575 = vmatpush.bf16.msra.mxu0 0
    %3576 = vmatpush.bf16.msra.mxu0 0
    %3577 = vmatpush.bf16.msra.mxu0 0
    %3578 = vmatpush.bf16.msra.mxu0 %v3508
    %3579 = vmatpush.bf16.msra.mxu0 %v3492
    %3580 = vmatmul.bf16.gmra.mxu0 %v3556
    %v3581 = vpop.f32.mrf.mxu0
    %v3582 = vadd.f32 %v3364, %v3581
    %v3583 = vpop.f32.mrf.mxu0
    %v3584 = vadd.f32 %v3364, %v3583
    %3585 = vdwg.mxu0
    %3586 = vmatpush.bf16.msra.mxu0 0
    %3587 = vmatpush.bf16.msra.mxu0 0
    %3588 = vmatpush.bf16.msra.mxu0 0
    %3589 = vmatpush.bf16.msra.mxu0 0
    %3590 = vmatpush.bf16.msra.mxu0 0
    %3591 = vmatpush.bf16.msra.mxu0 0
    %3592 = vmatpush.bf16.msra.mxu0 %v3509
    %3593 = vmatpush.bf16.msra.mxu0 %v3493
    %3594 = vmatmul.bf16.gmra.mxu0 %v3556
    %v3595 = vpop.f32.mrf.mxu0
    %v3596 = vadd.f32 %v3365, %v3595
    %v3597 = vpop.f32.mrf.mxu0
    %v3598 = vadd.f32 %v3365, %v3597
    %3599 = vdwg.mxu0
    %3600 = vmatpush.bf16.msra.mxu0 0
    %3601 = vmatpush.bf16.msra.mxu0 0
    %3602 = vmatpush.bf16.msra.mxu0 0
    %3603 = vmatpush.bf16.msra.mxu0 0
    %3604 = vmatpush.bf16.msra.mxu0 0
    %3605 = vmatpush.bf16.msra.mxu0 0
    %3606 = vmatpush.bf16.msra.mxu0 %v3510
    %3607 = vmatpush.bf16.msra.mxu0 %v3494
    %3608 = vmatmul.bf16.gmra.mxu0 %v3556
    %v3609 = vpop.f32.mrf.mxu0
    %v3610 = vadd.f32 %v3366, %v3609
    %v3611 = vpop.f32.mrf.mxu0
    %v3612 = vadd.f32 %v3366, %v3611
    %3613 = vdwg.mxu0
    %3614 = vmatpush.bf16.msra.mxu0 0
    %3615 = vmatpush.bf16.msra.mxu0 0
    %3616 = vmatpush.bf16.msra.mxu0 0
    %3617 = vmatpush.bf16.msra.mxu0 0
    %3618 = vmatpush.bf16.msra.mxu0 0
    %3619 = vmatpush.bf16.msra.mxu0 0
    %3620 = vmatpush.bf16.msra.mxu0 %v3511
    %3621 = vmatpush.bf16.msra.mxu0 %v3495
    %3622 = vmatmul.bf16.gmra.mxu0 %v3556
    %v3623 = vpop.f32.mrf.mxu0
    %v3624 = vadd.f32 %v3367, %v3623
    %v3625 = vpop.f32.mrf.mxu0
    %v3626 = vadd.f32 %v3367, %v3625
    %3627 = vdwg.mxu0
    %3628 = vmatpush.bf16.msra.mxu0 0
    %3629 = vmatpush.bf16.msra.mxu0 0
    %3630 = vmatpush.bf16.msra.mxu0 0
    %3631 = vmatpush.bf16.msra.mxu0 0
    %3632 = vmatpush.bf16.msra.mxu0 0
    %3633 = vmatpush.bf16.msra.mxu0 0
    %3634 = vmatpush.bf16.msra.mxu0 %v3512
    %3635 = vmatpush.bf16.msra.mxu0 %v3496
    %3636 = vmatmul.bf16.gmra.mxu0 %v3556
    %v3637 = vpop.f32.mrf.mxu0
    %v3638 = vadd.f32 %v3368, %v3637
    %v3639 = vpop.f32.mrf.mxu0
    %v3640 = vadd.f32 %v3368, %v3639
    %3641 = vdwg.mxu0
    %3642 = vmatpush.bf16.msra.mxu0 0
    %3643 = vmatpush.bf16.msra.mxu0 0
    %3644 = vmatpush.bf16.msra.mxu0 0
    %3645 = vmatpush.bf16.msra.mxu0 0
    %3646 = vmatpush.bf16.msra.mxu0 0
    %3647 = vmatpush.bf16.msra.mxu0 0
    %3648 = vmatpush.bf16.msra.mxu0 %v3513
    %3649 = vmatpush.bf16.msra.mxu0 %v3497
    %3650 = vmatmul.bf16.gmra.mxu0 %v3556
    %v3651 = vpop.f32.mrf.mxu0
    %v3652 = vadd.f32 %v3369, %v3651
    %v3653 = vpop.f32.mrf.mxu0
    %v3654 = vadd.f32 %v3369, %v3653
    %3655 = vdwg.mxu0
    %3656 = vmatpush.bf16.msra.mxu0 0
    %3657 = vmatpush.bf16.msra.mxu0 0
    %3658 = vmatpush.bf16.msra.mxu0 0
    %3659 = vmatpush.bf16.msra.mxu0 0
    %3660 = vmatpush.bf16.msra.mxu0 0
    %3661 = vmatpush.bf16.msra.mxu0 0
    %3662 = vmatpush.bf16.msra.mxu0 %v3514
    %3663 = vmatpush.bf16.msra.mxu0 %v3498
    %3664 = vmatmul.bf16.gmra.mxu0 %v3556
    %v3665 = vpop.f32.mrf.mxu0
    %v3666 = vadd.f32 %v3370, %v3665
    %v3667 = vpop.f32.mrf.mxu0
    %v3668 = vadd.f32 %v3370, %v3667
    %3669 = vdwg.mxu0
    %3670 = vmatpush.bf16.msra.mxu0 0
    %3671 = vmatpush.bf16.msra.mxu0 0
    %3672 = vmatpush.bf16.msra.mxu0 0
    %3673 = vmatpush.bf16.msra.mxu0 0
    %3674 = vmatpush.bf16.msra.mxu0 0
    %3675 = vmatpush.bf16.msra.mxu0 0
    %3676 = vmatpush.bf16.msra.mxu0 %v3515
    %3677 = vmatpush.bf16.msra.mxu0 %v3499
    %3678 = vmatmul.bf16.gmra.mxu0 %v3556
    %v3679 = vpop.f32.mrf.mxu0
    %v3680 = vadd.f32 %v3371, %v3679
    %v3681 = vpop.f32.mrf.mxu0
    %v3682 = vadd.f32 %v3371, %v3681
    %3683 = vdwg.mxu0
    %3684 = vmatpush.bf16.msra.mxu0 0
    %3685 = vmatpush.bf16.msra.mxu0 0
    %3686 = vmatpush.bf16.msra.mxu0 0
    %3687 = vmatpush.bf16.msra.mxu0 0
    %3688 = vmatpush.bf16.msra.mxu0 0
    %3689 = vmatpush.bf16.msra.mxu0 0
    %3690 = vmatpush.bf16.msra.mxu0 %v3516
    %3691 = vmatpush.bf16.msra.mxu0 %v3500
    %3692 = vmatmul.bf16.gmra.mxu0 %v3556
    %v3693 = vpop.f32.mrf.mxu0
    %v3694 = vadd.f32 %v3372, %v3693
    %v3695 = vpop.f32.mrf.mxu0
    %v3696 = vadd.f32 %v3372, %v3695
    %3697 = vdwg.mxu0
    %3698 = vmatpush.bf16.msra.mxu0 0
    %3699 = vmatpush.bf16.msra.mxu0 0
    %3700 = vmatpush.bf16.msra.mxu0 0
    %3701 = vmatpush.bf16.msra.mxu0 0
    %3702 = vmatpush.bf16.msra.mxu0 0
    %3703 = vmatpush.bf16.msra.mxu0 0
    %3704 = vmatpush.bf16.msra.mxu0 %v3517
    %3705 = vmatpush.bf16.msra.mxu0 %v3501
    %3706 = vmatmul.bf16.gmra.mxu0 %v3556
    %v3707 = vpop.f32.mrf.mxu0
    %v3708 = vadd.f32 %v3373, %v3707
    %v3709 = vpop.f32.mrf.mxu0
    %v3710 = vadd.f32 %v3373, %v3709
    %3711 = vdwg.mxu0
    %3712 = vmatpush.bf16.msra.mxu0 0
    %3713 = vmatpush.bf16.msra.mxu0 0
    %3714 = vmatpush.bf16.msra.mxu0 0
    %3715 = vmatpush.bf16.msra.mxu0 0
    %3716 = vmatpush.bf16.msra.mxu0 0
    %3717 = vmatpush.bf16.msra.mxu0 0
    %3718 = vmatpush.bf16.msra.mxu0 %v3518
    %3719 = vmatpush.bf16.msra.mxu0 %v3502
    %3720 = vmatmul.bf16.gmra.mxu0 %v3556
    %v3721 = vpop.f32.mrf.mxu0
    %v3722 = vadd.f32 %v3374, %v3721
    %v3723 = vpop.f32.mrf.mxu0
    %v3724 = vadd.f32 %v3374, %v3723
    %3725 = vdwg.mxu0
    %3726 = vmatpush.bf16.msra.mxu0 0
    %3727 = vmatpush.bf16.msra.mxu0 0
    %3728 = vmatpush.bf16.msra.mxu0 0
    %3729 = vmatpush.bf16.msra.mxu0 0
    %3730 = vmatpush.bf16.msra.mxu0 0
    %3731 = vmatpush.bf16.msra.mxu0 0
    %3732 = vmatpush.bf16.msra.mxu0 %v3519
    %3733 = vmatpush.bf16.msra.mxu0 %v3503
    %3734 = vmatmul.bf16.gmra.mxu0 %v3556
    %v3735 = vpop.f32.mrf.mxu0
    %v3736 = vadd.f32 %v3375, %v3735
    %v3737 = vpop.f32.mrf.mxu0
    %v3738 = vadd.f32 %v3375, %v3737
    %3739 = vdwg.mxu0
    %3740 = vmatpush.bf16.msra.mxu0 0
    %3741 = vmatpush.bf16.msra.mxu0 0
    %3742 = vmatpush.bf16.msra.mxu0 0
    %3743 = vmatpush.bf16.msra.mxu0 0
    %3744 = vmatpush.bf16.msra.mxu0 0
    %3745 = vmatpush.bf16.msra.mxu0 0
    %3746 = vmatpush.bf16.msra.mxu0 %v3520
    %3747 = vmatpush.bf16.msra.mxu0 %v3504
    %3748 = vmatmul.bf16.gmra.mxu0 %v3556
    %v3749 = vpop.f32.mrf.mxu0
    %v3750 = vadd.f32 %v3376, %v3749
    %v3751 = vpop.f32.mrf.mxu0
    %v3752 = vadd.f32 %v3376, %v3751
    %3753 = vdwg.mxu0
    %3754 = vmatpush.bf16.msra.mxu0 0
    %3755 = vmatpush.bf16.msra.mxu0 0
    %3756 = vmatpush.bf16.msra.mxu0 0
    %3757 = vmatpush.bf16.msra.mxu0 0
    %3758 = vmatpush.bf16.msra.mxu0 0
    %3759 = vmatpush.bf16.msra.mxu0 0
    %3760 = vmatpush.bf16.msra.mxu0 %v3521
    %3761 = vmatpush.bf16.msra.mxu0 %v3505
    %3762 = vmatmul.bf16.gmra.mxu0 %v3556
    %v3763 = vpop.f32.mrf.mxu0
    %v3764 = vadd.f32 %v3377, %v3763
    %v3765 = vpop.f32.mrf.mxu0
    %v3766 = vadd.f32 %v3377, %v3765
    %3767 = vdwg.mxu0
    %3768 = vmatpush.bf16.msra.mxu0 0
    %3769 = vmatpush.bf16.msra.mxu0 0
    %3770 = vmatpush.bf16.msra.mxu0 0
    %3771 = vmatpush.bf16.msra.mxu0 0
    %3772 = vmatpush.bf16.msra.mxu0 0
    %3773 = vmatpush.bf16.msra.mxu0 0
    %3774 = vmatpush.bf16.msra.mxu0 %v3522
    %3775 = vmatpush.bf16.msra.mxu0 %v3506
    %3776 = vmatmul.bf16.gmra.mxu0 %v3556
    %v3777 = vpop.f32.mrf.mxu0
    %v3778 = vadd.f32 %v3378, %v3777
    %v3779 = vpop.f32.mrf.mxu0
    %v3780 = vadd.f32 %v3378, %v3779
    %3781 = vdwg.mxu0
    %v3782 = vmax.f32 %v3568, 0.0
    %v3783 = vmax.f32 %v3582, 0.0
    %v3784 = vmax.f32 %v3596, 0.0
    %v3785 = vmax.f32 %v3610, 0.0
    %v3786 = vmax.f32 %v3624, 0.0
    %v3787 = vmax.f32 %v3638, 0.0
    %v3788 = vmax.f32 %v3652, 0.0
    %v3789 = vmax.f32 %v3666, 0.0
    %v3790 = vmax.f32 %v3680, 0.0
    %v3791 = vmax.f32 %v3694, 0.0
    %v3792 = vmax.f32 %v3708, 0.0
    %v3793 = vmax.f32 %v3722, 0.0
    %v3794 = vmax.f32 %v3736, 0.0
    %v3795 = vmax.f32 %v3750, 0.0
    %v3796 = vmax.f32 %v3764, 0.0
    %v3797 = vmax.f32 %v3778, 0.0
    %v3798 = vmax.f32 %v3570, 0.0
    %v3799 = vmax.f32 %v3584, 0.0
    %v3800 = vmax.f32 %v3598, 0.0
    %v3801 = vmax.f32 %v3612, 0.0
    %v3802 = vmax.f32 %v3626, 0.0
    %v3803 = vmax.f32 %v3640, 0.0
    %v3804 = vmax.f32 %v3654, 0.0
    %v3805 = vmax.f32 %v3668, 0.0
    %v3806 = vmax.f32 %v3682, 0.0
    %v3807 = vmax.f32 %v3696, 0.0
    %v3808 = vmax.f32 %v3710, 0.0
    %v3809 = vmax.f32 %v3724, 0.0
    %v3810 = vmax.f32 %v3738, 0.0
    %v3811 = vmax.f32 %v3752, 0.0
    %v3812 = vmax.f32 %v3766, 0.0
    %v3813 = vmax.f32 %v3780, 0.0
    %v3814 = vpack.c.bf16 %v3798, %v3782
    %v3815 = vpack.c.bf16 %v3799, %v3783
    %v3816 = vpack.c.bf16 %v3800, %v3784
    %v3817 = vpack.c.bf16 %v3801, %v3785
    %v3818 = vpack.c.bf16 %v3802, %v3786
    %v3819 = vpack.c.bf16 %v3803, %v3787
    %v3820 = vpack.c.bf16 %v3804, %v3788
    %v3821 = vpack.c.bf16 %v3805, %v3789
    %v3822 = vpack.c.bf16 %v3806, %v3790
    %v3823 = vpack.c.bf16 %v3807, %v3791
    %v3824 = vpack.c.bf16 %v3808, %v3792
    %v3825 = vpack.c.bf16 %v3809, %v3793
    %v3826 = vpack.c.bf16 %v3810, %v3794
    %v3827 = vpack.c.bf16 %v3811, %v3795
    %v3828 = vpack.c.bf16 %v3812, %v3796
    %v3829 = vpack.c.bf16 %v3813, %v3797
    %s3830 = scalar_lea.vmem %s9, 1024
    %v3831 = vld [vmem:[%s3830] sm:$0xf]
    %v3832 = vld [vmem:[%s3830 + $0x4] sm:$0xf]
    %v3833 = vld [vmem:[%s3830 + $0x8] sm:$0xf]
    %v3834 = vld [vmem:[%s3830 + $0xc] sm:$0xf]
    %v3835 = vld [vmem:[%s3830 + $0x10] sm:$0xf]
    %v3836 = vld [vmem:[%s3830 + $0x14] sm:$0xf]
    %v3837 = vld [vmem:[%s3830 + $0x18] sm:$0xf]
    %v3838 = vld [vmem:[%s3830 + $0x1c] sm:$0xf]
    %v3839 = vld [vmem:[%s3830 + $0x20] sm:$0xf]
    %v3840 = vld [vmem:[%s3830 + $0x24] sm:$0xf]
    %v3841 = vld [vmem:[%s3830 + $0x28] sm:$0xf]
    %v3842 = vld [vmem:[%s3830 + $0x2c] sm:$0xf]
    %v3843 = vld [vmem:[%s3830 + $0x30] sm:$0xf]
    %v3844 = vld [vmem:[%s3830 + $0x34] sm:$0xf]
    %v3845 = vld [vmem:[%s3830 + $0x38] sm:$0xf]
    %v3846 = vld [vmem:[%s3830 + $0x3c] sm:$0xf]
    %v3847 = vld [vmem:[%s3830 + $0x40] sm:$0xf]
    %v3848 = vld [vmem:[%s3830 + $0x44] sm:$0xf]
    %v3849 = vld [vmem:[%s3830 + $0x48] sm:$0xf]
    %v3850 = vld [vmem:[%s3830 + $0x4c] sm:$0xf]
    %v3851 = vld [vmem:[%s3830 + $0x50] sm:$0xf]
    %v3852 = vld [vmem:[%s3830 + $0x54] sm:$0xf]
    %v3853 = vld [vmem:[%s3830 + $0x58] sm:$0xf]
    %v3854 = vld [vmem:[%s3830 + $0x5c] sm:$0xf]
    %v3855 = vld [vmem:[%s3830 + $0x60] sm:$0xf]
    %v3856 = vld [vmem:[%s3830 + $0x64] sm:$0xf]
    %v3857 = vld [vmem:[%s3830 + $0x68] sm:$0xf]
    %v3858 = vld [vmem:[%s3830 + $0x6c] sm:$0xf]
    %v3859 = vld [vmem:[%s3830 + $0x70] sm:$0xf]
    %v3860 = vld [vmem:[%s3830 + $0x74] sm:$0xf]
    %v3861 = vld [vmem:[%s3830 + $0x78] sm:$0xf]
    %v3862 = vld [vmem:[%s3830 + $0x7c] sm:$0xf]
    %v3863 = vld [vmem:[%s3830 + $0x80] sm:$0xf]
    %v3864 = vld [vmem:[%s3830 + $0x84] sm:$0xf]
    %v3865 = vld [vmem:[%s3830 + $0x88] sm:$0xf]
    %v3866 = vld [vmem:[%s3830 + $0x8c] sm:$0xf]
    %v3867 = vld [vmem:[%s3830 + $0x90] sm:$0xf]
    %v3868 = vld [vmem:[%s3830 + $0x94] sm:$0xf]
    %v3869 = vld [vmem:[%s3830 + $0x98] sm:$0xf]
    %v3870 = vld [vmem:[%s3830 + $0x9c] sm:$0xf]
    %v3871 = vld [vmem:[%s3830 + $0xa0] sm:$0xf]
    %v3872 = vld [vmem:[%s3830 + $0xa4] sm:$0xf]
    %v3873 = vld [vmem:[%s3830 + $0xa8] sm:$0xf]
    %v3874 = vld [vmem:[%s3830 + $0xac] sm:$0xf]
    %v3875 = vld [vmem:[%s3830 + $0xb0] sm:$0xf]
    %v3876 = vld [vmem:[%s3830 + $0xb4] sm:$0xf]
    %v3877 = vld [vmem:[%s3830 + $0xb8] sm:$0xf]
    %v3878 = vld [vmem:[%s3830 + $0xbc] sm:$0xf]
    %v3879 = vld [vmem:[%s3830 + $0xc0] sm:$0xf]
    %v3880 = vld [vmem:[%s3830 + $0xc4] sm:$0xf]
    %v3881 = vld [vmem:[%s3830 + $0xc8] sm:$0xf]
    %v3882 = vld [vmem:[%s3830 + $0xcc] sm:$0xf]
    %v3883 = vld [vmem:[%s3830 + $0xd0] sm:$0xf]
    %v3884 = vld [vmem:[%s3830 + $0xd4] sm:$0xf]
    %v3885 = vld [vmem:[%s3830 + $0xd8] sm:$0xf]
    %v3886 = vld [vmem:[%s3830 + $0xdc] sm:$0xf]
    %v3887 = vld [vmem:[%s3830 + $0xe0] sm:$0xf]
    %v3888 = vld [vmem:[%s3830 + $0xe4] sm:$0xf]
    %v3889 = vld [vmem:[%s3830 + $0xe8] sm:$0xf]
    %v3890 = vld [vmem:[%s3830 + $0xec] sm:$0xf]
    %v3891 = vld [vmem:[%s3830 + $0xf0] sm:$0xf]
    %v3892 = vld [vmem:[%s3830 + $0xf4] sm:$0xf]
    %v3893 = vld [vmem:[%s3830 + $0xf8] sm:$0xf]
    %v3894 = vld [vmem:[%s3830 + $0xfc] sm:$0xf]
    %v3895 = vld [vmem:[%s3830 + $0x100] sm:$0xf]
    %v3896 = vld [vmem:[%s3830 + $0x104] sm:$0xf]
    %v3897 = vld [vmem:[%s3830 + $0x108] sm:$0xf]
    %v3898 = vld [vmem:[%s3830 + $0x10c] sm:$0xf]
    %v3899 = vld [vmem:[%s3830 + $0x110] sm:$0xf]
    %v3900 = vld [vmem:[%s3830 + $0x114] sm:$0xf]
    %v3901 = vld [vmem:[%s3830 + $0x118] sm:$0xf]
    %v3902 = vld [vmem:[%s3830 + $0x11c] sm:$0xf]
    %v3903 = vld [vmem:[%s3830 + $0x120] sm:$0xf]
    %v3904 = vld [vmem:[%s3830 + $0x124] sm:$0xf]
    %v3905 = vld [vmem:[%s3830 + $0x128] sm:$0xf]
    %v3906 = vld [vmem:[%s3830 + $0x12c] sm:$0xf]
    %v3907 = vld [vmem:[%s3830 + $0x130] sm:$0xf]
    %v3908 = vld [vmem:[%s3830 + $0x134] sm:$0xf]
    %v3909 = vld [vmem:[%s3830 + $0x138] sm:$0xf]
    %v3910 = vld [vmem:[%s3830 + $0x13c] sm:$0xf]
    %v3911 = vld [vmem:[%s3830 + $0x140] sm:$0xf]
    %v3912 = vld [vmem:[%s3830 + $0x144] sm:$0xf]
    %v3913 = vld [vmem:[%s3830 + $0x148] sm:$0xf]
    %v3914 = vld [vmem:[%s3830 + $0x14c] sm:$0xf]
    %v3915 = vld [vmem:[%s3830 + $0x150] sm:$0xf]
    %v3916 = vld [vmem:[%s3830 + $0x154] sm:$0xf]
    %v3917 = vld [vmem:[%s3830 + $0x158] sm:$0xf]
    %v3918 = vld [vmem:[%s3830 + $0x15c] sm:$0xf]
    %v3919 = vld [vmem:[%s3830 + $0x160] sm:$0xf]
    %v3920 = vld [vmem:[%s3830 + $0x164] sm:$0xf]
    %v3921 = vld [vmem:[%s3830 + $0x168] sm:$0xf]
    %v3922 = vld [vmem:[%s3830 + $0x16c] sm:$0xf]
    %v3923 = vld [vmem:[%s3830 + $0x170] sm:$0xf]
    %v3924 = vld [vmem:[%s3830 + $0x174] sm:$0xf]
    %v3925 = vld [vmem:[%s3830 + $0x178] sm:$0xf]
    %v3926 = vld [vmem:[%s3830 + $0x17c] sm:$0xf]
    %v3927 = vld [vmem:[%s3830 + $0x180] sm:$0xf]
    %v3928 = vld [vmem:[%s3830 + $0x184] sm:$0xf]
    %v3929 = vld [vmem:[%s3830 + $0x188] sm:$0xf]
    %v3930 = vld [vmem:[%s3830 + $0x18c] sm:$0xf]
    %v3931 = vld [vmem:[%s3830 + $0x190] sm:$0xf]
    %v3932 = vld [vmem:[%s3830 + $0x194] sm:$0xf]
    %v3933 = vld [vmem:[%s3830 + $0x198] sm:$0xf]
    %v3934 = vld [vmem:[%s3830 + $0x19c] sm:$0xf]
    %v3935 = vld [vmem:[%s3830 + $0x1a0] sm:$0xf]
    %v3936 = vld [vmem:[%s3830 + $0x1a4] sm:$0xf]
    %v3937 = vld [vmem:[%s3830 + $0x1a8] sm:$0xf]
    %v3938 = vld [vmem:[%s3830 + $0x1ac] sm:$0xf]
    %v3939 = vld [vmem:[%s3830 + $0x1b0] sm:$0xf]
    %v3940 = vld [vmem:[%s3830 + $0x1b4] sm:$0xf]
    %v3941 = vld [vmem:[%s3830 + $0x1b8] sm:$0xf]
    %v3942 = vld [vmem:[%s3830 + $0x1bc] sm:$0xf]
    %v3943 = vld [vmem:[%s3830 + $0x1c0] sm:$0xf]
    %v3944 = vld [vmem:[%s3830 + $0x1c4] sm:$0xf]
    %v3945 = vld [vmem:[%s3830 + $0x1c8] sm:$0xf]
    %v3946 = vld [vmem:[%s3830 + $0x1cc] sm:$0xf]
    %v3947 = vld [vmem:[%s3830 + $0x1d0] sm:$0xf]
    %v3948 = vld [vmem:[%s3830 + $0x1d4] sm:$0xf]
    %v3949 = vld [vmem:[%s3830 + $0x1d8] sm:$0xf]
    %v3950 = vld [vmem:[%s3830 + $0x1dc] sm:$0xf]
    %v3951 = vld [vmem:[%s3830 + $0x1e0] sm:$0xf]
    %v3952 = vld [vmem:[%s3830 + $0x1e4] sm:$0xf]
    %v3953 = vld [vmem:[%s3830 + $0x1e8] sm:$0xf]
    %v3954 = vld [vmem:[%s3830 + $0x1ec] sm:$0xf]
    %v3955 = vld [vmem:[%s3830 + $0x1f0] sm:$0xf]
    %v3956 = vld [vmem:[%s3830 + $0x1f4] sm:$0xf]
    %v3957 = vld [vmem:[%s3830 + $0x1f8] sm:$0xf]
    %v3958 = vld [vmem:[%s3830 + $0x1fc] sm:$0xf]
    %v3959 = vld [vmem:[%s3830 + $0x200] sm:$0xf]
    %v3960 = vld [vmem:[%s3830 + $0x204] sm:$0xf]
    %v3961 = vld [vmem:[%s3830 + $0x208] sm:$0xf]
    %v3962 = vld [vmem:[%s3830 + $0x20c] sm:$0xf]
    %v3963 = vld [vmem:[%s3830 + $0x210] sm:$0xf]
    %v3964 = vld [vmem:[%s3830 + $0x214] sm:$0xf]
    %v3965 = vld [vmem:[%s3830 + $0x218] sm:$0xf]
    %v3966 = vld [vmem:[%s3830 + $0x21c] sm:$0xf]
    %v3967 = vld [vmem:[%s3830 + $0x220] sm:$0xf]
    %v3968 = vld [vmem:[%s3830 + $0x224] sm:$0xf]
    %v3969 = vld [vmem:[%s3830 + $0x228] sm:$0xf]
    %v3970 = vld [vmem:[%s3830 + $0x22c] sm:$0xf]
    %v3971 = vld [vmem:[%s3830 + $0x230] sm:$0xf]
    %v3972 = vld [vmem:[%s3830 + $0x234] sm:$0xf]
    %v3973 = vld [vmem:[%s3830 + $0x238] sm:$0xf]
    %v3974 = vld [vmem:[%s3830 + $0x23c] sm:$0xf]
    %v3975 = vld [vmem:[%s3830 + $0x240] sm:$0xf]
    %v3976 = vld [vmem:[%s3830 + $0x244] sm:$0xf]
    %v3977 = vld [vmem:[%s3830 + $0x248] sm:$0xf]
    %v3978 = vld [vmem:[%s3830 + $0x24c] sm:$0xf]
    %v3979 = vld [vmem:[%s3830 + $0x250] sm:$0xf]
    %v3980 = vld [vmem:[%s3830 + $0x254] sm:$0xf]
    %v3981 = vld [vmem:[%s3830 + $0x258] sm:$0xf]
    %v3982 = vld [vmem:[%s3830 + $0x25c] sm:$0xf]
    %v3983 = vld [vmem:[%s3830 + $0x260] sm:$0xf]
    %v3984 = vld [vmem:[%s3830 + $0x264] sm:$0xf]
    %v3985 = vld [vmem:[%s3830 + $0x268] sm:$0xf]
    %v3986 = vld [vmem:[%s3830 + $0x26c] sm:$0xf]
    %v3987 = vld [vmem:[%s3830 + $0x270] sm:$0xf]
    %v3988 = vld [vmem:[%s3830 + $0x274] sm:$0xf]
    %v3989 = vld [vmem:[%s3830 + $0x278] sm:$0xf]
    %v3990 = vld [vmem:[%s3830 + $0x27c] sm:$0xf]
    %v3991 = vld [vmem:[%s3830 + $0x280] sm:$0xf]
    %v3992 = vld [vmem:[%s3830 + $0x284] sm:$0xf]
    %v3993 = vld [vmem:[%s3830 + $0x288] sm:$0xf]
    %v3994 = vld [vmem:[%s3830 + $0x28c] sm:$0xf]
    %v3995 = vld [vmem:[%s3830 + $0x290] sm:$0xf]
    %v3996 = vld [vmem:[%s3830 + $0x294] sm:$0xf]
    %v3997 = vld [vmem:[%s3830 + $0x298] sm:$0xf]
    %v3998 = vld [vmem:[%s3830 + $0x29c] sm:$0xf]
    %v3999 = vld [vmem:[%s3830 + $0x2a0] sm:$0xf]
    %v4000 = vld [vmem:[%s3830 + $0x2a4] sm:$0xf]
    %v4001 = vld [vmem:[%s3830 + $0x2a8] sm:$0xf]
    %v4002 = vld [vmem:[%s3830 + $0x2ac] sm:$0xf]
    %v4003 = vld [vmem:[%s3830 + $0x2b0] sm:$0xf]
    %v4004 = vld [vmem:[%s3830 + $0x2b4] sm:$0xf]
    %v4005 = vld [vmem:[%s3830 + $0x2b8] sm:$0xf]
    %v4006 = vld [vmem:[%s3830 + $0x2bc] sm:$0xf]
    %v4007 = vld [vmem:[%s3830 + $0x2c0] sm:$0xf]
    %v4008 = vld [vmem:[%s3830 + $0x2c4] sm:$0xf]
    %v4009 = vld [vmem:[%s3830 + $0x2c8] sm:$0xf]
    %v4010 = vld [vmem:[%s3830 + $0x2cc] sm:$0xf]
    %v4011 = vld [vmem:[%s3830 + $0x2d0] sm:$0xf]
    %v4012 = vld [vmem:[%s3830 + $0x2d4] sm:$0xf]
    %v4013 = vld [vmem:[%s3830 + $0x2d8] sm:$0xf]
    %v4014 = vld [vmem:[%s3830 + $0x2dc] sm:$0xf]
    %v4015 = vld [vmem:[%s3830 + $0x2e0] sm:$0xf]
    %v4016 = vld [vmem:[%s3830 + $0x2e4] sm:$0xf]
    %v4017 = vld [vmem:[%s3830 + $0x2e8] sm:$0xf]
    %v4018 = vld [vmem:[%s3830 + $0x2ec] sm:$0xf]
    %v4019 = vld [vmem:[%s3830 + $0x2f0] sm:$0xf]
    %v4020 = vld [vmem:[%s3830 + $0x2f4] sm:$0xf]
    %v4021 = vld [vmem:[%s3830 + $0x2f8] sm:$0xf]
    %v4022 = vld [vmem:[%s3830 + $0x2fc] sm:$0xf]
    %v4023 = vld [vmem:[%s3830 + $0x300] sm:$0xf]
    %v4024 = vld [vmem:[%s3830 + $0x304] sm:$0xf]
    %v4025 = vld [vmem:[%s3830 + $0x308] sm:$0xf]
    %v4026 = vld [vmem:[%s3830 + $0x30c] sm:$0xf]
    %v4027 = vld [vmem:[%s3830 + $0x310] sm:$0xf]
    %v4028 = vld [vmem:[%s3830 + $0x314] sm:$0xf]
    %v4029 = vld [vmem:[%s3830 + $0x318] sm:$0xf]
    %v4030 = vld [vmem:[%s3830 + $0x31c] sm:$0xf]
    %v4031 = vld [vmem:[%s3830 + $0x320] sm:$0xf]
    %v4032 = vld [vmem:[%s3830 + $0x324] sm:$0xf]
    %v4033 = vld [vmem:[%s3830 + $0x328] sm:$0xf]
    %v4034 = vld [vmem:[%s3830 + $0x32c] sm:$0xf]
    %v4035 = vld [vmem:[%s3830 + $0x330] sm:$0xf]
    %v4036 = vld [vmem:[%s3830 + $0x334] sm:$0xf]
    %v4037 = vld [vmem:[%s3830 + $0x338] sm:$0xf]
    %v4038 = vld [vmem:[%s3830 + $0x33c] sm:$0xf]
    %v4039 = vld [vmem:[%s3830 + $0x340] sm:$0xf]
    %v4040 = vld [vmem:[%s3830 + $0x344] sm:$0xf]
    %v4041 = vld [vmem:[%s3830 + $0x348] sm:$0xf]
    %v4042 = vld [vmem:[%s3830 + $0x34c] sm:$0xf]
    %v4043 = vld [vmem:[%s3830 + $0x350] sm:$0xf]
    %v4044 = vld [vmem:[%s3830 + $0x354] sm:$0xf]
    %v4045 = vld [vmem:[%s3830 + $0x358] sm:$0xf]
    %v4046 = vld [vmem:[%s3830 + $0x35c] sm:$0xf]
    %v4047 = vld [vmem:[%s3830 + $0x360] sm:$0xf]
    %v4048 = vld [vmem:[%s3830 + $0x364] sm:$0xf]
    %v4049 = vld [vmem:[%s3830 + $0x368] sm:$0xf]
    %v4050 = vld [vmem:[%s3830 + $0x36c] sm:$0xf]
    %v4051 = vld [vmem:[%s3830 + $0x370] sm:$0xf]
    %v4052 = vld [vmem:[%s3830 + $0x374] sm:$0xf]
    %v4053 = vld [vmem:[%s3830 + $0x378] sm:$0xf]
    %v4054 = vld [vmem:[%s3830 + $0x37c] sm:$0xf]
    %v4055 = vld [vmem:[%s3830 + $0x380] sm:$0xf]
    %v4056 = vld [vmem:[%s3830 + $0x384] sm:$0xf]
    %v4057 = vld [vmem:[%s3830 + $0x388] sm:$0xf]
    %v4058 = vld [vmem:[%s3830 + $0x38c] sm:$0xf]
    %v4059 = vld [vmem:[%s3830 + $0x390] sm:$0xf]
    %v4060 = vld [vmem:[%s3830 + $0x394] sm:$0xf]
    %v4061 = vld [vmem:[%s3830 + $0x398] sm:$0xf]
    %v4062 = vld [vmem:[%s3830 + $0x39c] sm:$0xf]
    %v4063 = vld [vmem:[%s3830 + $0x3a0] sm:$0xf]
    %v4064 = vld [vmem:[%s3830 + $0x3a4] sm:$0xf]
    %v4065 = vld [vmem:[%s3830 + $0x3a8] sm:$0xf]
    %v4066 = vld [vmem:[%s3830 + $0x3ac] sm:$0xf]
    %v4067 = vld [vmem:[%s3830 + $0x3b0] sm:$0xf]
    %v4068 = vld [vmem:[%s3830 + $0x3b4] sm:$0xf]
    %v4069 = vld [vmem:[%s3830 + $0x3b8] sm:$0xf]
    %v4070 = vld [vmem:[%s3830 + $0x3bc] sm:$0xf]
    %v4071 = vld [vmem:[%s3830 + $0x3c0] sm:$0xf]
    %v4072 = vld [vmem:[%s3830 + $0x3c4] sm:$0xf]
    %v4073 = vld [vmem:[%s3830 + $0x3c8] sm:$0xf]
    %v4074 = vld [vmem:[%s3830 + $0x3cc] sm:$0xf]
    %v4075 = vld [vmem:[%s3830 + $0x3d0] sm:$0xf]
    %v4076 = vld [vmem:[%s3830 + $0x3d4] sm:$0xf]
    %v4077 = vld [vmem:[%s3830 + $0x3d8] sm:$0xf]
    %v4078 = vld [vmem:[%s3830 + $0x3dc] sm:$0xf]
    %v4079 = vld [vmem:[%s3830 + $0x3e0] sm:$0xf]
    %v4080 = vld [vmem:[%s3830 + $0x3e4] sm:$0xf]
    %v4081 = vld [vmem:[%s3830 + $0x3e8] sm:$0xf]
    %v4082 = vld [vmem:[%s3830 + $0x3ec] sm:$0xf]
    %v4083 = vld [vmem:[%s3830 + $0x3f0] sm:$0xf]
    %v4084 = vld [vmem:[%s3830 + $0x3f4] sm:$0xf]
    %v4085 = vld [vmem:[%s3830 + $0x3f8] sm:$0xf]
    %v4086 = vld [vmem:[%s3830 + $0x3fc] sm:$0xf]
    %s4087 = scalar_lea.vmem %s10, 1
    %v4088 = vld [vmem:[%s4087] sm:$0x1]
    %v4090 = vperm.slane %v4088, 0
    %v4348 = vunpack.c.l.b16 %v3831
    %v4349 = vunpack.c.l.b16 %v3832
    %v4350 = vunpack.c.l.b16 %v3833
    %v4351 = vunpack.c.l.b16 %v3834
    %v4352 = vunpack.c.l.b16 %v3835
    %v4353 = vunpack.c.l.b16 %v3836
    %v4354 = vunpack.c.l.b16 %v3837
    %v4355 = vunpack.c.l.b16 %v3838
    %v4356 = vunpack.c.l.b16 %v3839
    %v4357 = vunpack.c.l.b16 %v3840
    %v4358 = vunpack.c.l.b16 %v3841
    %v4359 = vunpack.c.l.b16 %v3842
    %v4360 = vunpack.c.l.b16 %v3843
    %v4361 = vunpack.c.l.b16 %v3844
    %v4362 = vunpack.c.l.b16 %v3845
    %v4363 = vunpack.c.l.b16 %v3846
    %v4364 = vunpack.c.l.b16 %v3847
    %v4365 = vunpack.c.l.b16 %v3848
    %v4366 = vunpack.c.l.b16 %v3849
    %v4367 = vunpack.c.l.b16 %v3850
    %v4368 = vunpack.c.l.b16 %v3851
    %v4369 = vunpack.c.l.b16 %v3852
    %v4370 = vunpack.c.l.b16 %v3853
    %v4371 = vunpack.c.l.b16 %v3854
    %v4372 = vunpack.c.l.b16 %v3855
    %v4373 = vunpack.c.l.b16 %v3856
    %v4374 = vunpack.c.l.b16 %v3857
    %v4375 = vunpack.c.l.b16 %v3858
    %v4376 = vunpack.c.l.b16 %v3859
    %v4377 = vunpack.c.l.b16 %v3860
    %v4378 = vunpack.c.l.b16 %v3861
    %v4379 = vunpack.c.l.b16 %v3862
    %v4380 = vunpack.c.l.b16 %v3863
    %v4381 = vunpack.c.l.b16 %v3864
    %v4382 = vunpack.c.l.b16 %v3865
    %v4383 = vunpack.c.l.b16 %v3866
    %v4384 = vunpack.c.l.b16 %v3867
    %v4385 = vunpack.c.l.b16 %v3868
    %v4386 = vunpack.c.l.b16 %v3869
    %v4387 = vunpack.c.l.b16 %v3870
    %v4388 = vunpack.c.l.b16 %v3871
    %v4389 = vunpack.c.l.b16 %v3872
    %v4390 = vunpack.c.l.b16 %v3873
    %v4391 = vunpack.c.l.b16 %v3874
    %v4392 = vunpack.c.l.b16 %v3875
    %v4393 = vunpack.c.l.b16 %v3876
    %v4394 = vunpack.c.l.b16 %v3877
    %v4395 = vunpack.c.l.b16 %v3878
    %v4396 = vunpack.c.l.b16 %v3879
    %v4397 = vunpack.c.l.b16 %v3880
    %v4398 = vunpack.c.l.b16 %v3881
    %v4399 = vunpack.c.l.b16 %v3882
    %v4400 = vunpack.c.l.b16 %v3883
    %v4401 = vunpack.c.l.b16 %v3884
    %v4402 = vunpack.c.l.b16 %v3885
    %v4403 = vunpack.c.l.b16 %v3886
    %v4404 = vunpack.c.l.b16 %v3887
    %v4405 = vunpack.c.l.b16 %v3888
    %v4406 = vunpack.c.l.b16 %v3889
    %v4407 = vunpack.c.l.b16 %v3890
    %v4408 = vunpack.c.l.b16 %v3891
    %v4409 = vunpack.c.l.b16 %v3892
    %v4410 = vunpack.c.l.b16 %v3893
    %v4411 = vunpack.c.l.b16 %v3894
    %v4412 = vunpack.c.l.b16 %v3895
    %v4413 = vunpack.c.l.b16 %v3896
    %v4414 = vunpack.c.l.b16 %v3897
    %v4415 = vunpack.c.l.b16 %v3898
    %v4416 = vunpack.c.l.b16 %v3899
    %v4417 = vunpack.c.l.b16 %v3900
    %v4418 = vunpack.c.l.b16 %v3901
    %v4419 = vunpack.c.l.b16 %v3902
    %v4420 = vunpack.c.l.b16 %v3903
    %v4421 = vunpack.c.l.b16 %v3904
    %v4422 = vunpack.c.l.b16 %v3905
    %v4423 = vunpack.c.l.b16 %v3906
    %v4424 = vunpack.c.l.b16 %v3907
    %v4425 = vunpack.c.l.b16 %v3908
    %v4426 = vunpack.c.l.b16 %v3909
    %v4427 = vunpack.c.l.b16 %v3910
    %v4428 = vunpack.c.l.b16 %v3911
    %v4429 = vunpack.c.l.b16 %v3912
    %v4430 = vunpack.c.l.b16 %v3913
    %v4431 = vunpack.c.l.b16 %v3914
    %v4432 = vunpack.c.l.b16 %v3915
    %v4433 = vunpack.c.l.b16 %v3916
    %v4434 = vunpack.c.l.b16 %v3917
    %v4435 = vunpack.c.l.b16 %v3918
    %v4436 = vunpack.c.l.b16 %v3919
    %v4437 = vunpack.c.l.b16 %v3920
    %v4438 = vunpack.c.l.b16 %v3921
    %v4439 = vunpack.c.l.b16 %v3922
    %v4440 = vunpack.c.l.b16 %v3923
    %v4441 = vunpack.c.l.b16 %v3924
    %v4442 = vunpack.c.l.b16 %v3925
    %v4443 = vunpack.c.l.b16 %v3926
    %v4444 = vunpack.c.l.b16 %v3927
    %v4445 = vunpack.c.l.b16 %v3928
    %v4446 = vunpack.c.l.b16 %v3929
    %v4447 = vunpack.c.l.b16 %v3930
    %v4448 = vunpack.c.l.b16 %v3931
    %v4449 = vunpack.c.l.b16 %v3932
    %v4450 = vunpack.c.l.b16 %v3933
    %v4451 = vunpack.c.l.b16 %v3934
    %v4452 = vunpack.c.l.b16 %v3935
    %v4453 = vunpack.c.l.b16 %v3936
    %v4454 = vunpack.c.l.b16 %v3937
    %v4455 = vunpack.c.l.b16 %v3938
    %v4456 = vunpack.c.l.b16 %v3939
    %v4457 = vunpack.c.l.b16 %v3940
    %v4458 = vunpack.c.l.b16 %v3941
    %v4459 = vunpack.c.l.b16 %v3942
    %v4460 = vunpack.c.l.b16 %v3943
    %v4461 = vunpack.c.l.b16 %v3944
    %v4462 = vunpack.c.l.b16 %v3945
    %v4463 = vunpack.c.l.b16 %v3946
    %v4464 = vunpack.c.l.b16 %v3947
    %v4465 = vunpack.c.l.b16 %v3948
    %v4466 = vunpack.c.l.b16 %v3949
    %v4467 = vunpack.c.l.b16 %v3950
    %v4468 = vunpack.c.l.b16 %v3951
    %v4469 = vunpack.c.l.b16 %v3952
    %v4470 = vunpack.c.l.b16 %v3953
    %v4471 = vunpack.c.l.b16 %v3954
    %v4472 = vunpack.c.l.b16 %v3955
    %v4473 = vunpack.c.l.b16 %v3956
    %v4474 = vunpack.c.l.b16 %v3957
    %v4475 = vunpack.c.l.b16 %v3958
    %v4476 = vunpack.c.l.b16 %v3959
    %v4477 = vunpack.c.l.b16 %v3960
    %v4478 = vunpack.c.l.b16 %v3961
    %v4479 = vunpack.c.l.b16 %v3962
    %v4480 = vunpack.c.l.b16 %v3963
    %v4481 = vunpack.c.l.b16 %v3964
    %v4482 = vunpack.c.l.b16 %v3965
    %v4483 = vunpack.c.l.b16 %v3966
    %v4484 = vunpack.c.l.b16 %v3967
    %v4485 = vunpack.c.l.b16 %v3968
    %v4486 = vunpack.c.l.b16 %v3969
    %v4487 = vunpack.c.l.b16 %v3970
    %v4488 = vunpack.c.l.b16 %v3971
    %v4489 = vunpack.c.l.b16 %v3972
    %v4490 = vunpack.c.l.b16 %v3973
    %v4491 = vunpack.c.l.b16 %v3974
    %v4492 = vunpack.c.l.b16 %v3975
    %v4493 = vunpack.c.l.b16 %v3976
    %v4494 = vunpack.c.l.b16 %v3977
    %v4495 = vunpack.c.l.b16 %v3978
    %v4496 = vunpack.c.l.b16 %v3979
    %v4497 = vunpack.c.l.b16 %v3980
    %v4498 = vunpack.c.l.b16 %v3981
    %v4499 = vunpack.c.l.b16 %v3982
    %v4500 = vunpack.c.l.b16 %v3983
    %v4501 = vunpack.c.l.b16 %v3984
    %v4502 = vunpack.c.l.b16 %v3985
    %v4503 = vunpack.c.l.b16 %v3986
    %v4504 = vunpack.c.l.b16 %v3987
    %v4505 = vunpack.c.l.b16 %v3988
    %v4506 = vunpack.c.l.b16 %v3989
    %v4507 = vunpack.c.l.b16 %v3990
    %v4508 = vunpack.c.l.b16 %v3991
    %v4509 = vunpack.c.l.b16 %v3992
    %v4510 = vunpack.c.l.b16 %v3993
    %v4511 = vunpack.c.l.b16 %v3994
    %v4512 = vunpack.c.l.b16 %v3995
    %v4513 = vunpack.c.l.b16 %v3996
    %v4514 = vunpack.c.l.b16 %v3997
    %v4515 = vunpack.c.l.b16 %v3998
    %v4516 = vunpack.c.l.b16 %v3999
    %v4517 = vunpack.c.l.b16 %v4000
    %v4518 = vunpack.c.l.b16 %v4001
    %v4519 = vunpack.c.l.b16 %v4002
    %v4520 = vunpack.c.l.b16 %v4003
    %v4521 = vunpack.c.l.b16 %v4004
    %v4522 = vunpack.c.l.b16 %v4005
    %v4523 = vunpack.c.l.b16 %v4006
    %v4524 = vunpack.c.l.b16 %v4007
    %v4525 = vunpack.c.l.b16 %v4008
    %v4526 = vunpack.c.l.b16 %v4009
    %v4527 = vunpack.c.l.b16 %v4010
    %v4528 = vunpack.c.l.b16 %v4011
    %v4529 = vunpack.c.l.b16 %v4012
    %v4530 = vunpack.c.l.b16 %v4013
    %v4531 = vunpack.c.l.b16 %v4014
    %v4532 = vunpack.c.l.b16 %v4015
    %v4533 = vunpack.c.l.b16 %v4016
    %v4534 = vunpack.c.l.b16 %v4017
    %v4535 = vunpack.c.l.b16 %v4018
    %v4536 = vunpack.c.l.b16 %v4019
    %v4537 = vunpack.c.l.b16 %v4020
    %v4538 = vunpack.c.l.b16 %v4021
    %v4539 = vunpack.c.l.b16 %v4022
    %v4540 = vunpack.c.l.b16 %v4023
    %v4541 = vunpack.c.l.b16 %v4024
    %v4542 = vunpack.c.l.b16 %v4025
    %v4543 = vunpack.c.l.b16 %v4026
    %v4544 = vunpack.c.l.b16 %v4027
    %v4545 = vunpack.c.l.b16 %v4028
    %v4546 = vunpack.c.l.b16 %v4029
    %v4547 = vunpack.c.l.b16 %v4030
    %v4548 = vunpack.c.l.b16 %v4031
    %v4549 = vunpack.c.l.b16 %v4032
    %v4550 = vunpack.c.l.b16 %v4033
    %v4551 = vunpack.c.l.b16 %v4034
    %v4552 = vunpack.c.l.b16 %v4035
    %v4553 = vunpack.c.l.b16 %v4036
    %v4554 = vunpack.c.l.b16 %v4037
    %v4555 = vunpack.c.l.b16 %v4038
    %v4556 = vunpack.c.l.b16 %v4039
    %v4557 = vunpack.c.l.b16 %v4040
    %v4558 = vunpack.c.l.b16 %v4041
    %v4559 = vunpack.c.l.b16 %v4042
    %v4560 = vunpack.c.l.b16 %v4043
    %v4561 = vunpack.c.l.b16 %v4044
    %v4562 = vunpack.c.l.b16 %v4045
    %v4563 = vunpack.c.l.b16 %v4046
    %v4564 = vunpack.c.l.b16 %v4047
    %v4565 = vunpack.c.l.b16 %v4048
    %v4566 = vunpack.c.l.b16 %v4049
    %v4567 = vunpack.c.l.b16 %v4050
    %v4568 = vunpack.c.l.b16 %v4051
    %v4569 = vunpack.c.l.b16 %v4052
    %v4570 = vunpack.c.l.b16 %v4053
    %v4571 = vunpack.c.l.b16 %v4054
    %v4572 = vunpack.c.l.b16 %v4055
    %v4573 = vunpack.c.l.b16 %v4056
    %v4574 = vunpack.c.l.b16 %v4057
    %v4575 = vunpack.c.l.b16 %v4058
    %v4576 = vunpack.c.l.b16 %v4059
    %v4577 = vunpack.c.l.b16 %v4060
    %v4578 = vunpack.c.l.b16 %v4061
    %v4579 = vunpack.c.l.b16 %v4062
    %v4580 = vunpack.c.l.b16 %v4063
    %v4581 = vunpack.c.l.b16 %v4064
    %v4582 = vunpack.c.l.b16 %v4065
    %v4583 = vunpack.c.l.b16 %v4066
    %v4584 = vunpack.c.l.b16 %v4067
    %v4585 = vunpack.c.l.b16 %v4068
    %v4586 = vunpack.c.l.b16 %v4069
    %v4587 = vunpack.c.l.b16 %v4070
    %v4588 = vunpack.c.l.b16 %v4071
    %v4589 = vunpack.c.l.b16 %v4072
    %v4590 = vunpack.c.l.b16 %v4073
    %v4591 = vunpack.c.l.b16 %v4074
    %v4592 = vunpack.c.l.b16 %v4075
    %v4593 = vunpack.c.l.b16 %v4076
    %v4594 = vunpack.c.l.b16 %v4077
    %v4595 = vunpack.c.l.b16 %v4078
    %v4596 = vunpack.c.l.b16 %v4079
    %v4597 = vunpack.c.l.b16 %v4080
    %v4598 = vunpack.c.l.b16 %v4081
    %v4599 = vunpack.c.l.b16 %v4082
    %v4600 = vunpack.c.l.b16 %v4083
    %v4601 = vunpack.c.l.b16 %v4084
    %v4602 = vunpack.c.l.b16 %v4085
    %v4603 = vunpack.c.l.b16 %v4086
    %v4604 = vpack.c.b16 %v4349, %v4348
    %v4605 = vpack.c.b16 %v4351, %v4350
    %v4606 = vpack.c.b16 %v4353, %v4352
    %v4607 = vpack.c.b16 %v4355, %v4354
    %v4608 = vpack.c.b16 %v4357, %v4356
    %v4609 = vpack.c.b16 %v4359, %v4358
    %v4610 = vpack.c.b16 %v4361, %v4360
    %v4611 = vpack.c.b16 %v4363, %v4362
    %v4612 = vpack.c.b16 %v4365, %v4364
    %v4613 = vpack.c.b16 %v4367, %v4366
    %v4614 = vpack.c.b16 %v4369, %v4368
    %v4615 = vpack.c.b16 %v4371, %v4370
    %v4616 = vpack.c.b16 %v4373, %v4372
    %v4617 = vpack.c.b16 %v4375, %v4374
    %v4618 = vpack.c.b16 %v4377, %v4376
    %v4619 = vpack.c.b16 %v4379, %v4378
    %v4620 = vpack.c.b16 %v4381, %v4380
    %v4621 = vpack.c.b16 %v4383, %v4382
    %v4622 = vpack.c.b16 %v4385, %v4384
    %v4623 = vpack.c.b16 %v4387, %v4386
    %v4624 = vpack.c.b16 %v4389, %v4388
    %v4625 = vpack.c.b16 %v4391, %v4390
    %v4626 = vpack.c.b16 %v4393, %v4392
    %v4627 = vpack.c.b16 %v4395, %v4394
    %v4628 = vpack.c.b16 %v4397, %v4396
    %v4629 = vpack.c.b16 %v4399, %v4398
    %v4630 = vpack.c.b16 %v4401, %v4400
    %v4631 = vpack.c.b16 %v4403, %v4402
    %v4632 = vpack.c.b16 %v4405, %v4404
    %v4633 = vpack.c.b16 %v4407, %v4406
    %v4634 = vpack.c.b16 %v4409, %v4408
    %v4635 = vpack.c.b16 %v4411, %v4410
    %v4636 = vpack.c.b16 %v4413, %v4412
    %v4637 = vpack.c.b16 %v4415, %v4414
    %v4638 = vpack.c.b16 %v4417, %v4416
    %v4639 = vpack.c.b16 %v4419, %v4418
    %v4640 = vpack.c.b16 %v4421, %v4420
    %v4641 = vpack.c.b16 %v4423, %v4422
    %v4642 = vpack.c.b16 %v4425, %v4424
    %v4643 = vpack.c.b16 %v4427, %v4426
    %v4644 = vpack.c.b16 %v4429, %v4428
    %v4645 = vpack.c.b16 %v4431, %v4430
    %v4646 = vpack.c.b16 %v4433, %v4432
    %v4647 = vpack.c.b16 %v4435, %v4434
    %v4648 = vpack.c.b16 %v4437, %v4436
    %v4649 = vpack.c.b16 %v4439, %v4438
    %v4650 = vpack.c.b16 %v4441, %v4440
    %v4651 = vpack.c.b16 %v4443, %v4442
    %v4652 = vpack.c.b16 %v4445, %v4444
    %v4653 = vpack.c.b16 %v4447, %v4446
    %v4654 = vpack.c.b16 %v4449, %v4448
    %v4655 = vpack.c.b16 %v4451, %v4450
    %v4656 = vpack.c.b16 %v4453, %v4452
    %v4657 = vpack.c.b16 %v4455, %v4454
    %v4658 = vpack.c.b16 %v4457, %v4456
    %v4659 = vpack.c.b16 %v4459, %v4458
    %v4660 = vpack.c.b16 %v4461, %v4460
    %v4661 = vpack.c.b16 %v4463, %v4462
    %v4662 = vpack.c.b16 %v4465, %v4464
    %v4663 = vpack.c.b16 %v4467, %v4466
    %v4664 = vpack.c.b16 %v4469, %v4468
    %v4665 = vpack.c.b16 %v4471, %v4470
    %v4666 = vpack.c.b16 %v4473, %v4472
    %v4667 = vpack.c.b16 %v4475, %v4474
    %v4668 = vpack.c.b16 %v4477, %v4476
    %v4669 = vpack.c.b16 %v4479, %v4478
    %v4670 = vpack.c.b16 %v4481, %v4480
    %v4671 = vpack.c.b16 %v4483, %v4482
    %v4672 = vpack.c.b16 %v4485, %v4484
    %v4673 = vpack.c.b16 %v4487, %v4486
    %v4674 = vpack.c.b16 %v4489, %v4488
    %v4675 = vpack.c.b16 %v4491, %v4490
    %v4676 = vpack.c.b16 %v4493, %v4492
    %v4677 = vpack.c.b16 %v4495, %v4494
    %v4678 = vpack.c.b16 %v4497, %v4496
    %v4679 = vpack.c.b16 %v4499, %v4498
    %v4680 = vpack.c.b16 %v4501, %v4500
    %v4681 = vpack.c.b16 %v4503, %v4502
    %v4682 = vpack.c.b16 %v4505, %v4504
    %v4683 = vpack.c.b16 %v4507, %v4506
    %v4684 = vpack.c.b16 %v4509, %v4508
    %v4685 = vpack.c.b16 %v4511, %v4510
    %v4686 = vpack.c.b16 %v4513, %v4512
    %v4687 = vpack.c.b16 %v4515, %v4514
    %v4688 = vpack.c.b16 %v4517, %v4516
    %v4689 = vpack.c.b16 %v4519, %v4518
    %v4690 = vpack.c.b16 %v4521, %v4520
    %v4691 = vpack.c.b16 %v4523, %v4522
    %v4692 = vpack.c.b16 %v4525, %v4524
    %v4693 = vpack.c.b16 %v4527, %v4526
    %v4694 = vpack.c.b16 %v4529, %v4528
    %v4695 = vpack.c.b16 %v4531, %v4530
    %v4696 = vpack.c.b16 %v4533, %v4532
    %v4697 = vpack.c.b16 %v4535, %v4534
    %v4698 = vpack.c.b16 %v4537, %v4536
    %v4699 = vpack.c.b16 %v4539, %v4538
    %v4700 = vpack.c.b16 %v4541, %v4540
    %v4701 = vpack.c.b16 %v4543, %v4542
    %v4702 = vpack.c.b16 %v4545, %v4544
    %v4703 = vpack.c.b16 %v4547, %v4546
    %v4704 = vpack.c.b16 %v4549, %v4548
    %v4705 = vpack.c.b16 %v4551, %v4550
    %v4706 = vpack.c.b16 %v4553, %v4552
    %v4707 = vpack.c.b16 %v4555, %v4554
    %v4708 = vpack.c.b16 %v4557, %v4556
    %v4709 = vpack.c.b16 %v4559, %v4558
    %v4710 = vpack.c.b16 %v4561, %v4560
    %v4711 = vpack.c.b16 %v4563, %v4562
    %v4712 = vpack.c.b16 %v4565, %v4564
    %v4713 = vpack.c.b16 %v4567, %v4566
    %v4714 = vpack.c.b16 %v4569, %v4568
    %v4715 = vpack.c.b16 %v4571, %v4570
    %v4716 = vpack.c.b16 %v4573, %v4572
    %v4717 = vpack.c.b16 %v4575, %v4574
    %v4718 = vpack.c.b16 %v4577, %v4576
    %v4719 = vpack.c.b16 %v4579, %v4578
    %v4720 = vpack.c.b16 %v4581, %v4580
    %v4721 = vpack.c.b16 %v4583, %v4582
    %v4722 = vpack.c.b16 %v4585, %v4584
    %v4723 = vpack.c.b16 %v4587, %v4586
    %v4724 = vpack.c.b16 %v4589, %v4588
    %v4725 = vpack.c.b16 %v4591, %v4590
    %v4726 = vpack.c.b16 %v4593, %v4592
    %v4727 = vpack.c.b16 %v4595, %v4594
    %v4728 = vpack.c.b16 %v4597, %v4596
    %v4729 = vpack.c.b16 %v4599, %v4598
    %v4730 = vpack.c.b16 %v4601, %v4600
    %v4731 = vpack.c.b16 %v4603, %v4602
    %4860 = vmatpush.bf16.msra.mxu0 %v4611
    %4861 = vmatpush.bf16.msra.mxu0 %v4610
    %4862 = vmatpush.bf16.msra.mxu0 %v4609
    %4863 = vmatpush.bf16.msra.mxu0 %v4608
    %4864 = vmatpush.bf16.msra.mxu0 %v4607
    %4865 = vmatpush.bf16.msra.mxu0 %v4606
    %4866 = vmatpush.bf16.msra.mxu0 %v4605
    %4867 = vmatpush.bf16.msra.mxu0 %v4604
    %4868 = vmatmul.bf16.gmra.mxu0 %v3814
    %v4869 = vpop.f32.mrf.mxu0
    %v4870 = vadd.f32 %v4090, %v4869
    %v4871 = vpop.f32.mrf.mxu0
    %v4872 = vadd.f32 %v4090, %v4871
    %4873 = vdwg.mxu0
    %4874 = vmatpush.bf16.msra.mxu0 %v4619
    %4875 = vmatpush.bf16.msra.mxu0 %v4618
    %4876 = vmatpush.bf16.msra.mxu0 %v4617
    %4877 = vmatpush.bf16.msra.mxu0 %v4616
    %4878 = vmatpush.bf16.msra.mxu0 %v4615
    %4879 = vmatpush.bf16.msra.mxu0 %v4614
    %4880 = vmatpush.bf16.msra.mxu0 %v4613
    %4881 = vmatpush.bf16.msra.mxu0 %v4612
    %4882 = vmatmul.bf16.gmra.mxu0 %v3815
    %v4883 = vpop.f32.mrf.mxu0
    %v4884 = vadd.f32 %v4870, %v4883
    %v4885 = vpop.f32.mrf.mxu0
    %v4886 = vadd.f32 %v4872, %v4885
    %4887 = vdwg.mxu0
    %4888 = vmatpush.bf16.msra.mxu0 %v4627
    %4889 = vmatpush.bf16.msra.mxu0 %v4626
    %4890 = vmatpush.bf16.msra.mxu0 %v4625
    %4891 = vmatpush.bf16.msra.mxu0 %v4624
    %4892 = vmatpush.bf16.msra.mxu0 %v4623
    %4893 = vmatpush.bf16.msra.mxu0 %v4622
    %4894 = vmatpush.bf16.msra.mxu0 %v4621
    %4895 = vmatpush.bf16.msra.mxu0 %v4620
    %4896 = vmatmul.bf16.gmra.mxu0 %v3816
    %v4897 = vpop.f32.mrf.mxu0
    %v4898 = vadd.f32 %v4884, %v4897
    %v4899 = vpop.f32.mrf.mxu0
    %v4900 = vadd.f32 %v4886, %v4899
    %4901 = vdwg.mxu0
    %4902 = vmatpush.bf16.msra.mxu0 %v4635
    %4903 = vmatpush.bf16.msra.mxu0 %v4634
    %4904 = vmatpush.bf16.msra.mxu0 %v4633
    %4905 = vmatpush.bf16.msra.mxu0 %v4632
    %4906 = vmatpush.bf16.msra.mxu0 %v4631
    %4907 = vmatpush.bf16.msra.mxu0 %v4630
    %4908 = vmatpush.bf16.msra.mxu0 %v4629
    %4909 = vmatpush.bf16.msra.mxu0 %v4628
    %4910 = vmatmul.bf16.gmra.mxu0 %v3817
    %v4911 = vpop.f32.mrf.mxu0
    %v4912 = vadd.f32 %v4898, %v4911
    %v4913 = vpop.f32.mrf.mxu0
    %v4914 = vadd.f32 %v4900, %v4913
    %4915 = vdwg.mxu0
    %4916 = vmatpush.bf16.msra.mxu0 %v4643
    %4917 = vmatpush.bf16.msra.mxu0 %v4642
    %4918 = vmatpush.bf16.msra.mxu0 %v4641
    %4919 = vmatpush.bf16.msra.mxu0 %v4640
    %4920 = vmatpush.bf16.msra.mxu0 %v4639
    %4921 = vmatpush.bf16.msra.mxu0 %v4638
    %4922 = vmatpush.bf16.msra.mxu0 %v4637
    %4923 = vmatpush.bf16.msra.mxu0 %v4636
    %4924 = vmatmul.bf16.gmra.mxu0 %v3818
    %v4925 = vpop.f32.mrf.mxu0
    %v4926 = vadd.f32 %v4912, %v4925
    %v4927 = vpop.f32.mrf.mxu0
    %v4928 = vadd.f32 %v4914, %v4927
    %4929 = vdwg.mxu0
    %4930 = vmatpush.bf16.msra.mxu0 %v4651
    %4931 = vmatpush.bf16.msra.mxu0 %v4650
    %4932 = vmatpush.bf16.msra.mxu0 %v4649
    %4933 = vmatpush.bf16.msra.mxu0 %v4648
    %4934 = vmatpush.bf16.msra.mxu0 %v4647
    %4935 = vmatpush.bf16.msra.mxu0 %v4646
    %4936 = vmatpush.bf16.msra.mxu0 %v4645
    %4937 = vmatpush.bf16.msra.mxu0 %v4644
    %4938 = vmatmul.bf16.gmra.mxu0 %v3819
    %v4939 = vpop.f32.mrf.mxu0
    %v4940 = vadd.f32 %v4926, %v4939
    %v4941 = vpop.f32.mrf.mxu0
    %v4942 = vadd.f32 %v4928, %v4941
    %4943 = vdwg.mxu0
    %4944 = vmatpush.bf16.msra.mxu0 %v4659
    %4945 = vmatpush.bf16.msra.mxu0 %v4658
    %4946 = vmatpush.bf16.msra.mxu0 %v4657
    %4947 = vmatpush.bf16.msra.mxu0 %v4656
    %4948 = vmatpush.bf16.msra.mxu0 %v4655
    %4949 = vmatpush.bf16.msra.mxu0 %v4654
    %4950 = vmatpush.bf16.msra.mxu0 %v4653
    %4951 = vmatpush.bf16.msra.mxu0 %v4652
    %4952 = vmatmul.bf16.gmra.mxu0 %v3820
    %v4953 = vpop.f32.mrf.mxu0
    %v4954 = vadd.f32 %v4940, %v4953
    %v4955 = vpop.f32.mrf.mxu0
    %v4956 = vadd.f32 %v4942, %v4955
    %4957 = vdwg.mxu0
    %4958 = vmatpush.bf16.msra.mxu0 %v4667
    %4959 = vmatpush.bf16.msra.mxu0 %v4666
    %4960 = vmatpush.bf16.msra.mxu0 %v4665
    %4961 = vmatpush.bf16.msra.mxu0 %v4664
    %4962 = vmatpush.bf16.msra.mxu0 %v4663
    %4963 = vmatpush.bf16.msra.mxu0 %v4662
    %4964 = vmatpush.bf16.msra.mxu0 %v4661
    %4965 = vmatpush.bf16.msra.mxu0 %v4660
    %4966 = vmatmul.bf16.gmra.mxu0 %v3821
    %v4967 = vpop.f32.mrf.mxu0
    %v4968 = vadd.f32 %v4954, %v4967
    %v4969 = vpop.f32.mrf.mxu0
    %v4970 = vadd.f32 %v4956, %v4969
    %4971 = vdwg.mxu0
    %4972 = vmatpush.bf16.msra.mxu0 %v4675
    %4973 = vmatpush.bf16.msra.mxu0 %v4674
    %4974 = vmatpush.bf16.msra.mxu0 %v4673
    %4975 = vmatpush.bf16.msra.mxu0 %v4672
    %4976 = vmatpush.bf16.msra.mxu0 %v4671
    %4977 = vmatpush.bf16.msra.mxu0 %v4670
    %4978 = vmatpush.bf16.msra.mxu0 %v4669
    %4979 = vmatpush.bf16.msra.mxu0 %v4668
    %4980 = vmatmul.bf16.gmra.mxu0 %v3822
    %v4981 = vpop.f32.mrf.mxu0
    %v4982 = vadd.f32 %v4968, %v4981
    %v4983 = vpop.f32.mrf.mxu0
    %v4984 = vadd.f32 %v4970, %v4983
    %4985 = vdwg.mxu0
    %4986 = vmatpush.bf16.msra.mxu0 %v4683
    %4987 = vmatpush.bf16.msra.mxu0 %v4682
    %4988 = vmatpush.bf16.msra.mxu0 %v4681
    %4989 = vmatpush.bf16.msra.mxu0 %v4680
    %4990 = vmatpush.bf16.msra.mxu0 %v4679
    %4991 = vmatpush.bf16.msra.mxu0 %v4678
    %4992 = vmatpush.bf16.msra.mxu0 %v4677
    %4993 = vmatpush.bf16.msra.mxu0 %v4676
    %4994 = vmatmul.bf16.gmra.mxu0 %v3823
    %v4995 = vpop.f32.mrf.mxu0
    %v4996 = vadd.f32 %v4982, %v4995
    %v4997 = vpop.f32.mrf.mxu0
    %v4998 = vadd.f32 %v4984, %v4997
    %4999 = vdwg.mxu0
    %5000 = vmatpush.bf16.msra.mxu0 %v4691
    %5001 = vmatpush.bf16.msra.mxu0 %v4690
    %5002 = vmatpush.bf16.msra.mxu0 %v4689
    %5003 = vmatpush.bf16.msra.mxu0 %v4688
    %5004 = vmatpush.bf16.msra.mxu0 %v4687
    %5005 = vmatpush.bf16.msra.mxu0 %v4686
    %5006 = vmatpush.bf16.msra.mxu0 %v4685
    %5007 = vmatpush.bf16.msra.mxu0 %v4684
    %5008 = vmatmul.bf16.gmra.mxu0 %v3824
    %v5009 = vpop.f32.mrf.mxu0
    %v5010 = vadd.f32 %v4996, %v5009
    %v5011 = vpop.f32.mrf.mxu0
    %v5012 = vadd.f32 %v4998, %v5011
    %5013 = vdwg.mxu0
    %5014 = vmatpush.bf16.msra.mxu0 %v4699
    %5015 = vmatpush.bf16.msra.mxu0 %v4698
    %5016 = vmatpush.bf16.msra.mxu0 %v4697
    %5017 = vmatpush.bf16.msra.mxu0 %v4696
    %5018 = vmatpush.bf16.msra.mxu0 %v4695
    %5019 = vmatpush.bf16.msra.mxu0 %v4694
    %5020 = vmatpush.bf16.msra.mxu0 %v4693
    %5021 = vmatpush.bf16.msra.mxu0 %v4692
    %5022 = vmatmul.bf16.gmra.mxu0 %v3825
    %v5023 = vpop.f32.mrf.mxu0
    %v5024 = vadd.f32 %v5010, %v5023
    %v5025 = vpop.f32.mrf.mxu0
    %v5026 = vadd.f32 %v5012, %v5025
    %5027 = vdwg.mxu0
    %5028 = vmatpush.bf16.msra.mxu0 %v4707
    %5029 = vmatpush.bf16.msra.mxu0 %v4706
    %5030 = vmatpush.bf16.msra.mxu0 %v4705
    %5031 = vmatpush.bf16.msra.mxu0 %v4704
    %5032 = vmatpush.bf16.msra.mxu0 %v4703
    %5033 = vmatpush.bf16.msra.mxu0 %v4702
    %5034 = vmatpush.bf16.msra.mxu0 %v4701
    %5035 = vmatpush.bf16.msra.mxu0 %v4700
    %5036 = vmatmul.bf16.gmra.mxu0 %v3826
    %v5037 = vpop.f32.mrf.mxu0
    %v5038 = vadd.f32 %v5024, %v5037
    %v5039 = vpop.f32.mrf.mxu0
    %v5040 = vadd.f32 %v5026, %v5039
    %5041 = vdwg.mxu0
    %5042 = vmatpush.bf16.msra.mxu0 %v4715
    %5043 = vmatpush.bf16.msra.mxu0 %v4714
    %5044 = vmatpush.bf16.msra.mxu0 %v4713
    %5045 = vmatpush.bf16.msra.mxu0 %v4712
    %5046 = vmatpush.bf16.msra.mxu0 %v4711
    %5047 = vmatpush.bf16.msra.mxu0 %v4710
    %5048 = vmatpush.bf16.msra.mxu0 %v4709
    %5049 = vmatpush.bf16.msra.mxu0 %v4708
    %5050 = vmatmul.bf16.gmra.mxu0 %v3827
    %v5051 = vpop.f32.mrf.mxu0
    %v5052 = vadd.f32 %v5038, %v5051
    %v5053 = vpop.f32.mrf.mxu0
    %v5054 = vadd.f32 %v5040, %v5053
    %5055 = vdwg.mxu0
    %5056 = vmatpush.bf16.msra.mxu0 %v4723
    %5057 = vmatpush.bf16.msra.mxu0 %v4722
    %5058 = vmatpush.bf16.msra.mxu0 %v4721
    %5059 = vmatpush.bf16.msra.mxu0 %v4720
    %5060 = vmatpush.bf16.msra.mxu0 %v4719
    %5061 = vmatpush.bf16.msra.mxu0 %v4718
    %5062 = vmatpush.bf16.msra.mxu0 %v4717
    %5063 = vmatpush.bf16.msra.mxu0 %v4716
    %5064 = vmatmul.bf16.gmra.mxu0 %v3828
    %v5065 = vpop.f32.mrf.mxu0
    %v5066 = vadd.f32 %v5052, %v5065
    %v5067 = vpop.f32.mrf.mxu0
    %v5068 = vadd.f32 %v5054, %v5067
    %5069 = vdwg.mxu0
    %5070 = vmatpush.bf16.msra.mxu0 %v4731
    %5071 = vmatpush.bf16.msra.mxu0 %v4730
    %5072 = vmatpush.bf16.msra.mxu0 %v4729
    %5073 = vmatpush.bf16.msra.mxu0 %v4728
    %5074 = vmatpush.bf16.msra.mxu0 %v4727
    %5075 = vmatpush.bf16.msra.mxu0 %v4726
    %5076 = vmatpush.bf16.msra.mxu0 %v4725
    %5077 = vmatpush.bf16.msra.mxu0 %v4724
    %5078 = vmatmul.bf16.gmra.mxu0 %v3829
    %v5079 = vpop.f32.mrf.mxu0
    %v5080 = vadd.f32 %v5066, %v5079
    %v5081 = vpop.f32.mrf.mxu0
    %v5082 = vadd.f32 %v5068, %v5081
    %5083 = vdwg.mxu0
    %v5084 = vadd.f32 %v3322, %v5080
    %v5085 = vadd.f32 %v3323, %v5082
    %v5086 = vsel %vm75, %v5084, 0.0
    %5087 = vadd.xlane.f32.xlu0 %v5086
    %v5088 = vpop.xlane.xlu0 %5087
    %v5089 = vsel %vm75, %v5085, 0.0
    %5090 = vadd.xlane.f32.xlu0 %v5089
    %v5091 = vpop.xlane.xlu0 %5090
    %v5092 = vmul.f32 %v5088, %v733
    %v5093 = vmul.f32 %v5091, %v733
    %v5094 = vsub.f32 %v5084, %v5092
    %v5095 = vsub.f32 %v5085, %v5093
    %v5096 = vmul.f32 %v5094, %v5094
    %v5097 = vmul.f32 %v5095, %v5095
    %v5098 = vsel %vm75, %v5096, 0.0
    %5099 = vadd.xlane.f32.xlu0 %v5098
    %v5100 = vpop.xlane.xlu0 %5099
    %v5101 = vsel %vm75, %v5097, 0.0
    %5102 = vadd.xlane.f32.xlu0 %v5101
    %v5103 = vpop.xlane.xlu0 %5102
    %v5104 = vmul.f32 %v5100, %v733
    %v5105 = vmul.f32 %v5103, %v733
    %v5106 = vadd.f32 %v5104, 1e-05
    %v5107 = vadd.f32 %v5105, 1e-05
    %v5108 = vrsqrt.pop %v5106
    %v5109 = vmul.f32 %v5108, %v5106
    %v5110 = vmul.f32 %v5109, %v5108
    %v5111 = vmul.f32 0.5, %v5110
    %v5112 = vsub.f32 1.5, %v5111
    %v5113 = vmul.f32 %v5108, %v5112
    %vm5114 = vweird.f32 %v5106
    %vm5115 = vweird.f32 %v5108
    %vm5116 = vmor %vm5114, %vm5115
    %v5117 = vsel %vm5116, %v5108, %v5113
    %v5118 = vrsqrt.pop %v5107
    %v5119 = vmul.f32 %v5118, %v5107
    %v5120 = vmul.f32 %v5119, %v5118
    %v5121 = vmul.f32 0.5, %v5120
    %v5122 = vsub.f32 1.5, %v5121
    %v5123 = vmul.f32 %v5118, %v5122
    %vm5124 = vweird.f32 %v5107
    %vm5125 = vweird.f32 %v5118
    %vm5126 = vmor %vm5124, %vm5125
    %v5127 = vsel %vm5126, %v5118, %v5123
    %v5128 = vmul.f32 %v5094, %v5117
    %v5129 = vmul.f32 %v5095, %v5127
    %s5130 = scalar_lea.vmem %s11, 1
    %v5131 = vld [vmem:[%s5130] sm:$0x1]
    %v5133 = vperm.slane %v5131, 0
    %v5135 = vmul.f32 %v5128, %v5133
    %v5136 = vmul.f32 %v5129, %v5133
    %s5137 = scalar_lea.vmem %s12, 1
    %v5138 = vld [vmem:[%s5137] sm:$0x1]
    %v5140 = vperm.slane %v5138, 0
    %v5142 = vadd.f32 %v5135, %v5140
    %v5143 = vadd.f32 %v5136, %v5140
    %v5145 = vrot.slane %v5143, 7
    %vm5147 = vcmask 1040384
    %v5148 = vsel %vm5147, %v5142, %v5145
    %v5149 = vpack.c.bf16 %v5148, %v5148
    %v5150 = vld [vmem:[%s13] sm:$0xf]
    %v5151 = vld [vmem:[%s13 + $0x4] sm:$0xf]
    %v5152 = vld [vmem:[%s13 + $0x8] sm:$0xf]
    %v5153 = vld [vmem:[%s13 + $0xc] sm:$0xf]
    %v5154 = vld [vmem:[%s14] sm:$0x1]
    %v5156 = vperm.slane %v5154, 0
    %v5162 = vunpack.c.l.b16 %v5150
    %v5163 = vunpack.c.l.b16 %v5151
    %v5164 = vunpack.c.l.b16 %v5152
    %v5165 = vunpack.c.l.b16 %v5153
    %v5166 = vpack.c.b16 %v5163, %v5162
    %v5167 = vpack.c.b16 %v5165, %v5164
    %v5171 = vsel %vm75, %v5149, 0
    %5173 = vmatpush.bf16.msra.mxu0 0
    %5174 = vmatpush.bf16.msra.mxu0 0
    %5175 = vmatpush.bf16.msra.mxu0 0
    %5176 = vmatpush.bf16.msra.mxu0 0
    %5177 = vmatpush.bf16.msra.mxu0 0
    %5178 = vmatpush.bf16.msra.mxu0 0
    %5179 = vmatpush.bf16.msra.mxu0 %v5167
    %5180 = vmatpush.bf16.msra.mxu0 %v5166
    %5181 = vmatmul.bf16.gmra.mxu0 %v5171
    %v5182 = vpop.f32.mrf.mxu0
    %v5183 = vadd.f32 %v5156, %v5182
    %v5184 = vpop.f32.mrf.mxu0
    %5185 = vdwg.mxu0
    %vm5186 = vcmask 123904
    %5187 = vst.msk [vmem:[#allocation2] sm:$0x3] %vm5186, %v5183
    // Predicated region
    $region62: #{tpu_custom_call.1} parent=1 // pred_check
      _
    $region63: #{tpu_custom_call.1} parent=1 // pred_check_branch
      %5189 = sbr.rel (0) target = $region65
    $region64: #{tpu_custom_call.1} parent=1 // pred_region
      %5191 = vsyncadd [#allocation3], 0
      %s5193 = sshll.u32 [#allocation2], 4
      %s5194 = int_to_ptr.vmem [resolvable:$true] %s5193
      %s5195 = sshll.u32 %s15, 4
      %s5196 = int_to_ptr.hbm [resolvable:$true] %s5195
      %5198 = dma.vmem_to_hbm [thread:$0]  %s5194, 32, %s5196, [#allocation3]
    $region65: #{tpu_custom_call.1} parent=1 // pred_fallthru
      _
    // Predicated region
    $region66: #{tpu_custom_call.1} parent=1 // pred_check
      _
    $region67: #{tpu_custom_call.1} parent=1 // pred_check_branch
      %5200 = sbr.rel (0) target = $region69
    $region68: #{tpu_custom_call.1} parent=1 // pred_region
      %5202 = dma.done [#allocation3], 32
    $region69: #{tpu_custom_call.1} parent=1 // pred_fallthru
      _
    %5203 = vsyncpa [#allocation3], 1

</llo_original>
